<compile_context>
chip_gen: v7x
topology: tpu7x:2x2x1
jax: 0.10.0
libtpu: 0.0.40
codegen_flags: <defaults>
</compile_context>

<pallas_src>
import numpy as np
import jax
import jax.numpy as jnp
from jax.experimental import pallas as pl
from jax.experimental.pallas import tpu as pltpu


def _round_up(x, m):
    return (x + m - 1) // m * m


# ------------------------------ fused kernel ------------------------------- #

def _make_fused_kernel(*, expand, residual, stride, th, wo, wpad, cin, ch):
    """Expand -> depthwise -> project (+residual); one grid step per row tile."""
    hin_t = (th - 1) * stride + 3          # input rows per tile (incl. halo)
    m2d = hin_t * wpad                     # flattened-spatial rows of the window

    def kernel(*refs):
        i = 0
        x_ref = refs[i]; i += 1            # (1, Hpad*Wpad, Cin[+1]) whole image
        if expand:
            we_ref = refs[i]; i += 1       # (Cin+1, Ch)  BN scale+bias folded in
        wd_ref = refs[i]; i += 1           # (9, Ch)      depthwise w * bn_scale
        bd_ref = refs[i]; i += 1           # (1, Ch)
        wj_ref = refs[i]; i += 1           # (Ch, Cout_p) projection w * bn_scale
        bj_ref = refs[i]; i += 1           # (1, Cout_p)
        o_ref = refs[i]; i += 1            # (1, 1, TH*Wo, Cout_p)
        h_ref = None
        if expand:
            h_ref = refs[i]; i += 1        # VMEM scratch (M2d, Ch)
        d_ref = refs[i]; i += 1            # VMEM scratch (TH*Wo, Ch)

        t = pl.program_id(1)
        step = th * stride * wpad
        base = t * step                    # flat row offset of this tile window
        if step % 8 == 0:
            base = pl.multiple_of(base, 8)

        # ---- 1) 1x1 expand conv + BN + ReLU6: one lane-dense matmul ----------
        # BN scale folded into weight columns; BN bias carried by an all-ones
        # input channel, so zero-padded pixels stay exactly zero afterwards.
        if expand:
            xw = x_ref[0, pl.ds(base, m2d), :]
            y = jnp.dot(xw, we_ref[...], preferred_element_type=jnp.float32)
            h_ref[...] = jnp.clip(y, 0.0, 6.0).astype(h_ref.dtype)

        # Loop-invariant loads, hoisted (JAX does not CSE repeated ref reads).
        wd = [wd_ref[k:k + 1, :] for k in range(9)]       # 9 x (1, Ch), f32
        bd = bd_ref[...]                                  # (1, Ch), f32

        def load(off, n):
            """n consecutive flattened-spatial rows of the hidden/input plane."""
            if expand:
                v = h_ref[pl.ds(off, n), :]
            else:
                v = x_ref[0, pl.ds(base + off, n), :]
            return v.astype(jnp.float32)

        # ---- 2) 3x3 depthwise conv + BN + ReLU6, staged row-by-row into a
        #         (TH*Wo, Ch) VMEM scratch so the projection runs as ONE matmul.
        for r in range(th):
            acc = jnp.zeros((wo, ch), jnp.float32)
            for kh in range(3):
                row0 = (r * stride + kh) * wpad
                if stride == 1:
                    seg = load(row0, wo + 2)              # whole padded row
                    taps = [seg[0:wo], seg[1:wo + 1], seg[2:wo + 2]]
                else:
                    # Columns were pre-split into [even | odd] planes in the
                    # wrapper, so every tap load below is unit-stride.
                    even = load(row0, wo + 1)
                    odd = load(row0 + wo + 1, wo)
                    taps = [even[0:wo], odd, even[1:wo + 1]]
                for kw in range(3):
                    acc = acc + taps[kw] * wd[3 * kh + kw]
            acc = jnp.clip(acc + bd, 0.0, 6.0)
            d_ref[r * wo:(r + 1) * wo, :] = acc.astype(d_ref.dtype)

        # ---- 3) 1x1 projection conv + BN: one big matmul, one lane-dense store.
        z = jnp.dot(d_ref[...], wj_ref[...], preferred_element_type=jnp.float32)
        o_ref[0, 0] = (z + bj_ref[...]).astype(o_ref.dtype)

        # ---- 4) identity residual straight from the input tile in VMEM --------
        # stride == 1 here: output row r of this tile is padded row
        # (t*TH + r + 1), columns [1, 1+Wo).
        if residual:
            for r in range(th):
                roff = base + (r + 1) * wpad + 1
                res = x_ref[0, pl.ds(roff, wo), :][:, :cin]
                cur = o_ref[0, 0, r * wo:(r + 1) * wo, :cin]
                o_ref[0, 0, r * wo:(r + 1) * wo, :cin] = (
                    cur.astype(jnp.float32) + res.astype(jnp.float32)
                ).astype(o_ref.dtype)

    return kernel


# --------------------------------- wrapper --------------------------------- #

def inverted_residual_forward(x_nchw, params, stride, identity, expansion, *,
                              row_tile=16, compute_dtype=jnp.float32):
    """Fused InvertedResidual forward.  x_nchw: (N, Cin, H, W) float32."""
    assert stride in (1, 2)
    N, Cin, H, W = x_nchw.shape
    expand = expansion != 1
    Chid = params["w_exp"].shape[1] if expand else Cin
    Cout = params["w_proj"].shape[1]
    if identity:
        assert stride == 1 and Cin == Cout

    # Lane-dense (128) padding only where it pays: hidden activation and output.
    # The HBM-side input keeps its true channel count (+1 bias channel).
    Ch = _round_up(Chid, 128) if expand else Chid
    Cout_p = _round_up(Cout, 128)

    Ho = (H - 1) // stride + 1                     # 3x3 conv, padding=1
    Wo = (W - 1) // stride + 1
    TH = min(row_tile, Ho)                         # output rows per grid step
    n_t = pl.cdiv(Ho, TH)
    Ho_pad = n_t * TH
    Hin_t = (TH - 1) * stride + 3                  # input rows per tile (halo)
    Wpad = (Wo - 1) * stride + 3                   # padded input width
    Hpad = (Ho_pad - 1) * stride + 3               # padded input height
    M2d = Hin_t * Wpad
    # Tap span of the last output row/col must stay inside the padded image.
    assert Wpad >= W + 1 and Hpad >= H + 1

    x = jnp.transpose(x_nchw, (0, 2, 3, 1))        # NCHW -> NHWC
    if expand:
        # All-ones channel carries the folded expand-BN bias so the spatial
        # zero padding stays exactly zero after expand + BN + ReLU6.
        x = jnp.concatenate([x, jnp.ones((N, H, W, 1), x.dtype)], axis=-1)
    Cin_a = x.shape[-1]

    xp = jnp.pad(x, ((0, 0), (1, Hpad - 1 - H), (1, Wpad - 1 - W), (0, 0)))
    if stride == 2:
        # Split each row into [even columns | odd columns] so every depthwise
        # tap in the kernel is a unit-stride load (no strided/gather loads).
        xp = jnp.concatenate([xp[:, :, 0::2, :], xp[:, :, 1::2, :]], axis=2)
    # Only matmul operands go to compute_dtype; pure-VPU inputs stay f32.
    x_dtype = compute_dtype if expand else jnp.float32
    x_flat = xp.reshape(N, Hpad * Wpad, Cin_a).astype(x_dtype)

    def _pad2(a, rows, cols):
        return jnp.pad(a, ((0, rows - a.shape[0]), (0, cols - a.shape[1])))

    args = [x_flat]
    in_specs = [pl.BlockSpec((1, Hpad * Wpad, Cin_a), lambda n, t: (n, 0, 0))]

    if expand:
        w_aug = jnp.concatenate(
            [params["w_exp"] * params["s_exp"][None, :],
             params["b_exp"][None, :]], axis=0)              # (Cin+1, Chid)
        args.append(_pad2(w_aug, Cin_a, Ch).astype(compute_dtype))
        in_specs.append(pl.BlockSpec((Cin_a, Ch), lambda n, t: (0, 0)))

    wd = (params["w_dw"] * params["s_dw"][None, None, :]).reshape(9, Chid)
    args += [_pad2(wd, 9, Ch).astype(jnp.float32),
             _pad2(params["b_dw"][None, :], 1, Ch).astype(jnp.float32),
             _pad2(params["w_proj"] * params["s_proj"][None, :],
                   Ch, Cout_p).astype(compute_dtype),
             _pad2(params["b_proj"][None, :], 1, Cout_p).astype(jnp.float32)]
    in_specs += [pl.BlockSpec((9, Ch), lambda n, t: (0, 0)),
                 pl.BlockSpec((1, Ch), lambda n, t: (0, 0)),
                 pl.BlockSpec((Ch, Cout_p), lambda n, t: (0, 0)),
                 pl.BlockSpec((1, Cout_p), lambda n, t: (0, 0))]

    kernel = _make_fused_kernel(expand=expand, residual=identity,
                                stride=stride, th=TH, wo=Wo, wpad=Wpad,
                                cin=Cin, ch=Ch)

    scratch_shapes = []
    if expand:
        scratch_shapes.append(pltpu.VMEM((M2d, Ch), compute_dtype))
    scratch_shapes.append(pltpu.VMEM((TH * Wo, Ch), compute_dtype))

    # VMEM budget from the actual per-step footprint (double-buffered blocks +
    # scratch + weights), clamped to a scope that is legal on v5e/v6e/v7x.
    isz = lambda dt: np.dtype(dt).itemsize
    est = (2 * Hpad * Wpad * Cin_a * isz(x_dtype)
           + 2 * TH * Wo * Cout_p * isz(x_nchw.dtype)
           + TH * Wo * Ch * isz(compute_dtype)
           + (M2d * Ch * isz(compute_dtype) if expand else 0)
           + 2 * 4 * (Cin_a * Ch + 10 * Ch + Ch * Cout_p + Cout_p))
    vmem_limit = int(min(max(2 * est, 32 * 1024 * 1024), 64 * 1024 * 1024))

    out = pl.pallas_call(
        kernel,
        out_shape=jax.ShapeDtypeStruct((N, n_t, TH * Wo, Cout_p),
                                       x_nchw.dtype),
        grid=(N, n_t),
        in_specs=in_specs,
        out_specs=pl.BlockSpec((1, 1, TH * Wo, Cout_p),
                               lambda n, t: (n, t, 0, 0)),
        scratch_shapes=scratch_shapes,
        compiler_params=pltpu.CompilerParams(
            # Batch axis shards across megacore TCs; the row-tile axis stays
            # sequential per core so the whole-image input block (whose index
            # ignores t) is DMA'd from HBM only once per batch element.
            dimension_semantics=("parallel", "arbitrary"),
            vmem_limit_bytes=vmem_limit),
    )(*args)

    out = out.reshape(N, Ho_pad, Wo, Cout_p)[:, :Ho, :, :Cout]
    return jnp.transpose(out, (0, 3, 1, 2))        # NHWC -> NCHW


# ---------------------------- reference (pure JAX) -------------------------- #

def ref_forward(x_nchw, params, stride, identity, expansion):
    x = jnp.transpose(x_nchw, (0, 2, 3, 1))
    h = x
    if expansion != 1:
        h = jax.lax.conv_general_dilated(
            h, params["w_exp"][None, None, :, :], (1, 1), "VALID",
            dimension_numbers=("NHWC", "HWIO", "NHWC"))
        h = jnp.clip(h * params["s_exp"] + params["b_exp"], 0.0, 6.0)
    C = h.shape[-1]
    h = jax.lax.conv_general_dilated(
        h, params["w_dw"][:, :, None, :], (stride, stride), ((1, 1), (1, 1)),
        dimension_numbers=("NHWC", "HWIO", "NHWC"), feature_group_count=C)
    h = jnp.clip(h * params["s_dw"] + params["b_dw"], 0.0, 6.0)
    h = jax.lax.conv_general_dilated(
        h, params["w_proj"][None, None, :, :], (1, 1), "VALID",
        dimension_numbers=("NHWC", "HWIO", "NHWC"))
    h = h * params["s_proj"] + params["b_proj"]
    out = jnp.transpose(h, (0, 3, 1, 2))
    if identity:
        out = x_nchw + out
    return out


# ------------------------------- param init --------------------------------- #

def init_params(key, cin, cout, expansion, eps=1e-5):
    chid = round(cin * expansion)
    ks = jax.random.split(key, 15)

    def bn_fold(kg, kb, km, kv, c):
        gamma = jax.random.uniform(kg, (c,), jnp.float32, 0.5, 1.5)
        beta = 0.1 * jax.random.normal(kb, (c,), jnp.float32)
        mean = 0.1 * jax.random.normal(km, (c,), jnp.float32)
        var = jax.random.uniform(kv, (c,), jnp.float32, 0.5, 1.5)
        scale = gamma / jnp.sqrt(var + eps)
        bias = beta - mean * scale
        return scale, bias

    p = {}
    if expansion != 1:
        p["w_exp"] = 0.3 * jax.random.normal(ks[0], (cin, chid), jnp.float32)
        p["s_exp"], p["b_exp"] = bn_fold(ks[1], ks[2], ks[3], ks[4], chid)
    p["w_dw"] = 0.3 * jax.random.normal(ks[5], (3, 3, chid), jnp.float32)
    p["s_dw"], p["b_dw"] = bn_fold(ks[6], ks[7], ks[8], ks[9], chid)
    p["w_proj"] = 0.3 * jax.random.normal(ks[10], (chid, cout), jnp.float32)
    p["s_proj"], p["b_proj"] = bn_fold(ks[11], ks[12], ks[13], ks[14], cout)
    return p


# ----------------------------------- main ----------------------------------- #

if __name__ == "__main__":
    base_key = jax.random.PRNGKey(0)

    configs = [
        # (cin, cout, stride, expansion, N, H, W, row_tile, compute_dtype, tol)
        (4, 4, 1, 2, 2, 16, 16, 16, jnp.float32, 1e-4),   # expand + residual
        (4, 4, 1, 1, 2, 16, 16, 16, jnp.float32, 1e-4),   # expansion == 1 path
        (4, 8, 2, 2, 2, 16, 16, 16, jnp.float32, 1e-4),   # stride-2 path
        (4, 4, 1, 2, 1, 12, 12, 8,  jnp.float32, 1e-4),   # ragged rows, 2 tiles
        (4, 4, 1, 2, 2, 16, 16, 16, jnp.bfloat16, 6e-1),  # bf16 MXU path
    ]

    for idx, (cin, cout, stride, expansion, n, h, w, rt, cdt, tol) in \
            enumerate(configs):
        identity = (stride == 1 and cin == cout)
        kp = jax.random.fold_in(base_key, idx)
        params = init_params(kp, cin, cout, expansion)
        x = jax.random.normal(jax.random.fold_in(kp, 99), (n, cin, h, w),
                              jnp.float32)

        out = inverted_residual_forward(x, params, stride, identity, expansion,
                                        row_tile=rt, compute_dtype=cdt)
        out = jax.block_until_ready(out)

        ref = ref_forward(x, params, stride, identity, expansion)
        assert out.shape == ref.shape, (idx, out.shape, ref.shape)
        err = float(jnp.max(jnp.abs(out - ref)))
        assert err < tol, f"config {idx}: max abs error {err} >= {tol}"

    print("KERNEL_OK")
</pallas_src>

<mosaic_0001>
module attributes {stable_mosaic.version = 11 : i64} {
  func.func @kernel(%arg0: i32, %arg1: i32, %arg2: memref<1x324x5xf32, #tpu.memory_space<vmem>>, %arg3: memref<5x128xf32, #tpu.memory_space<vmem>>, %arg4: memref<9x128xf32, #tpu.memory_space<vmem>>, %arg5: memref<1x128xf32, #tpu.memory_space<vmem>>, %arg6: memref<128x128xf32, #tpu.memory_space<vmem>>, %arg7: memref<1x128xf32, #tpu.memory_space<vmem>>, %arg8: memref<1x1x256x128xf32, #tpu.memory_space<vmem>>, %arg9: memref<324x128xf32, #tpu.memory_space<vmem>>, %arg10: memref<256x128xf32, #tpu.memory_space<vmem>>) attributes {dimension_semantics = [#tpu.dimension_semantics<parallel>, #tpu.dimension_semantics<arbitrary>], iteration_bounds = array<i64: 2, 1>, scalar_prefetch = 0 : i64, scratch_operands = 2 : i64, tpu.core_type = #tpu.core_type<tc>, window_params = [{transform_indices = @transform_0, window_bounds = array<i64: 1, 324, 5>}, {pipeline_mode = #tpu.pipeline_mode<synchronous>, transform_indices = @transform_1, window_bounds = array<i64: 5, 128>}, {pipeline_mode = #tpu.pipeline_mode<synchronous>, transform_indices = @transform_2, window_bounds = array<i64: 9, 128>}, {pipeline_mode = #tpu.pipeline_mode<synchronous>, transform_indices = @transform_3, window_bounds = array<i64: 1, 128>}, {pipeline_mode = #tpu.pipeline_mode<synchronous>, transform_indices = @transform_4, window_bounds = array<i64: 128, 128>}, {pipeline_mode = #tpu.pipeline_mode<synchronous>, transform_indices = @transform_5, window_bounds = array<i64: 1, 128>}, {transform_indices = @transform_6, window_bounds = array<i64: 1, 1, 256, 128>}]} {
    %c288_i32 = arith.constant 288 : i32
    %0 = arith.muli %arg1, %c288_i32 : i32
    %1 = tpu.assume_multiple %0, 8 : i32
    %c0 = arith.constant 0 : index
    %2 = arith.index_cast %1 : i32 to index
    %c0_0 = arith.constant 0 : index
    %3 = vector.load %arg2[%c0, %2, %c0_0] : memref<1x324x5xf32, #tpu.memory_space<vmem>>, vector<1x324x5xf32>
    %4 = vector.shape_cast %3 : vector<1x324x5xf32> to vector<324x5xf32>
    %c0_1 = arith.constant 0 : index
    %c0_2 = arith.constant 0 : index
    %5 = vector.load %arg3[%c0_1, %c0_2] : memref<5x128xf32, #tpu.memory_space<vmem>>, vector<5x128xf32>
    %cst = arith.constant dense<0.000000e+00> : vector<324x128xf32>
    %6 = tpu.matmul %4, %5, %cst {dimension_numbers = #tpu.dot_dimension_numbers<[1], [0], [0], [1], [0, 0, 1, 1], [], []>} : vector<324x5xf32>, vector<5x128xf32>, vector<324x128xf32> -> vector<324x128xf32>
    %cst_3 = arith.constant 0.000000e+00 : f32
    %cst_4 = arith.constant 6.000000e+00 : f32
    %7 = vector.broadcast %cst_3 : f32 to vector<324x128xf32>
    %8 = arith.maximumf %7, %6 : vector<324x128xf32>
    %9 = vector.broadcast %cst_4 : f32 to vector<324x128xf32>
    %10 = arith.minimumf %9, %8 : vector<324x128xf32>
    %c0_5 = arith.constant 0 : index
    %c0_6 = arith.constant 0 : index
    %11 = vector.load %arg9[%c0_5, %c0_6] : memref<324x128xf32, #tpu.memory_space<vmem>>, vector<324x128xf32>
    tpu.vector_store %arg9[%c0_5, %c0_6], %10 {strides = array<i32>} : memref<324x128xf32, #tpu.memory_space<vmem>>, vector<324x128xf32>,
    %c0_7 = arith.constant 0 : index
    %c0_8 = arith.constant 0 : index
    %12 = vector.load %arg4[%c0_7, %c0_8] : memref<9x128xf32, #tpu.memory_space<vmem>>, vector<1x128xf32>
    %c1 = arith.constant 1 : index
    %c0_9 = arith.constant 0 : index
    %13 = vector.load %arg4[%c1, %c0_9] : memref<9x128xf32, #tpu.memory_space<vmem>>, vector<1x128xf32>
    %c2 = arith.constant 2 : index
    %c0_10 = arith.constant 0 : index
    %14 = vector.load %arg4[%c2, %c0_10] : memref<9x128xf32, #tpu.memory_space<vmem>>, vector<1x128xf32>
    %c3 = arith.constant 3 : index
    %c0_11 = arith.constant 0 : index
    %15 = vector.load %arg4[%c3, %c0_11] : memref<9x128xf32, #tpu.memory_space<vmem>>, vector<1x128xf32>
    %c4 = arith.constant 4 : index
    %c0_12 = arith.constant 0 : index
    %16 = vector.load %arg4[%c4, %c0_12] : memref<9x128xf32, #tpu.memory_space<vmem>>, vector<1x128xf32>
    %c5 = arith.constant 5 : index
    %c0_13 = arith.constant 0 : index
    %17 = vector.load %arg4[%c5, %c0_13] : memref<9x128xf32, #tpu.memory_space<vmem>>, vector<1x128xf32>
    %c6 = arith.constant 6 : index
    %c0_14 = arith.constant 0 : index
    %18 = vector.load %arg4[%c6, %c0_14] : memref<9x128xf32, #tpu.memory_space<vmem>>, vector<1x128xf32>
    %c7 = arith.constant 7 : index
    %c0_15 = arith.constant 0 : index
    %19 = vector.load %arg4[%c7, %c0_15] : memref<9x128xf32, #tpu.memory_space<vmem>>, vector<1x128xf32>
    %c8 = arith.constant 8 : index
    %c0_16 = arith.constant 0 : index
    %20 = vector.load %arg4[%c8, %c0_16] : memref<9x128xf32, #tpu.memory_space<vmem>>, vector<1x128xf32>
    %c0_17 = arith.constant 0 : index
    %c0_18 = arith.constant 0 : index
    %21 = vector.load %arg5[%c0_17, %c0_18] : memref<1x128xf32, #tpu.memory_space<vmem>>, vector<1x128xf32>
    %cst_19 = arith.constant 0.000000e+00 : f32
    %22 = vector.broadcast %cst_19 : f32 to vector<16x128xf32>
    %c0_20 = arith.constant 0 : index
    %c0_21 = arith.constant 0 : index
    %23 = vector.load %arg9[%c0_20, %c0_21] : memref<324x128xf32, #tpu.memory_space<vmem>>, vector<18x128xf32>
    %24 = vector.extract_strided_slice %23 {offsets = [0, 0], sizes = [16, 128], strides = [1, 1]} : vector<18x128xf32> to vector<16x128xf32>
    %25 = vector.extract_strided_slice %23 {offsets = [1, 0], sizes = [16, 128], strides = [1, 1]} : vector<18x128xf32> to vector<16x128xf32>
    %26 = vector.extract_strided_slice %23 {offsets = [2, 0], sizes = [16, 128], strides = [1, 1]} : vector<18x128xf32> to vector<16x128xf32>
    %27 = vector.broadcast %12 : vector<1x128xf32> to vector<16x128xf32>
    %28 = arith.mulf %24, %27 : vector<16x128xf32>
    %29 = arith.addf %22, %28 : vector<16x128xf32>
    %30 = vector.broadcast %13 : vector<1x128xf32> to vector<16x128xf32>
    %31 = arith.mulf %25, %30 : vector<16x128xf32>
    %32 = arith.addf %29, %31 : vector<16x128xf32>
    %33 = vector.broadcast %14 : vector<1x128xf32> to vector<16x128xf32>
    %34 = arith.mulf %26, %33 : vector<16x128xf32>
    %35 = arith.addf %32, %34 : vector<16x128xf32>
    %c18 = arith.constant 18 : index
    %c0_22 = arith.constant 0 : index
    %36 = vector.load %arg9[%c18, %c0_22] : memref<324x128xf32, #tpu.memory_space<vmem>>, vector<18x128xf32>
    %37 = vector.extract_strided_slice %36 {offsets = [0, 0], sizes = [16, 128], strides = [1, 1]} : vector<18x128xf32> to vector<16x128xf32>
    %38 = vector.extract_strided_slice %36 {offsets = [1, 0], sizes = [16, 128], strides = [1, 1]} : vector<18x128xf32> to vector<16x128xf32>
    %39 = vector.extract_strided_slice %36 {offsets = [2, 0], sizes = [16, 128], strides = [1, 1]} : vector<18x128xf32> to vector<16x128xf32>
    %40 = vector.broadcast %15 : vector<1x128xf32> to vector<16x128xf32>
    %41 = arith.mulf %37, %40 : vector<16x128xf32>
    %42 = arith.addf %35, %41 : vector<16x128xf32>
    %43 = vector.broadcast %16 : vector<1x128xf32> to vector<16x128xf32>
    %44 = arith.mulf %38, %43 : vector<16x128xf32>
    %45 = arith.addf %42, %44 : vector<16x128xf32>
    %46 = vector.broadcast %17 : vector<1x128xf32> to vector<16x128xf32>
    %47 = arith.mulf %39, %46 : vector<16x128xf32>
    %48 = arith.addf %45, %47 : vector<16x128xf32>
    %c36 = arith.constant 36 : index
    %c0_23 = arith.constant 0 : index
    %49 = vector.load %arg9[%c36, %c0_23] : memref<324x128xf32, #tpu.memory_space<vmem>>, vector<18x128xf32>
    %50 = vector.extract_strided_slice %49 {offsets = [0, 0], sizes = [16, 128], strides = [1, 1]} : vector<18x128xf32> to vector<16x128xf32>
    %51 = vector.extract_strided_slice %49 {offsets = [1, 0], sizes = [16, 128], strides = [1, 1]} : vector<18x128xf32> to vector<16x128xf32>
    %52 = vector.extract_strided_slice %49 {offsets = [2, 0], sizes = [16, 128], strides = [1, 1]} : vector<18x128xf32> to vector<16x128xf32>
    %53 = vector.broadcast %18 : vector<1x128xf32> to vector<16x128xf32>
    %54 = arith.mulf %50, %53 : vector<16x128xf32>
    %55 = arith.addf %48, %54 : vector<16x128xf32>
    %56 = vector.broadcast %19 : vector<1x128xf32> to vector<16x128xf32>
    %57 = arith.mulf %51, %56 : vector<16x128xf32>
    %58 = arith.addf %55, %57 : vector<16x128xf32>
    %59 = vector.broadcast %20 : vector<1x128xf32> to vector<16x128xf32>
    %60 = arith.mulf %52, %59 : vector<16x128xf32>
    %61 = arith.addf %58, %60 : vector<16x128xf32>
    %62 = vector.broadcast %21 : vector<1x128xf32> to vector<16x128xf32>
    %63 = arith.addf %61, %62 : vector<16x128xf32>
    %cst_24 = arith.constant 0.000000e+00 : f32
    %cst_25 = arith.constant 6.000000e+00 : f32
    %64 = vector.broadcast %cst_24 : f32 to vector<16x128xf32>
    %65 = arith.maximumf %64, %63 : vector<16x128xf32>
    %66 = vector.broadcast %cst_25 : f32 to vector<16x128xf32>
    %67 = arith.minimumf %66, %65 : vector<16x128xf32>
    %c0_26 = arith.constant 0 : index
    %c0_27 = arith.constant 0 : index
    %68 = vector.load %arg10[%c0_26, %c0_27] : memref<256x128xf32, #tpu.memory_space<vmem>>, vector<16x128xf32>
    tpu.vector_store %arg10[%c0_26, %c0_27], %67 {strides = array<i32>} : memref<256x128xf32, #tpu.memory_space<vmem>>, vector<16x128xf32>,
    %cst_28 = arith.constant 0.000000e+00 : f32
    %69 = vector.broadcast %cst_28 : f32 to vector<16x128xf32>
    %c18_29 = arith.constant 18 : index
    %c0_30 = arith.constant 0 : index
    %70 = vector.load %arg9[%c18_29, %c0_30] : memref<324x128xf32, #tpu.memory_space<vmem>>, vector<18x128xf32>
    %71 = vector.extract_strided_slice %70 {offsets = [0, 0], sizes = [16, 128], strides = [1, 1]} : vector<18x128xf32> to vector<16x128xf32>
    %72 = vector.extract_strided_slice %70 {offsets = [1, 0], sizes = [16, 128], strides = [1, 1]} : vector<18x128xf32> to vector<16x128xf32>
    %73 = vector.extract_strided_slice %70 {offsets = [2, 0], sizes = [16, 128], strides = [1, 1]} : vector<18x128xf32> to vector<16x128xf32>
    %74 = vector.broadcast %12 : vector<1x128xf32> to vector<16x128xf32>
    %75 = arith.mulf %71, %74 : vector<16x128xf32>
    %76 = arith.addf %69, %75 : vector<16x128xf32>
    %77 = vector.broadcast %13 : vector<1x128xf32> to vector<16x128xf32>
    %78 = arith.mulf %72, %77 : vector<16x128xf32>
    %79 = arith.addf %76, %78 : vector<16x128xf32>
    %80 = vector.broadcast %14 : vector<1x128xf32> to vector<16x128xf32>
    %81 = arith.mulf %73, %80 : vector<16x128xf32>
    %82 = arith.addf %79, %81 : vector<16x128xf32>
    %c36_31 = arith.constant 36 : index
    %c0_32 = arith.constant 0 : index
    %83 = vector.load %arg9[%c36_31, %c0_32] : memref<324x128xf32, #tpu.memory_space<vmem>>, vector<18x128xf32>
    %84 = vector.extract_strided_slice %83 {offsets = [0, 0], sizes = [16, 128], strides = [1, 1]} : vector<18x128xf32> to vector<16x128xf32>
    %85 = vector.extract_strided_slice %83 {offsets = [1, 0], sizes = [16, 128], strides = [1, 1]} : vector<18x128xf32> to vector<16x128xf32>
    %86 = vector.extract_strided_slice %83 {offsets = [2, 0], sizes = [16, 128], strides = [1, 1]} : vector<18x128xf32> to vector<16x128xf32>
    %87 = vector.broadcast %15 : vector<1x128xf32> to vector<16x128xf32>
    %88 = arith.mulf %84, %87 : vector<16x128xf32>
    %89 = arith.addf %82, %88 : vector<16x128xf32>
    %90 = vector.broadcast %16 : vector<1x128xf32> to vector<16x128xf32>
    %91 = arith.mulf %85, %90 : vector<16x128xf32>
    %92 = arith.addf %89, %91 : vector<16x128xf32>
    %93 = vector.broadcast %17 : vector<1x128xf32> to vector<16x128xf32>
    %94 = arith.mulf %86, %93 : vector<16x128xf32>
    %95 = arith.addf %92, %94 : vector<16x128xf32>
    %c54 = arith.constant 54 : index
    %c0_33 = arith.constant 0 : index
    %96 = vector.load %arg9[%c54, %c0_33] : memref<324x128xf32, #tpu.memory_space<vmem>>, vector<18x128xf32>
    %97 = vector.extract_strided_slice %96 {offsets = [0, 0], sizes = [16, 128], strides = [1, 1]} : vector<18x128xf32> to vector<16x128xf32>
    %98 = vector.extract_strided_slice %96 {offsets = [1, 0], sizes = [16, 128], strides = [1, 1]} : vector<18x128xf32> to vector<16x128xf32>
    %99 = vector.extract_strided_slice %96 {offsets = [2, 0], sizes = [16, 128], strides = [1, 1]} : vector<18x128xf32> to vector<16x128xf32>
    %100 = vector.broadcast %18 : vector<1x128xf32> to vector<16x128xf32>
    %101 = arith.mulf %97, %100 : vector<16x128xf32>
    %102 = arith.addf %95, %101 : vector<16x128xf32>
    %103 = vector.broadcast %19 : vector<1x128xf32> to vector<16x128xf32>
    %104 = arith.mulf %98, %103 : vector<16x128xf32>
    %105 = arith.addf %102, %104 : vector<16x128xf32>
    %106 = vector.broadcast %20 : vector<1x128xf32> to vector<16x128xf32>
    %107 = arith.mulf %99, %106 : vector<16x128xf32>
    %108 = arith.addf %105, %107 : vector<16x128xf32>
    %109 = vector.broadcast %21 : vector<1x128xf32> to vector<16x128xf32>
    %110 = arith.addf %108, %109 : vector<16x128xf32>
    %cst_34 = arith.constant 0.000000e+00 : f32
    %cst_35 = arith.constant 6.000000e+00 : f32
    %111 = vector.broadcast %cst_34 : f32 to vector<16x128xf32>
    %112 = arith.maximumf %111, %110 : vector<16x128xf32>
    %113 = vector.broadcast %cst_35 : f32 to vector<16x128xf32>
    %114 = arith.minimumf %113, %112 : vector<16x128xf32>
    %c16 = arith.constant 16 : index
    %c0_36 = arith.constant 0 : index
    %115 = vector.load %arg10[%c16, %c0_36] : memref<256x128xf32, #tpu.memory_space<vmem>>, vector<16x128xf32>
    tpu.vector_store %arg10[%c16, %c0_36], %114 {strides = array<i32>} : memref<256x128xf32, #tpu.memory_space<vmem>>, vector<16x128xf32>,
    %cst_37 = arith.constant 0.000000e+00 : f32
    %116 = vector.broadcast %cst_37 : f32 to vector<16x128xf32>
    %c36_38 = arith.constant 36 : index
    %c0_39 = arith.constant 0 : index
    %117 = vector.load %arg9[%c36_38, %c0_39] : memref<324x128xf32, #tpu.memory_space<vmem>>, vector<18x128xf32>
    %118 = vector.extract_strided_slice %117 {offsets = [0, 0], sizes = [16, 128], strides = [1, 1]} : vector<18x128xf32> to vector<16x128xf32>
    %119 = vector.extract_strided_slice %117 {offsets = [1, 0], sizes = [16, 128], strides = [1, 1]} : vector<18x128xf32> to vector<16x128xf32>
    %120 = vector.extract_strided_slice %117 {offsets = [2, 0], sizes = [16, 128], strides = [1, 1]} : vector<18x128xf32> to vector<16x128xf32>
    %121 = vector.broadcast %12 : vector<1x128xf32> to vector<16x128xf32>
    %122 = arith.mulf %118, %121 : vector<16x128xf32>
    %123 = arith.addf %116, %122 : vector<16x128xf32>
    %124 = vector.broadcast %13 : vector<1x128xf32> to vector<16x128xf32>
    %125 = arith.mulf %119, %124 : vector<16x128xf32>
    %126 = arith.addf %123, %125 : vector<16x128xf32>
    %127 = vector.broadcast %14 : vector<1x128xf32> to vector<16x128xf32>
    %128 = arith.mulf %120, %127 : vector<16x128xf32>
    %129 = arith.addf %126, %128 : vector<16x128xf32>
    %c54_40 = arith.constant 54 : index
    %c0_41 = arith.constant 0 : index
    %130 = vector.load %arg9[%c54_40, %c0_41] : memref<324x128xf32, #tpu.memory_space<vmem>>, vector<18x128xf32>
    %131 = vector.extract_strided_slice %130 {offsets = [0, 0], sizes = [16, 128], strides = [1, 1]} : vector<18x128xf32> to vector<16x128xf32>
    %132 = vector.extract_strided_slice %130 {offsets = [1, 0], sizes = [16, 128], strides = [1, 1]} : vector<18x128xf32> to vector<16x128xf32>
    %133 = vector.extract_strided_slice %130 {offsets = [2, 0], sizes = [16, 128], strides = [1, 1]} : vector<18x128xf32> to vector<16x128xf32>
    %134 = vector.broadcast %15 : vector<1x128xf32> to vector<16x128xf32>
    %135 = arith.mulf %131, %134 : vector<16x128xf32>
    %136 = arith.addf %129, %135 : vector<16x128xf32>
    %137 = vector.broadcast %16 : vector<1x128xf32> to vector<16x128xf32>
    %138 = arith.mulf %132, %137 : vector<16x128xf32>
    %139 = arith.addf %136, %138 : vector<16x128xf32>
    %140 = vector.broadcast %17 : vector<1x128xf32> to vector<16x128xf32>
    %141 = arith.mulf %133, %140 : vector<16x128xf32>
    %142 = arith.addf %139, %141 : vector<16x128xf32>
    %c72 = arith.constant 72 : index
    %c0_42 = arith.constant 0 : index
    %143 = vector.load %arg9[%c72, %c0_42] : memref<324x128xf32, #tpu.memory_space<vmem>>, vector<18x128xf32>
    %144 = vector.extract_strided_slice %143 {offsets = [0, 0], sizes = [16, 128], strides = [1, 1]} : vector<18x128xf32> to vector<16x128xf32>
    %145 = vector.extract_strided_slice %143 {offsets = [1, 0], sizes = [16, 128], strides = [1, 1]} : vector<18x128xf32> to vector<16x128xf32>
    %146 = vector.extract_strided_slice %143 {offsets = [2, 0], sizes = [16, 128], strides = [1, 1]} : vector<18x128xf32> to vector<16x128xf32>
    %147 = vector.broadcast %18 : vector<1x128xf32> to vector<16x128xf32>
    %148 = arith.mulf %144, %147 : vector<16x128xf32>
    %149 = arith.addf %142, %148 : vector<16x128xf32>
    %150 = vector.broadcast %19 : vector<1x128xf32> to vector<16x128xf32>
    %151 = arith.mulf %145, %150 : vector<16x128xf32>
    %152 = arith.addf %149, %151 : vector<16x128xf32>
    %153 = vector.broadcast %20 : vector<1x128xf32> to vector<16x128xf32>
    %154 = arith.mulf %146, %153 : vector<16x128xf32>
    %155 = arith.addf %152, %154 : vector<16x128xf32>
    %156 = vector.broadcast %21 : vector<1x128xf32> to vector<16x128xf32>
    %157 = arith.addf %155, %156 : vector<16x128xf32>
    %cst_43 = arith.constant 0.000000e+00 : f32
    %cst_44 = arith.constant 6.000000e+00 : f32
    %158 = vector.broadcast %cst_43 : f32 to vector<16x128xf32>
    %159 = arith.maximumf %158, %157 : vector<16x128xf32>
    %160 = vector.broadcast %cst_44 : f32 to vector<16x128xf32>
    %161 = arith.minimumf %160, %159 : vector<16x128xf32>
    %c32 = arith.constant 32 : index
    %c0_45 = arith.constant 0 : index
    %162 = vector.load %arg10[%c32, %c0_45] : memref<256x128xf32, #tpu.memory_space<vmem>>, vector<16x128xf32>
    tpu.vector_store %arg10[%c32, %c0_45], %161 {strides = array<i32>} : memref<256x128xf32, #tpu.memory_space<vmem>>, vector<16x128xf32>,
    %cst_46 = arith.constant 0.000000e+00 : f32
    %163 = vector.broadcast %cst_46 : f32 to vector<16x128xf32>
    %c54_47 = arith.constant 54 : index
    %c0_48 = arith.constant 0 : index
    %164 = vector.load %arg9[%c54_47, %c0_48] : memref<324x128xf32, #tpu.memory_space<vmem>>, vector<18x128xf32>
    %165 = vector.extract_strided_slice %164 {offsets = [0, 0], sizes = [16, 128], strides = [1, 1]} : vector<18x128xf32> to vector<16x128xf32>
    %166 = vector.extract_strided_slice %164 {offsets = [1, 0], sizes = [16, 128], strides = [1, 1]} : vector<18x128xf32> to vector<16x128xf32>
    %167 = vector.extract_strided_slice %164 {offsets = [2, 0], sizes = [16, 128], strides = [1, 1]} : vector<18x128xf32> to vector<16x128xf32>
    %168 = vector.broadcast %12 : vector<1x128xf32> to vector<16x128xf32>
    %169 = arith.mulf %165, %168 : vector<16x128xf32>
    %170 = arith.addf %163, %169 : vector<16x128xf32>
    %171 = vector.broadcast %13 : vector<1x128xf32> to vector<16x128xf32>
    %172 = arith.mulf %166, %171 : vector<16x128xf32>
    %173 = arith.addf %170, %172 : vector<16x128xf32>
    %174 = vector.broadcast %14 : vector<1x128xf32> to vector<16x128xf32>
    %175 = arith.mulf %167, %174 : vector<16x128xf32>
    %176 = arith.addf %173, %175 : vector<16x128xf32>
    %c72_49 = arith.constant 72 : index
    %c0_50 = arith.constant 0 : index
    %177 = vector.load %arg9[%c72_49, %c0_50] : memref<324x128xf32, #tpu.memory_space<vmem>>, vector<18x128xf32>
    %178 = vector.extract_strided_slice %177 {offsets = [0, 0], sizes = [16, 128], strides = [1, 1]} : vector<18x128xf32> to vector<16x128xf32>
    %179 = vector.extract_strided_slice %177 {offsets = [1, 0], sizes = [16, 128], strides = [1, 1]} : vector<18x128xf32> to vector<16x128xf32>
    %180 = vector.extract_strided_slice %177 {offsets = [2, 0], sizes = [16, 128], strides = [1, 1]} : vector<18x128xf32> to vector<16x128xf32>
    %181 = vector.broadcast %15 : vector<1x128xf32> to vector<16x128xf32>
    %182 = arith.mulf %178, %181 : vector<16x128xf32>
    %183 = arith.addf %176, %182 : vector<16x128xf32>
    %184 = vector.broadcast %16 : vector<1x128xf32> to vector<16x128xf32>
    %185 = arith.mulf %179, %184 : vector<16x128xf32>
    %186 = arith.addf %183, %185 : vector<16x128xf32>
    %187 = vector.broadcast %17 : vector<1x128xf32> to vector<16x128xf32>
    %188 = arith.mulf %180, %187 : vector<16x128xf32>
    %189 = arith.addf %186, %188 : vector<16x128xf32>
    %c90 = arith.constant 90 : index
    %c0_51 = arith.constant 0 : index
    %190 = vector.load %arg9[%c90, %c0_51] : memref<324x128xf32, #tpu.memory_space<vmem>>, vector<18x128xf32>
    %191 = vector.extract_strided_slice %190 {offsets = [0, 0], sizes = [16, 128], strides = [1, 1]} : vector<18x128xf32> to vector<16x128xf32>
    %192 = vector.extract_strided_slice %190 {offsets = [1, 0], sizes = [16, 128], strides = [1, 1]} : vector<18x128xf32> to vector<16x128xf32>
    %193 = vector.extract_strided_slice %190 {offsets = [2, 0], sizes = [16, 128], strides = [1, 1]} : vector<18x128xf32> to vector<16x128xf32>
    %194 = vector.broadcast %18 : vector<1x128xf32> to vector<16x128xf32>
    %195 = arith.mulf %191, %194 : vector<16x128xf32>
    %196 = arith.addf %189, %195 : vector<16x128xf32>
    %197 = vector.broadcast %19 : vector<1x128xf32> to vector<16x128xf32>
    %198 = arith.mulf %192, %197 : vector<16x128xf32>
    %199 = arith.addf %196, %198 : vector<16x128xf32>
    %200 = vector.broadcast %20 : vector<1x128xf32> to vector<16x128xf32>
    %201 = arith.mulf %193, %200 : vector<16x128xf32>
    %202 = arith.addf %199, %201 : vector<16x128xf32>
    %203 = vector.broadcast %21 : vector<1x128xf32> to vector<16x128xf32>
    %204 = arith.addf %202, %203 : vector<16x128xf32>
    %cst_52 = arith.constant 0.000000e+00 : f32
    %cst_53 = arith.constant 6.000000e+00 : f32
    %205 = vector.broadcast %cst_52 : f32 to vector<16x128xf32>
    %206 = arith.maximumf %205, %204 : vector<16x128xf32>
    %207 = vector.broadcast %cst_53 : f32 to vector<16x128xf32>
    %208 = arith.minimumf %207, %206 : vector<16x128xf32>
    %c48 = arith.constant 48 : index
    %c0_54 = arith.constant 0 : index
    %209 = vector.load %arg10[%c48, %c0_54] : memref<256x128xf32, #tpu.memory_space<vmem>>, vector<16x128xf32>
    tpu.vector_store %arg10[%c48, %c0_54], %208 {strides = array<i32>} : memref<256x128xf32, #tpu.memory_space<vmem>>, vector<16x128xf32>,
    %cst_55 = arith.constant 0.000000e+00 : f32
    %210 = vector.broadcast %cst_55 : f32 to vector<16x128xf32>
    %c72_56 = arith.constant 72 : index
    %c0_57 = arith.constant 0 : index
    %211 = vector.load %arg9[%c72_56, %c0_57] : memref<324x128xf32, #tpu.memory_space<vmem>>, vector<18x128xf32>
    %212 = vector.extract_strided_slice %211 {offsets = [0, 0], sizes = [16, 128], strides = [1, 1]} : vector<18x128xf32> to vector<16x128xf32>
    %213 = vector.extract_strided_slice %211 {offsets = [1, 0], sizes = [16, 128], strides = [1, 1]} : vector<18x128xf32> to vector<16x128xf32>
    %214 = vector.extract_strided_slice %211 {offsets = [2, 0], sizes = [16, 128], strides = [1, 1]} : vector<18x128xf32> to vector<16x128xf32>
    %215 = vector.broadcast %12 : vector<1x128xf32> to vector<16x128xf32>
    %216 = arith.mulf %212, %215 : vector<16x128xf32>
    %217 = arith.addf %210, %216 : vector<16x128xf32>
    %218 = vector.broadcast %13 : vector<1x128xf32> to vector<16x128xf32>
    %219 = arith.mulf %213, %218 : vector<16x128xf32>
    %220 = arith.addf %217, %219 : vector<16x128xf32>
    %221 = vector.broadcast %14 : vector<1x128xf32> to vector<16x128xf32>
    %222 = arith.mulf %214, %221 : vector<16x128xf32>
    %223 = arith.addf %220, %222 : vector<16x128xf32>
    %c90_58 = arith.constant 90 : index
    %c0_59 = arith.constant 0 : index
    %224 = vector.load %arg9[%c90_58, %c0_59] : memref<324x128xf32, #tpu.memory_space<vmem>>, vector<18x128xf32>
    %225 = vector.extract_strided_slice %224 {offsets = [0, 0], sizes = [16, 128], strides = [1, 1]} : vector<18x128xf32> to vector<16x128xf32>
    %226 = vector.extract_strided_slice %224 {offsets = [1, 0], sizes = [16, 128], strides = [1, 1]} : vector<18x128xf32> to vector<16x128xf32>
    %227 = vector.extract_strided_slice %224 {offsets = [2, 0], sizes = [16, 128], strides = [1, 1]} : vector<18x128xf32> to vector<16x128xf32>
    %228 = vector.broadcast %15 : vector<1x128xf32> to vector<16x128xf32>
    %229 = arith.mulf %225, %228 : vector<16x128xf32>
    %230 = arith.addf %223, %229 : vector<16x128xf32>
    %231 = vector.broadcast %16 : vector<1x128xf32> to vector<16x128xf32>
    %232 = arith.mulf %226, %231 : vector<16x128xf32>
    %233 = arith.addf %230, %232 : vector<16x128xf32>
    %234 = vector.broadcast %17 : vector<1x128xf32> to vector<16x128xf32>
    %235 = arith.mulf %227, %234 : vector<16x128xf32>
    %236 = arith.addf %233, %235 : vector<16x128xf32>
    %c108 = arith.constant 108 : index
    %c0_60 = arith.constant 0 : index
    %237 = vector.load %arg9[%c108, %c0_60] : memref<324x128xf32, #tpu.memory_space<vmem>>, vector<18x128xf32>
    %238 = vector.extract_strided_slice %237 {offsets = [0, 0], sizes = [16, 128], strides = [1, 1]} : vector<18x128xf32> to vector<16x128xf32>
    %239 = vector.extract_strided_slice %237 {offsets = [1, 0], sizes = [16, 128], strides = [1, 1]} : vector<18x128xf32> to vector<16x128xf32>
    %240 = vector.extract_strided_slice %237 {offsets = [2, 0], sizes = [16, 128], strides = [1, 1]} : vector<18x128xf32> to vector<16x128xf32>
    %241 = vector.broadcast %18 : vector<1x128xf32> to vector<16x128xf32>
    %242 = arith.mulf %238, %241 : vector<16x128xf32>
    %243 = arith.addf %236, %242 : vector<16x128xf32>
    %244 = vector.broadcast %19 : vector<1x128xf32> to vector<16x128xf32>
    %245 = arith.mulf %239, %244 : vector<16x128xf32>
    %246 = arith.addf %243, %245 : vector<16x128xf32>
    %247 = vector.broadcast %20 : vector<1x128xf32> to vector<16x128xf32>
    %248 = arith.mulf %240, %247 : vector<16x128xf32>
    %249 = arith.addf %246, %248 : vector<16x128xf32>
    %250 = vector.broadcast %21 : vector<1x128xf32> to vector<16x128xf32>
    %251 = arith.addf %249, %250 : vector<16x128xf32>
    %cst_61 = arith.constant 0.000000e+00 : f32
    %cst_62 = arith.constant 6.000000e+00 : f32
    %252 = vector.broadcast %cst_61 : f32 to vector<16x128xf32>
    %253 = arith.maximumf %252, %251 : vector<16x128xf32>
    %254 = vector.broadcast %cst_62 : f32 to vector<16x128xf32>
    %255 = arith.minimumf %254, %253 : vector<16x128xf32>
    %c64 = arith.constant 64 : index
    %c0_63 = arith.constant 0 : index
    %256 = vector.load %arg10[%c64, %c0_63] : memref<256x128xf32, #tpu.memory_space<vmem>>, vector<16x128xf32>
    tpu.vector_store %arg10[%c64, %c0_63], %255 {strides = array<i32>} : memref<256x128xf32, #tpu.memory_space<vmem>>, vector<16x128xf32>,
    %cst_64 = arith.constant 0.000000e+00 : f32
    %257 = vector.broadcast %cst_64 : f32 to vector<16x128xf32>
    %c90_65 = arith.constant 90 : index
    %c0_66 = arith.constant 0 : index
    %258 = vector.load %arg9[%c90_65, %c0_66] : memref<324x128xf32, #tpu.memory_space<vmem>>, vector<18x128xf32>
    %259 = vector.extract_strided_slice %258 {offsets = [0, 0], sizes = [16, 128], strides = [1, 1]} : vector<18x128xf32> to vector<16x128xf32>
    %260 = vector.extract_strided_slice %258 {offsets = [1, 0], sizes = [16, 128], strides = [1, 1]} : vector<18x128xf32> to vector<16x128xf32>
    %261 = vector.extract_strided_slice %258 {offsets = [2, 0], sizes = [16, 128], strides = [1, 1]} : vector<18x128xf32> to vector<16x128xf32>
    %262 = vector.broadcast %12 : vector<1x128xf32> to vector<16x128xf32>
    %263 = arith.mulf %259, %262 : vector<16x128xf32>
    %264 = arith.addf %257, %263 : vector<16x128xf32>
    %265 = vector.broadcast %13 : vector<1x128xf32> to vector<16x128xf32>
    %266 = arith.mulf %260, %265 : vector<16x128xf32>
    %267 = arith.addf %264, %266 : vector<16x128xf32>
    %268 = vector.broadcast %14 : vector<1x128xf32> to vector<16x128xf32>
    %269 = arith.mulf %261, %268 : vector<16x128xf32>
    %270 = arith.addf %267, %269 : vector<16x128xf32>
    %c108_67 = arith.constant 108 : index
    %c0_68 = arith.constant 0 : index
    %271 = vector.load %arg9[%c108_67, %c0_68] : memref<324x128xf32, #tpu.memory_space<vmem>>, vector<18x128xf32>
    %272 = vector.extract_strided_slice %271 {offsets = [0, 0], sizes = [16, 128], strides = [1, 1]} : vector<18x128xf32> to vector<16x128xf32>
    %273 = vector.extract_strided_slice %271 {offsets = [1, 0], sizes = [16, 128], strides = [1, 1]} : vector<18x128xf32> to vector<16x128xf32>
    %274 = vector.extract_strided_slice %271 {offsets = [2, 0], sizes = [16, 128], strides = [1, 1]} : vector<18x128xf32> to vector<16x128xf32>
    %275 = vector.broadcast %15 : vector<1x128xf32> to vector<16x128xf32>
    %276 = arith.mulf %272, %275 : vector<16x128xf32>
    %277 = arith.addf %270, %276 : vector<16x128xf32>
    %278 = vector.broadcast %16 : vector<1x128xf32> to vector<16x128xf32>
    %279 = arith.mulf %273, %278 : vector<16x128xf32>
    %280 = arith.addf %277, %279 : vector<16x128xf32>
    %281 = vector.broadcast %17 : vector<1x128xf32> to vector<16x128xf32>
    %282 = arith.mulf %274, %281 : vector<16x128xf32>
    %283 = arith.addf %280, %282 : vector<16x128xf32>
    %c126 = arith.constant 126 : index
    %c0_69 = arith.constant 0 : index
    %284 = vector.load %arg9[%c126, %c0_69] : memref<324x128xf32, #tpu.memory_space<vmem>>, vector<18x128xf32>
    %285 = vector.extract_strided_slice %284 {offsets = [0, 0], sizes = [16, 128], strides = [1, 1]} : vector<18x128xf32> to vector<16x128xf32>
    %286 = vector.extract_strided_slice %284 {offsets = [1, 0], sizes = [16, 128], strides = [1, 1]} : vector<18x128xf32> to vector<16x128xf32>
    %287 = vector.extract_strided_slice %284 {offsets = [2, 0], sizes = [16, 128], strides = [1, 1]} : vector<18x128xf32> to vector<16x128xf32>
    %288 = vector.broadcast %18 : vector<1x128xf32> to vector<16x128xf32>
    %289 = arith.mulf %285, %288 : vector<16x128xf32>
    %290 = arith.addf %283, %289 : vector<16x128xf32>
    %291 = vector.broadcast %19 : vector<1x128xf32> to vector<16x128xf32>
    %292 = arith.mulf %286, %291 : vector<16x128xf32>
    %293 = arith.addf %290, %292 : vector<16x128xf32>
    %294 = vector.broadcast %20 : vector<1x128xf32> to vector<16x128xf32>
    %295 = arith.mulf %287, %294 : vector<16x128xf32>
    %296 = arith.addf %293, %295 : vector<16x128xf32>
    %297 = vector.broadcast %21 : vector<1x128xf32> to vector<16x128xf32>
    %298 = arith.addf %296, %297 : vector<16x128xf32>
    %cst_70 = arith.constant 0.000000e+00 : f32
    %cst_71 = arith.constant 6.000000e+00 : f32
    %299 = vector.broadcast %cst_70 : f32 to vector<16x128xf32>
    %300 = arith.maximumf %299, %298 : vector<16x128xf32>
    %301 = vector.broadcast %cst_71 : f32 to vector<16x128xf32>
    %302 = arith.minimumf %301, %300 : vector<16x128xf32>
    %c80 = arith.constant 80 : index
    %c0_72 = arith.constant 0 : index
    %303 = vector.load %arg10[%c80, %c0_72] : memref<256x128xf32, #tpu.memory_space<vmem>>, vector<16x128xf32>
    tpu.vector_store %arg10[%c80, %c0_72], %302 {strides = array<i32>} : memref<256x128xf32, #tpu.memory_space<vmem>>, vector<16x128xf32>,
    %cst_73 = arith.constant 0.000000e+00 : f32
    %304 = vector.broadcast %cst_73 : f32 to vector<16x128xf32>
    %c108_74 = arith.constant 108 : index
    %c0_75 = arith.constant 0 : index
    %305 = vector.load %arg9[%c108_74, %c0_75] : memref<324x128xf32, #tpu.memory_space<vmem>>, vector<18x128xf32>
    %306 = vector.extract_strided_slice %305 {offsets = [0, 0], sizes = [16, 128], strides = [1, 1]} : vector<18x128xf32> to vector<16x128xf32>
    %307 = vector.extract_strided_slice %305 {offsets = [1, 0], sizes = [16, 128], strides = [1, 1]} : vector<18x128xf32> to vector<16x128xf32>
    %308 = vector.extract_strided_slice %305 {offsets = [2, 0], sizes = [16, 128], strides = [1, 1]} : vector<18x128xf32> to vector<16x128xf32>
    %309 = vector.broadcast %12 : vector<1x128xf32> to vector<16x128xf32>
    %310 = arith.mulf %306, %309 : vector<16x128xf32>
    %311 = arith.addf %304, %310 : vector<16x128xf32>
    %312 = vector.broadcast %13 : vector<1x128xf32> to vector<16x128xf32>
    %313 = arith.mulf %307, %312 : vector<16x128xf32>
    %314 = arith.addf %311, %313 : vector<16x128xf32>
    %315 = vector.broadcast %14 : vector<1x128xf32> to vector<16x128xf32>
    %316 = arith.mulf %308, %315 : vector<16x128xf32>
    %317 = arith.addf %314, %316 : vector<16x128xf32>
    %c126_76 = arith.constant 126 : index
    %c0_77 = arith.constant 0 : index
    %318 = vector.load %arg9[%c126_76, %c0_77] : memref<324x128xf32, #tpu.memory_space<vmem>>, vector<18x128xf32>
    %319 = vector.extract_strided_slice %318 {offsets = [0, 0], sizes = [16, 128], strides = [1, 1]} : vector<18x128xf32> to vector<16x128xf32>
    %320 = vector.extract_strided_slice %318 {offsets = [1, 0], sizes = [16, 128], strides = [1, 1]} : vector<18x128xf32> to vector<16x128xf32>
    %321 = vector.extract_strided_slice %318 {offsets = [2, 0], sizes = [16, 128], strides = [1, 1]} : vector<18x128xf32> to vector<16x128xf32>
    %322 = vector.broadcast %15 : vector<1x128xf32> to vector<16x128xf32>
    %323 = arith.mulf %319, %322 : vector<16x128xf32>
    %324 = arith.addf %317, %323 : vector<16x128xf32>
    %325 = vector.broadcast %16 : vector<1x128xf32> to vector<16x128xf32>
    %326 = arith.mulf %320, %325 : vector<16x128xf32>
    %327 = arith.addf %324, %326 : vector<16x128xf32>
    %328 = vector.broadcast %17 : vector<1x128xf32> to vector<16x128xf32>
    %329 = arith.mulf %321, %328 : vector<16x128xf32>
    %330 = arith.addf %327, %329 : vector<16x128xf32>
    %c144 = arith.constant 144 : index
    %c0_78 = arith.constant 0 : index
    %331 = vector.load %arg9[%c144, %c0_78] : memref<324x128xf32, #tpu.memory_space<vmem>>, vector<18x128xf32>
    %332 = vector.extract_strided_slice %331 {offsets = [0, 0], sizes = [16, 128], strides = [1, 1]} : vector<18x128xf32> to vector<16x128xf32>
    %333 = vector.extract_strided_slice %331 {offsets = [1, 0], sizes = [16, 128], strides = [1, 1]} : vector<18x128xf32> to vector<16x128xf32>
    %334 = vector.extract_strided_slice %331 {offsets = [2, 0], sizes = [16, 128], strides = [1, 1]} : vector<18x128xf32> to vector<16x128xf32>
    %335 = vector.broadcast %18 : vector<1x128xf32> to vector<16x128xf32>
    %336 = arith.mulf %332, %335 : vector<16x128xf32>
    %337 = arith.addf %330, %336 : vector<16x128xf32>
    %338 = vector.broadcast %19 : vector<1x128xf32> to vector<16x128xf32>
    %339 = arith.mulf %333, %338 : vector<16x128xf32>
    %340 = arith.addf %337, %339 : vector<16x128xf32>
    %341 = vector.broadcast %20 : vector<1x128xf32> to vector<16x128xf32>
    %342 = arith.mulf %334, %341 : vector<16x128xf32>
    %343 = arith.addf %340, %342 : vector<16x128xf32>
    %344 = vector.broadcast %21 : vector<1x128xf32> to vector<16x128xf32>
    %345 = arith.addf %343, %344 : vector<16x128xf32>
    %cst_79 = arith.constant 0.000000e+00 : f32
    %cst_80 = arith.constant 6.000000e+00 : f32
    %346 = vector.broadcast %cst_79 : f32 to vector<16x128xf32>
    %347 = arith.maximumf %346, %345 : vector<16x128xf32>
    %348 = vector.broadcast %cst_80 : f32 to vector<16x128xf32>
    %349 = arith.minimumf %348, %347 : vector<16x128xf32>
    %c96 = arith.constant 96 : index
    %c0_81 = arith.constant 0 : index
    %350 = vector.load %arg10[%c96, %c0_81] : memref<256x128xf32, #tpu.memory_space<vmem>>, vector<16x128xf32>
    tpu.vector_store %arg10[%c96, %c0_81], %349 {strides = array<i32>} : memref<256x128xf32, #tpu.memory_space<vmem>>, vector<16x128xf32>,
    %cst_82 = arith.constant 0.000000e+00 : f32
    %351 = vector.broadcast %cst_82 : f32 to vector<16x128xf32>
    %c126_83 = arith.constant 126 : index
    %c0_84 = arith.constant 0 : index
    %352 = vector.load %arg9[%c126_83, %c0_84] : memref<324x128xf32, #tpu.memory_space<vmem>>, vector<18x128xf32>
    %353 = vector.extract_strided_slice %352 {offsets = [0, 0], sizes = [16, 128], strides = [1, 1]} : vector<18x128xf32> to vector<16x128xf32>
    %354 = vector.extract_strided_slice %352 {offsets = [1, 0], sizes = [16, 128], strides = [1, 1]} : vector<18x128xf32> to vector<16x128xf32>
    %355 = vector.extract_strided_slice %352 {offsets = [2, 0], sizes = [16, 128], strides = [1, 1]} : vector<18x128xf32> to vector<16x128xf32>
    %356 = vector.broadcast %12 : vector<1x128xf32> to vector<16x128xf32>
    %357 = arith.mulf %353, %356 : vector<16x128xf32>
    %358 = arith.addf %351, %357 : vector<16x128xf32>
    %359 = vector.broadcast %13 : vector<1x128xf32> to vector<16x128xf32>
    %360 = arith.mulf %354, %359 : vector<16x128xf32>
    %361 = arith.addf %358, %360 : vector<16x128xf32>
    %362 = vector.broadcast %14 : vector<1x128xf32> to vector<16x128xf32>
    %363 = arith.mulf %355, %362 : vector<16x128xf32>
    %364 = arith.addf %361, %363 : vector<16x128xf32>
    %c144_85 = arith.constant 144 : index
    %c0_86 = arith.constant 0 : index
    %365 = vector.load %arg9[%c144_85, %c0_86] : memref<324x128xf32, #tpu.memory_space<vmem>>, vector<18x128xf32>
    %366 = vector.extract_strided_slice %365 {offsets = [0, 0], sizes = [16, 128], strides = [1, 1]} : vector<18x128xf32> to vector<16x128xf32>
    %367 = vector.extract_strided_slice %365 {offsets = [1, 0], sizes = [16, 128], strides = [1, 1]} : vector<18x128xf32> to vector<16x128xf32>
    %368 = vector.extract_strided_slice %365 {offsets = [2, 0], sizes = [16, 128], strides = [1, 1]} : vector<18x128xf32> to vector<16x128xf32>
    %369 = vector.broadcast %15 : vector<1x128xf32> to vector<16x128xf32>
    %370 = arith.mulf %366, %369 : vector<16x128xf32>
    %371 = arith.addf %364, %370 : vector<16x128xf32>
    %372 = vector.broadcast %16 : vector<1x128xf32> to vector<16x128xf32>
    %373 = arith.mulf %367, %372 : vector<16x128xf32>
    %374 = arith.addf %371, %373 : vector<16x128xf32>
    %375 = vector.broadcast %17 : vector<1x128xf32> to vector<16x128xf32>
    %376 = arith.mulf %368, %375 : vector<16x128xf32>
    %377 = arith.addf %374, %376 : vector<16x128xf32>
    %c162 = arith.constant 162 : index
    %c0_87 = arith.constant 0 : index
    %378 = vector.load %arg9[%c162, %c0_87] : memref<324x128xf32, #tpu.memory_space<vmem>>, vector<18x128xf32>
    %379 = vector.extract_strided_slice %378 {offsets = [0, 0], sizes = [16, 128], strides = [1, 1]} : vector<18x128xf32> to vector<16x128xf32>
    %380 = vector.extract_strided_slice %378 {offsets = [1, 0], sizes = [16, 128], strides = [1, 1]} : vector<18x128xf32> to vector<16x128xf32>
    %381 = vector.extract_strided_slice %378 {offsets = [2, 0], sizes = [16, 128], strides = [1, 1]} : vector<18x128xf32> to vector<16x128xf32>
    %382 = vector.broadcast %18 : vector<1x128xf32> to vector<16x128xf32>
    %383 = arith.mulf %379, %382 : vector<16x128xf32>
    %384 = arith.addf %377, %383 : vector<16x128xf32>
    %385 = vector.broadcast %19 : vector<1x128xf32> to vector<16x128xf32>
    %386 = arith.mulf %380, %385 : vector<16x128xf32>
    %387 = arith.addf %384, %386 : vector<16x128xf32>
    %388 = vector.broadcast %20 : vector<1x128xf32> to vector<16x128xf32>
    %389 = arith.mulf %381, %388 : vector<16x128xf32>
    %390 = arith.addf %387, %389 : vector<16x128xf32>
    %391 = vector.broadcast %21 : vector<1x128xf32> to vector<16x128xf32>
    %392 = arith.addf %390, %391 : vector<16x128xf32>
    %cst_88 = arith.constant 0.000000e+00 : f32
    %cst_89 = arith.constant 6.000000e+00 : f32
    %393 = vector.broadcast %cst_88 : f32 to vector<16x128xf32>
    %394 = arith.maximumf %393, %392 : vector<16x128xf32>
    %395 = vector.broadcast %cst_89 : f32 to vector<16x128xf32>
    %396 = arith.minimumf %395, %394 : vector<16x128xf32>
    %c112 = arith.constant 112 : index
    %c0_90 = arith.constant 0 : index
    %397 = vector.load %arg10[%c112, %c0_90] : memref<256x128xf32, #tpu.memory_space<vmem>>, vector<16x128xf32>
    tpu.vector_store %arg10[%c112, %c0_90], %396 {strides = array<i32>} : memref<256x128xf32, #tpu.memory_space<vmem>>, vector<16x128xf32>,
    %cst_91 = arith.constant 0.000000e+00 : f32
    %398 = vector.broadcast %cst_91 : f32 to vector<16x128xf32>
    %c144_92 = arith.constant 144 : index
    %c0_93 = arith.constant 0 : index
    %399 = vector.load %arg9[%c144_92, %c0_93] : memref<324x128xf32, #tpu.memory_space<vmem>>, vector<18x128xf32>
    %400 = vector.extract_strided_slice %399 {offsets = [0, 0], sizes = [16, 128], strides = [1, 1]} : vector<18x128xf32> to vector<16x128xf32>
    %401 = vector.extract_strided_slice %399 {offsets = [1, 0], sizes = [16, 128], strides = [1, 1]} : vector<18x128xf32> to vector<16x128xf32>
    %402 = vector.extract_strided_slice %399 {offsets = [2, 0], sizes = [16, 128], strides = [1, 1]} : vector<18x128xf32> to vector<16x128xf32>
    %403 = vector.broadcast %12 : vector<1x128xf32> to vector<16x128xf32>
    %404 = arith.mulf %400, %403 : vector<16x128xf32>
    %405 = arith.addf %398, %404 : vector<16x128xf32>
    %406 = vector.broadcast %13 : vector<1x128xf32> to vector<16x128xf32>
    %407 = arith.mulf %401, %406 : vector<16x128xf32>
    %408 = arith.addf %405, %407 : vector<16x128xf32>
    %409 = vector.broadcast %14 : vector<1x128xf32> to vector<16x128xf32>
    %410 = arith.mulf %402, %409 : vector<16x128xf32>
    %411 = arith.addf %408, %410 : vector<16x128xf32>
    %c162_94 = arith.constant 162 : index
    %c0_95 = arith.constant 0 : index
    %412 = vector.load %arg9[%c162_94, %c0_95] : memref<324x128xf32, #tpu.memory_space<vmem>>, vector<18x128xf32>
    %413 = vector.extract_strided_slice %412 {offsets = [0, 0], sizes = [16, 128], strides = [1, 1]} : vector<18x128xf32> to vector<16x128xf32>
    %414 = vector.extract_strided_slice %412 {offsets = [1, 0], sizes = [16, 128], strides = [1, 1]} : vector<18x128xf32> to vector<16x128xf32>
    %415 = vector.extract_strided_slice %412 {offsets = [2, 0], sizes = [16, 128], strides = [1, 1]} : vector<18x128xf32> to vector<16x128xf32>
    %416 = vector.broadcast %15 : vector<1x128xf32> to vector<16x128xf32>
    %417 = arith.mulf %413, %416 : vector<16x128xf32>
    %418 = arith.addf %411, %417 : vector<16x128xf32>
    %419 = vector.broadcast %16 : vector<1x128xf32> to vector<16x128xf32>
    %420 = arith.mulf %414, %419 : vector<16x128xf32>
    %421 = arith.addf %418, %420 : vector<16x128xf32>
    %422 = vector.broadcast %17 : vector<1x128xf32> to vector<16x128xf32>
    %423 = arith.mulf %415, %422 : vector<16x128xf32>
    %424 = arith.addf %421, %423 : vector<16x128xf32>
    %c180 = arith.constant 180 : index
    %c0_96 = arith.constant 0 : index
    %425 = vector.load %arg9[%c180, %c0_96] : memref<324x128xf32, #tpu.memory_space<vmem>>, vector<18x128xf32>
    %426 = vector.extract_strided_slice %425 {offsets = [0, 0], sizes = [16, 128], strides = [1, 1]} : vector<18x128xf32> to vector<16x128xf32>
    %427 = vector.extract_strided_slice %425 {offsets = [1, 0], sizes = [16, 128], strides = [1, 1]} : vector<18x128xf32> to vector<16x128xf32>
    %428 = vector.extract_strided_slice %425 {offsets = [2, 0], sizes = [16, 128], strides = [1, 1]} : vector<18x128xf32> to vector<16x128xf32>
    %429 = vector.broadcast %18 : vector<1x128xf32> to vector<16x128xf32>
    %430 = arith.mulf %426, %429 : vector<16x128xf32>
    %431 = arith.addf %424, %430 : vector<16x128xf32>
    %432 = vector.broadcast %19 : vector<1x128xf32> to vector<16x128xf32>
    %433 = arith.mulf %427, %432 : vector<16x128xf32>
    %434 = arith.addf %431, %433 : vector<16x128xf32>
    %435 = vector.broadcast %20 : vector<1x128xf32> to vector<16x128xf32>
    %436 = arith.mulf %428, %435 : vector<16x128xf32>
    %437 = arith.addf %434, %436 : vector<16x128xf32>
    %438 = vector.broadcast %21 : vector<1x128xf32> to vector<16x128xf32>
    %439 = arith.addf %437, %438 : vector<16x128xf32>
    %cst_97 = arith.constant 0.000000e+00 : f32
    %cst_98 = arith.constant 6.000000e+00 : f32
    %440 = vector.broadcast %cst_97 : f32 to vector<16x128xf32>
    %441 = arith.maximumf %440, %439 : vector<16x128xf32>
    %442 = vector.broadcast %cst_98 : f32 to vector<16x128xf32>
    %443 = arith.minimumf %442, %441 : vector<16x128xf32>
    %c128 = arith.constant 128 : index
    %c0_99 = arith.constant 0 : index
    %444 = vector.load %arg10[%c128, %c0_99] : memref<256x128xf32, #tpu.memory_space<vmem>>, vector<16x128xf32>
    tpu.vector_store %arg10[%c128, %c0_99], %443 {strides = array<i32>} : memref<256x128xf32, #tpu.memory_space<vmem>>, vector<16x128xf32>,
    %cst_100 = arith.constant 0.000000e+00 : f32
    %445 = vector.broadcast %cst_100 : f32 to vector<16x128xf32>
    %c162_101 = arith.constant 162 : index
    %c0_102 = arith.constant 0 : index
    %446 = vector.load %arg9[%c162_101, %c0_102] : memref<324x128xf32, #tpu.memory_space<vmem>>, vector<18x128xf32>
    %447 = vector.extract_strided_slice %446 {offsets = [0, 0], sizes = [16, 128], strides = [1, 1]} : vector<18x128xf32> to vector<16x128xf32>
    %448 = vector.extract_strided_slice %446 {offsets = [1, 0], sizes = [16, 128], strides = [1, 1]} : vector<18x128xf32> to vector<16x128xf32>
    %449 = vector.extract_strided_slice %446 {offsets = [2, 0], sizes = [16, 128], strides = [1, 1]} : vector<18x128xf32> to vector<16x128xf32>
    %450 = vector.broadcast %12 : vector<1x128xf32> to vector<16x128xf32>
    %451 = arith.mulf %447, %450 : vector<16x128xf32>
    %452 = arith.addf %445, %451 : vector<16x128xf32>
    %453 = vector.broadcast %13 : vector<1x128xf32> to vector<16x128xf32>
    %454 = arith.mulf %448, %453 : vector<16x128xf32>
    %455 = arith.addf %452, %454 : vector<16x128xf32>
    %456 = vector.broadcast %14 : vector<1x128xf32> to vector<16x128xf32>
    %457 = arith.mulf %449, %456 : vector<16x128xf32>
    %458 = arith.addf %455, %457 : vector<16x128xf32>
    %c180_103 = arith.constant 180 : index
    %c0_104 = arith.constant 0 : index
    %459 = vector.load %arg9[%c180_103, %c0_104] : memref<324x128xf32, #tpu.memory_space<vmem>>, vector<18x128xf32>
    %460 = vector.extract_strided_slice %459 {offsets = [0, 0], sizes = [16, 128], strides = [1, 1]} : vector<18x128xf32> to vector<16x128xf32>
    %461 = vector.extract_strided_slice %459 {offsets = [1, 0], sizes = [16, 128], strides = [1, 1]} : vector<18x128xf32> to vector<16x128xf32>
    %462 = vector.extract_strided_slice %459 {offsets = [2, 0], sizes = [16, 128], strides = [1, 1]} : vector<18x128xf32> to vector<16x128xf32>
    %463 = vector.broadcast %15 : vector<1x128xf32> to vector<16x128xf32>
    %464 = arith.mulf %460, %463 : vector<16x128xf32>
    %465 = arith.addf %458, %464 : vector<16x128xf32>
    %466 = vector.broadcast %16 : vector<1x128xf32> to vector<16x128xf32>
    %467 = arith.mulf %461, %466 : vector<16x128xf32>
    %468 = arith.addf %465, %467 : vector<16x128xf32>
    %469 = vector.broadcast %17 : vector<1x128xf32> to vector<16x128xf32>
    %470 = arith.mulf %462, %469 : vector<16x128xf32>
    %471 = arith.addf %468, %470 : vector<16x128xf32>
    %c198 = arith.constant 198 : index
    %c0_105 = arith.constant 0 : index
    %472 = vector.load %arg9[%c198, %c0_105] : memref<324x128xf32, #tpu.memory_space<vmem>>, vector<18x128xf32>
    %473 = vector.extract_strided_slice %472 {offsets = [0, 0], sizes = [16, 128], strides = [1, 1]} : vector<18x128xf32> to vector<16x128xf32>
    %474 = vector.extract_strided_slice %472 {offsets = [1, 0], sizes = [16, 128], strides = [1, 1]} : vector<18x128xf32> to vector<16x128xf32>
    %475 = vector.extract_strided_slice %472 {offsets = [2, 0], sizes = [16, 128], strides = [1, 1]} : vector<18x128xf32> to vector<16x128xf32>
    %476 = vector.broadcast %18 : vector<1x128xf32> to vector<16x128xf32>
    %477 = arith.mulf %473, %476 : vector<16x128xf32>
    %478 = arith.addf %471, %477 : vector<16x128xf32>
    %479 = vector.broadcast %19 : vector<1x128xf32> to vector<16x128xf32>
    %480 = arith.mulf %474, %479 : vector<16x128xf32>
    %481 = arith.addf %478, %480 : vector<16x128xf32>
    %482 = vector.broadcast %20 : vector<1x128xf32> to vector<16x128xf32>
    %483 = arith.mulf %475, %482 : vector<16x128xf32>
    %484 = arith.addf %481, %483 : vector<16x128xf32>
    %485 = vector.broadcast %21 : vector<1x128xf32> to vector<16x128xf32>
    %486 = arith.addf %484, %485 : vector<16x128xf32>
    %cst_106 = arith.constant 0.000000e+00 : f32
    %cst_107 = arith.constant 6.000000e+00 : f32
    %487 = vector.broadcast %cst_106 : f32 to vector<16x128xf32>
    %488 = arith.maximumf %487, %486 : vector<16x128xf32>
    %489 = vector.broadcast %cst_107 : f32 to vector<16x128xf32>
    %490 = arith.minimumf %489, %488 : vector<16x128xf32>
    %c144_108 = arith.constant 144 : index
    %c0_109 = arith.constant 0 : index
    %491 = vector.load %arg10[%c144_108, %c0_109] : memref<256x128xf32, #tpu.memory_space<vmem>>, vector<16x128xf32>
    tpu.vector_store %arg10[%c144_108, %c0_109], %490 {strides = array<i32>} : memref<256x128xf32, #tpu.memory_space<vmem>>, vector<16x128xf32>,
    %cst_110 = arith.constant 0.000000e+00 : f32
    %492 = vector.broadcast %cst_110 : f32 to vector<16x128xf32>
    %c180_111 = arith.constant 180 : index
    %c0_112 = arith.constant 0 : index
    %493 = vector.load %arg9[%c180_111, %c0_112] : memref<324x128xf32, #tpu.memory_space<vmem>>, vector<18x128xf32>
    %494 = vector.extract_strided_slice %493 {offsets = [0, 0], sizes = [16, 128], strides = [1, 1]} : vector<18x128xf32> to vector<16x128xf32>
    %495 = vector.extract_strided_slice %493 {offsets = [1, 0], sizes = [16, 128], strides = [1, 1]} : vector<18x128xf32> to vector<16x128xf32>
    %496 = vector.extract_strided_slice %493 {offsets = [2, 0], sizes = [16, 128], strides = [1, 1]} : vector<18x128xf32> to vector<16x128xf32>
    %497 = vector.broadcast %12 : vector<1x128xf32> to vector<16x128xf32>
    %498 = arith.mulf %494, %497 : vector<16x128xf32>
    %499 = arith.addf %492, %498 : vector<16x128xf32>
    %500 = vector.broadcast %13 : vector<1x128xf32> to vector<16x128xf32>
    %501 = arith.mulf %495, %500 : vector<16x128xf32>
    %502 = arith.addf %499, %501 : vector<16x128xf32>
    %503 = vector.broadcast %14 : vector<1x128xf32> to vector<16x128xf32>
    %504 = arith.mulf %496, %503 : vector<16x128xf32>
    %505 = arith.addf %502, %504 : vector<16x128xf32>
    %c198_113 = arith.constant 198 : index
    %c0_114 = arith.constant 0 : index
    %506 = vector.load %arg9[%c198_113, %c0_114] : memref<324x128xf32, #tpu.memory_space<vmem>>, vector<18x128xf32>
    %507 = vector.extract_strided_slice %506 {offsets = [0, 0], sizes = [16, 128], strides = [1, 1]} : vector<18x128xf32> to vector<16x128xf32>
    %508 = vector.extract_strided_slice %506 {offsets = [1, 0], sizes = [16, 128], strides = [1, 1]} : vector<18x128xf32> to vector<16x128xf32>
    %509 = vector.extract_strided_slice %506 {offsets = [2, 0], sizes = [16, 128], strides = [1, 1]} : vector<18x128xf32> to vector<16x128xf32>
    %510 = vector.broadcast %15 : vector<1x128xf32> to vector<16x128xf32>
    %511 = arith.mulf %507, %510 : vector<16x128xf32>
    %512 = arith.addf %505, %511 : vector<16x128xf32>
    %513 = vector.broadcast %16 : vector<1x128xf32> to vector<16x128xf32>
    %514 = arith.mulf %508, %513 : vector<16x128xf32>
    %515 = arith.addf %512, %514 : vector<16x128xf32>
    %516 = vector.broadcast %17 : vector<1x128xf32> to vector<16x128xf32>
    %517 = arith.mulf %509, %516 : vector<16x128xf32>
    %518 = arith.addf %515, %517 : vector<16x128xf32>
    %c216 = arith.constant 216 : index
    %c0_115 = arith.constant 0 : index
    %519 = vector.load %arg9[%c216, %c0_115] : memref<324x128xf32, #tpu.memory_space<vmem>>, vector<18x128xf32>
    %520 = vector.extract_strided_slice %519 {offsets = [0, 0], sizes = [16, 128], strides = [1, 1]} : vector<18x128xf32> to vector<16x128xf32>
    %521 = vector.extract_strided_slice %519 {offsets = [1, 0], sizes = [16, 128], strides = [1, 1]} : vector<18x128xf32> to vector<16x128xf32>
    %522 = vector.extract_strided_slice %519 {offsets = [2, 0], sizes = [16, 128], strides = [1, 1]} : vector<18x128xf32> to vector<16x128xf32>
    %523 = vector.broadcast %18 : vector<1x128xf32> to vector<16x128xf32>
    %524 = arith.mulf %520, %523 : vector<16x128xf32>
    %525 = arith.addf %518, %524 : vector<16x128xf32>
    %526 = vector.broadcast %19 : vector<1x128xf32> to vector<16x128xf32>
    %527 = arith.mulf %521, %526 : vector<16x128xf32>
    %528 = arith.addf %525, %527 : vector<16x128xf32>
    %529 = vector.broadcast %20 : vector<1x128xf32> to vector<16x128xf32>
    %530 = arith.mulf %522, %529 : vector<16x128xf32>
    %531 = arith.addf %528, %530 : vector<16x128xf32>
    %532 = vector.broadcast %21 : vector<1x128xf32> to vector<16x128xf32>
    %533 = arith.addf %531, %532 : vector<16x128xf32>
    %cst_116 = arith.constant 0.000000e+00 : f32
    %cst_117 = arith.constant 6.000000e+00 : f32
    %534 = vector.broadcast %cst_116 : f32 to vector<16x128xf32>
    %535 = arith.maximumf %534, %533 : vector<16x128xf32>
    %536 = vector.broadcast %cst_117 : f32 to vector<16x128xf32>
    %537 = arith.minimumf %536, %535 : vector<16x128xf32>
    %c160 = arith.constant 160 : index
    %c0_118 = arith.constant 0 : index
    %538 = vector.load %arg10[%c160, %c0_118] : memref<256x128xf32, #tpu.memory_space<vmem>>, vector<16x128xf32>
    tpu.vector_store %arg10[%c160, %c0_118], %537 {strides = array<i32>} : memref<256x128xf32, #tpu.memory_space<vmem>>, vector<16x128xf32>,
    %cst_119 = arith.constant 0.000000e+00 : f32
    %539 = vector.broadcast %cst_119 : f32 to vector<16x128xf32>
    %c198_120 = arith.constant 198 : index
    %c0_121 = arith.constant 0 : index
    %540 = vector.load %arg9[%c198_120, %c0_121] : memref<324x128xf32, #tpu.memory_space<vmem>>, vector<18x128xf32>
    %541 = vector.extract_strided_slice %540 {offsets = [0, 0], sizes = [16, 128], strides = [1, 1]} : vector<18x128xf32> to vector<16x128xf32>
    %542 = vector.extract_strided_slice %540 {offsets = [1, 0], sizes = [16, 128], strides = [1, 1]} : vector<18x128xf32> to vector<16x128xf32>
    %543 = vector.extract_strided_slice %540 {offsets = [2, 0], sizes = [16, 128], strides = [1, 1]} : vector<18x128xf32> to vector<16x128xf32>
    %544 = vector.broadcast %12 : vector<1x128xf32> to vector<16x128xf32>
    %545 = arith.mulf %541, %544 : vector<16x128xf32>
    %546 = arith.addf %539, %545 : vector<16x128xf32>
    %547 = vector.broadcast %13 : vector<1x128xf32> to vector<16x128xf32>
    %548 = arith.mulf %542, %547 : vector<16x128xf32>
    %549 = arith.addf %546, %548 : vector<16x128xf32>
    %550 = vector.broadcast %14 : vector<1x128xf32> to vector<16x128xf32>
    %551 = arith.mulf %543, %550 : vector<16x128xf32>
    %552 = arith.addf %549, %551 : vector<16x128xf32>
    %c216_122 = arith.constant 216 : index
    %c0_123 = arith.constant 0 : index
    %553 = vector.load %arg9[%c216_122, %c0_123] : memref<324x128xf32, #tpu.memory_space<vmem>>, vector<18x128xf32>
    %554 = vector.extract_strided_slice %553 {offsets = [0, 0], sizes = [16, 128], strides = [1, 1]} : vector<18x128xf32> to vector<16x128xf32>
    %555 = vector.extract_strided_slice %553 {offsets = [1, 0], sizes = [16, 128], strides = [1, 1]} : vector<18x128xf32> to vector<16x128xf32>
    %556 = vector.extract_strided_slice %553 {offsets = [2, 0], sizes = [16, 128], strides = [1, 1]} : vector<18x128xf32> to vector<16x128xf32>
    %557 = vector.broadcast %15 : vector<1x128xf32> to vector<16x128xf32>
    %558 = arith.mulf %554, %557 : vector<16x128xf32>
    %559 = arith.addf %552, %558 : vector<16x128xf32>
    %560 = vector.broadcast %16 : vector<1x128xf32> to vector<16x128xf32>
    %561 = arith.mulf %555, %560 : vector<16x128xf32>
    %562 = arith.addf %559, %561 : vector<16x128xf32>
    %563 = vector.broadcast %17 : vector<1x128xf32> to vector<16x128xf32>
    %564 = arith.mulf %556, %563 : vector<16x128xf32>
    %565 = arith.addf %562, %564 : vector<16x128xf32>
    %c234 = arith.constant 234 : index
    %c0_124 = arith.constant 0 : index
    %566 = vector.load %arg9[%c234, %c0_124] : memref<324x128xf32, #tpu.memory_space<vmem>>, vector<18x128xf32>
    %567 = vector.extract_strided_slice %566 {offsets = [0, 0], sizes = [16, 128], strides = [1, 1]} : vector<18x128xf32> to vector<16x128xf32>
    %568 = vector.extract_strided_slice %566 {offsets = [1, 0], sizes = [16, 128], strides = [1, 1]} : vector<18x128xf32> to vector<16x128xf32>
    %569 = vector.extract_strided_slice %566 {offsets = [2, 0], sizes = [16, 128], strides = [1, 1]} : vector<18x128xf32> to vector<16x128xf32>
    %570 = vector.broadcast %18 : vector<1x128xf32> to vector<16x128xf32>
    %571 = arith.mulf %567, %570 : vector<16x128xf32>
    %572 = arith.addf %565, %571 : vector<16x128xf32>
    %573 = vector.broadcast %19 : vector<1x128xf32> to vector<16x128xf32>
    %574 = arith.mulf %568, %573 : vector<16x128xf32>
    %575 = arith.addf %572, %574 : vector<16x128xf32>
    %576 = vector.broadcast %20 : vector<1x128xf32> to vector<16x128xf32>
    %577 = arith.mulf %569, %576 : vector<16x128xf32>
    %578 = arith.addf %575, %577 : vector<16x128xf32>
    %579 = vector.broadcast %21 : vector<1x128xf32> to vector<16x128xf32>
    %580 = arith.addf %578, %579 : vector<16x128xf32>
    %cst_125 = arith.constant 0.000000e+00 : f32
    %cst_126 = arith.constant 6.000000e+00 : f32
    %581 = vector.broadcast %cst_125 : f32 to vector<16x128xf32>
    %582 = arith.maximumf %581, %580 : vector<16x128xf32>
    %583 = vector.broadcast %cst_126 : f32 to vector<16x128xf32>
    %584 = arith.minimumf %583, %582 : vector<16x128xf32>
    %c176 = arith.constant 176 : index
    %c0_127 = arith.constant 0 : index
    %585 = vector.load %arg10[%c176, %c0_127] : memref<256x128xf32, #tpu.memory_space<vmem>>, vector<16x128xf32>
    tpu.vector_store %arg10[%c176, %c0_127], %584 {strides = array<i32>} : memref<256x128xf32, #tpu.memory_space<vmem>>, vector<16x128xf32>,
    %cst_128 = arith.constant 0.000000e+00 : f32
    %586 = vector.broadcast %cst_128 : f32 to vector<16x128xf32>
    %c216_129 = arith.constant 216 : index
    %c0_130 = arith.constant 0 : index
    %587 = vector.load %arg9[%c216_129, %c0_130] : memref<324x128xf32, #tpu.memory_space<vmem>>, vector<18x128xf32>
    %588 = vector.extract_strided_slice %587 {offsets = [0, 0], sizes = [16, 128], strides = [1, 1]} : vector<18x128xf32> to vector<16x128xf32>
    %589 = vector.extract_strided_slice %587 {offsets = [1, 0], sizes = [16, 128], strides = [1, 1]} : vector<18x128xf32> to vector<16x128xf32>
    %590 = vector.extract_strided_slice %587 {offsets = [2, 0], sizes = [16, 128], strides = [1, 1]} : vector<18x128xf32> to vector<16x128xf32>
    %591 = vector.broadcast %12 : vector<1x128xf32> to vector<16x128xf32>
    %592 = arith.mulf %588, %591 : vector<16x128xf32>
    %593 = arith.addf %586, %592 : vector<16x128xf32>
    %594 = vector.broadcast %13 : vector<1x128xf32> to vector<16x128xf32>
    %595 = arith.mulf %589, %594 : vector<16x128xf32>
    %596 = arith.addf %593, %595 : vector<16x128xf32>
    %597 = vector.broadcast %14 : vector<1x128xf32> to vector<16x128xf32>
    %598 = arith.mulf %590, %597 : vector<16x128xf32>
    %599 = arith.addf %596, %598 : vector<16x128xf32>
    %c234_131 = arith.constant 234 : index
    %c0_132 = arith.constant 0 : index
    %600 = vector.load %arg9[%c234_131, %c0_132] : memref<324x128xf32, #tpu.memory_space<vmem>>, vector<18x128xf32>
    %601 = vector.extract_strided_slice %600 {offsets = [0, 0], sizes = [16, 128], strides = [1, 1]} : vector<18x128xf32> to vector<16x128xf32>
    %602 = vector.extract_strided_slice %600 {offsets = [1, 0], sizes = [16, 128], strides = [1, 1]} : vector<18x128xf32> to vector<16x128xf32>
    %603 = vector.extract_strided_slice %600 {offsets = [2, 0], sizes = [16, 128], strides = [1, 1]} : vector<18x128xf32> to vector<16x128xf32>
    %604 = vector.broadcast %15 : vector<1x128xf32> to vector<16x128xf32>
    %605 = arith.mulf %601, %604 : vector<16x128xf32>
    %606 = arith.addf %599, %605 : vector<16x128xf32>
    %607 = vector.broadcast %16 : vector<1x128xf32> to vector<16x128xf32>
    %608 = arith.mulf %602, %607 : vector<16x128xf32>
    %609 = arith.addf %606, %608 : vector<16x128xf32>
    %610 = vector.broadcast %17 : vector<1x128xf32> to vector<16x128xf32>
    %611 = arith.mulf %603, %610 : vector<16x128xf32>
    %612 = arith.addf %609, %611 : vector<16x128xf32>
    %c252 = arith.constant 252 : index
    %c0_133 = arith.constant 0 : index
    %613 = vector.load %arg9[%c252, %c0_133] : memref<324x128xf32, #tpu.memory_space<vmem>>, vector<18x128xf32>
    %614 = vector.extract_strided_slice %613 {offsets = [0, 0], sizes = [16, 128], strides = [1, 1]} : vector<18x128xf32> to vector<16x128xf32>
    %615 = vector.extract_strided_slice %613 {offsets = [1, 0], sizes = [16, 128], strides = [1, 1]} : vector<18x128xf32> to vector<16x128xf32>
    %616 = vector.extract_strided_slice %613 {offsets = [2, 0], sizes = [16, 128], strides = [1, 1]} : vector<18x128xf32> to vector<16x128xf32>
    %617 = vector.broadcast %18 : vector<1x128xf32> to vector<16x128xf32>
    %618 = arith.mulf %614, %617 : vector<16x128xf32>
    %619 = arith.addf %612, %618 : vector<16x128xf32>
    %620 = vector.broadcast %19 : vector<1x128xf32> to vector<16x128xf32>
    %621 = arith.mulf %615, %620 : vector<16x128xf32>
    %622 = arith.addf %619, %621 : vector<16x128xf32>
    %623 = vector.broadcast %20 : vector<1x128xf32> to vector<16x128xf32>
    %624 = arith.mulf %616, %623 : vector<16x128xf32>
    %625 = arith.addf %622, %624 : vector<16x128xf32>
    %626 = vector.broadcast %21 : vector<1x128xf32> to vector<16x128xf32>
    %627 = arith.addf %625, %626 : vector<16x128xf32>
    %cst_134 = arith.constant 0.000000e+00 : f32
    %cst_135 = arith.constant 6.000000e+00 : f32
    %628 = vector.broadcast %cst_134 : f32 to vector<16x128xf32>
    %629 = arith.maximumf %628, %627 : vector<16x128xf32>
    %630 = vector.broadcast %cst_135 : f32 to vector<16x128xf32>
    %631 = arith.minimumf %630, %629 : vector<16x128xf32>
    %c192 = arith.constant 192 : index
    %c0_136 = arith.constant 0 : index
    %632 = vector.load %arg10[%c192, %c0_136] : memref<256x128xf32, #tpu.memory_space<vmem>>, vector<16x128xf32>
    tpu.vector_store %arg10[%c192, %c0_136], %631 {strides = array<i32>} : memref<256x128xf32, #tpu.memory_space<vmem>>, vector<16x128xf32>,
    %cst_137 = arith.constant 0.000000e+00 : f32
    %633 = vector.broadcast %cst_137 : f32 to vector<16x128xf32>
    %c234_138 = arith.constant 234 : index
    %c0_139 = arith.constant 0 : index
    %634 = vector.load %arg9[%c234_138, %c0_139] : memref<324x128xf32, #tpu.memory_space<vmem>>, vector<18x128xf32>
    %635 = vector.extract_strided_slice %634 {offsets = [0, 0], sizes = [16, 128], strides = [1, 1]} : vector<18x128xf32> to vector<16x128xf32>
    %636 = vector.extract_strided_slice %634 {offsets = [1, 0], sizes = [16, 128], strides = [1, 1]} : vector<18x128xf32> to vector<16x128xf32>
    %637 = vector.extract_strided_slice %634 {offsets = [2, 0], sizes = [16, 128], strides = [1, 1]} : vector<18x128xf32> to vector<16x128xf32>
    %638 = vector.broadcast %12 : vector<1x128xf32> to vector<16x128xf32>
    %639 = arith.mulf %635, %638 : vector<16x128xf32>
    %640 = arith.addf %633, %639 : vector<16x128xf32>
    %641 = vector.broadcast %13 : vector<1x128xf32> to vector<16x128xf32>
    %642 = arith.mulf %636, %641 : vector<16x128xf32>
    %643 = arith.addf %640, %642 : vector<16x128xf32>
    %644 = vector.broadcast %14 : vector<1x128xf32> to vector<16x128xf32>
    %645 = arith.mulf %637, %644 : vector<16x128xf32>
    %646 = arith.addf %643, %645 : vector<16x128xf32>
    %c252_140 = arith.constant 252 : index
    %c0_141 = arith.constant 0 : index
    %647 = vector.load %arg9[%c252_140, %c0_141] : memref<324x128xf32, #tpu.memory_space<vmem>>, vector<18x128xf32>
    %648 = vector.extract_strided_slice %647 {offsets = [0, 0], sizes = [16, 128], strides = [1, 1]} : vector<18x128xf32> to vector<16x128xf32>
    %649 = vector.extract_strided_slice %647 {offsets = [1, 0], sizes = [16, 128], strides = [1, 1]} : vector<18x128xf32> to vector<16x128xf32>
    %650 = vector.extract_strided_slice %647 {offsets = [2, 0], sizes = [16, 128], strides = [1, 1]} : vector<18x128xf32> to vector<16x128xf32>
    %651 = vector.broadcast %15 : vector<1x128xf32> to vector<16x128xf32>
    %652 = arith.mulf %648, %651 : vector<16x128xf32>
    %653 = arith.addf %646, %652 : vector<16x128xf32>
    %654 = vector.broadcast %16 : vector<1x128xf32> to vector<16x128xf32>
    %655 = arith.mulf %649, %654 : vector<16x128xf32>
    %656 = arith.addf %653, %655 : vector<16x128xf32>
    %657 = vector.broadcast %17 : vector<1x128xf32> to vector<16x128xf32>
    %658 = arith.mulf %650, %657 : vector<16x128xf32>
    %659 = arith.addf %656, %658 : vector<16x128xf32>
    %c270 = arith.constant 270 : index
    %c0_142 = arith.constant 0 : index
    %660 = vector.load %arg9[%c270, %c0_142] : memref<324x128xf32, #tpu.memory_space<vmem>>, vector<18x128xf32>
    %661 = vector.extract_strided_slice %660 {offsets = [0, 0], sizes = [16, 128], strides = [1, 1]} : vector<18x128xf32> to vector<16x128xf32>
    %662 = vector.extract_strided_slice %660 {offsets = [1, 0], sizes = [16, 128], strides = [1, 1]} : vector<18x128xf32> to vector<16x128xf32>
    %663 = vector.extract_strided_slice %660 {offsets = [2, 0], sizes = [16, 128], strides = [1, 1]} : vector<18x128xf32> to vector<16x128xf32>
    %664 = vector.broadcast %18 : vector<1x128xf32> to vector<16x128xf32>
    %665 = arith.mulf %661, %664 : vector<16x128xf32>
    %666 = arith.addf %659, %665 : vector<16x128xf32>
    %667 = vector.broadcast %19 : vector<1x128xf32> to vector<16x128xf32>
    %668 = arith.mulf %662, %667 : vector<16x128xf32>
    %669 = arith.addf %666, %668 : vector<16x128xf32>
    %670 = vector.broadcast %20 : vector<1x128xf32> to vector<16x128xf32>
    %671 = arith.mulf %663, %670 : vector<16x128xf32>
    %672 = arith.addf %669, %671 : vector<16x128xf32>
    %673 = vector.broadcast %21 : vector<1x128xf32> to vector<16x128xf32>
    %674 = arith.addf %672, %673 : vector<16x128xf32>
    %cst_143 = arith.constant 0.000000e+00 : f32
    %cst_144 = arith.constant 6.000000e+00 : f32
    %675 = vector.broadcast %cst_143 : f32 to vector<16x128xf32>
    %676 = arith.maximumf %675, %674 : vector<16x128xf32>
    %677 = vector.broadcast %cst_144 : f32 to vector<16x128xf32>
    %678 = arith.minimumf %677, %676 : vector<16x128xf32>
    %c208 = arith.constant 208 : index
    %c0_145 = arith.constant 0 : index
    %679 = vector.load %arg10[%c208, %c0_145] : memref<256x128xf32, #tpu.memory_space<vmem>>, vector<16x128xf32>
    tpu.vector_store %arg10[%c208, %c0_145], %678 {strides = array<i32>} : memref<256x128xf32, #tpu.memory_space<vmem>>, vector<16x128xf32>,
    %cst_146 = arith.constant 0.000000e+00 : f32
    %680 = vector.broadcast %cst_146 : f32 to vector<16x128xf32>
    %c252_147 = arith.constant 252 : index
    %c0_148 = arith.constant 0 : index
    %681 = vector.load %arg9[%c252_147, %c0_148] : memref<324x128xf32, #tpu.memory_space<vmem>>, vector<18x128xf32>
    %682 = vector.extract_strided_slice %681 {offsets = [0, 0], sizes = [16, 128], strides = [1, 1]} : vector<18x128xf32> to vector<16x128xf32>
    %683 = vector.extract_strided_slice %681 {offsets = [1, 0], sizes = [16, 128], strides = [1, 1]} : vector<18x128xf32> to vector<16x128xf32>
    %684 = vector.extract_strided_slice %681 {offsets = [2, 0], sizes = [16, 128], strides = [1, 1]} : vector<18x128xf32> to vector<16x128xf32>
    %685 = vector.broadcast %12 : vector<1x128xf32> to vector<16x128xf32>
    %686 = arith.mulf %682, %685 : vector<16x128xf32>
    %687 = arith.addf %680, %686 : vector<16x128xf32>
    %688 = vector.broadcast %13 : vector<1x128xf32> to vector<16x128xf32>
    %689 = arith.mulf %683, %688 : vector<16x128xf32>
    %690 = arith.addf %687, %689 : vector<16x128xf32>
    %691 = vector.broadcast %14 : vector<1x128xf32> to vector<16x128xf32>
    %692 = arith.mulf %684, %691 : vector<16x128xf32>
    %693 = arith.addf %690, %692 : vector<16x128xf32>
    %c270_149 = arith.constant 270 : index
    %c0_150 = arith.constant 0 : index
    %694 = vector.load %arg9[%c270_149, %c0_150] : memref<324x128xf32, #tpu.memory_space<vmem>>, vector<18x128xf32>
    %695 = vector.extract_strided_slice %694 {offsets = [0, 0], sizes = [16, 128], strides = [1, 1]} : vector<18x128xf32> to vector<16x128xf32>
    %696 = vector.extract_strided_slice %694 {offsets = [1, 0], sizes = [16, 128], strides = [1, 1]} : vector<18x128xf32> to vector<16x128xf32>
    %697 = vector.extract_strided_slice %694 {offsets = [2, 0], sizes = [16, 128], strides = [1, 1]} : vector<18x128xf32> to vector<16x128xf32>
    %698 = vector.broadcast %15 : vector<1x128xf32> to vector<16x128xf32>
    %699 = arith.mulf %695, %698 : vector<16x128xf32>
    %700 = arith.addf %693, %699 : vector<16x128xf32>
    %701 = vector.broadcast %16 : vector<1x128xf32> to vector<16x128xf32>
    %702 = arith.mulf %696, %701 : vector<16x128xf32>
    %703 = arith.addf %700, %702 : vector<16x128xf32>
    %704 = vector.broadcast %17 : vector<1x128xf32> to vector<16x128xf32>
    %705 = arith.mulf %697, %704 : vector<16x128xf32>
    %706 = arith.addf %703, %705 : vector<16x128xf32>
    %c288 = arith.constant 288 : index
    %c0_151 = arith.constant 0 : index
    %707 = vector.load %arg9[%c288, %c0_151] : memref<324x128xf32, #tpu.memory_space<vmem>>, vector<18x128xf32>
    %708 = vector.extract_strided_slice %707 {offsets = [0, 0], sizes = [16, 128], strides = [1, 1]} : vector<18x128xf32> to vector<16x128xf32>
    %709 = vector.extract_strided_slice %707 {offsets = [1, 0], sizes = [16, 128], strides = [1, 1]} : vector<18x128xf32> to vector<16x128xf32>
    %710 = vector.extract_strided_slice %707 {offsets = [2, 0], sizes = [16, 128], strides = [1, 1]} : vector<18x128xf32> to vector<16x128xf32>
    %711 = vector.broadcast %18 : vector<1x128xf32> to vector<16x128xf32>
    %712 = arith.mulf %708, %711 : vector<16x128xf32>
    %713 = arith.addf %706, %712 : vector<16x128xf32>
    %714 = vector.broadcast %19 : vector<1x128xf32> to vector<16x128xf32>
    %715 = arith.mulf %709, %714 : vector<16x128xf32>
    %716 = arith.addf %713, %715 : vector<16x128xf32>
    %717 = vector.broadcast %20 : vector<1x128xf32> to vector<16x128xf32>
    %718 = arith.mulf %710, %717 : vector<16x128xf32>
    %719 = arith.addf %716, %718 : vector<16x128xf32>
    %720 = vector.broadcast %21 : vector<1x128xf32> to vector<16x128xf32>
    %721 = arith.addf %719, %720 : vector<16x128xf32>
    %cst_152 = arith.constant 0.000000e+00 : f32
    %cst_153 = arith.constant 6.000000e+00 : f32
    %722 = vector.broadcast %cst_152 : f32 to vector<16x128xf32>
    %723 = arith.maximumf %722, %721 : vector<16x128xf32>
    %724 = vector.broadcast %cst_153 : f32 to vector<16x128xf32>
    %725 = arith.minimumf %724, %723 : vector<16x128xf32>
    %c224 = arith.constant 224 : index
    %c0_154 = arith.constant 0 : index
    %726 = vector.load %arg10[%c224, %c0_154] : memref<256x128xf32, #tpu.memory_space<vmem>>, vector<16x128xf32>
    tpu.vector_store %arg10[%c224, %c0_154], %725 {strides = array<i32>} : memref<256x128xf32, #tpu.memory_space<vmem>>, vector<16x128xf32>,
    %cst_155 = arith.constant 0.000000e+00 : f32
    %727 = vector.broadcast %cst_155 : f32 to vector<16x128xf32>
    %c270_156 = arith.constant 270 : index
    %c0_157 = arith.constant 0 : index
    %728 = vector.load %arg9[%c270_156, %c0_157] : memref<324x128xf32, #tpu.memory_space<vmem>>, vector<18x128xf32>
    %729 = vector.extract_strided_slice %728 {offsets = [0, 0], sizes = [16, 128], strides = [1, 1]} : vector<18x128xf32> to vector<16x128xf32>
    %730 = vector.extract_strided_slice %728 {offsets = [1, 0], sizes = [16, 128], strides = [1, 1]} : vector<18x128xf32> to vector<16x128xf32>
    %731 = vector.extract_strided_slice %728 {offsets = [2, 0], sizes = [16, 128], strides = [1, 1]} : vector<18x128xf32> to vector<16x128xf32>
    %732 = vector.broadcast %12 : vector<1x128xf32> to vector<16x128xf32>
    %733 = arith.mulf %729, %732 : vector<16x128xf32>
    %734 = arith.addf %727, %733 : vector<16x128xf32>
    %735 = vector.broadcast %13 : vector<1x128xf32> to vector<16x128xf32>
    %736 = arith.mulf %730, %735 : vector<16x128xf32>
    %737 = arith.addf %734, %736 : vector<16x128xf32>
    %738 = vector.broadcast %14 : vector<1x128xf32> to vector<16x128xf32>
    %739 = arith.mulf %731, %738 : vector<16x128xf32>
    %740 = arith.addf %737, %739 : vector<16x128xf32>
    %c288_158 = arith.constant 288 : index
    %c0_159 = arith.constant 0 : index
    %741 = vector.load %arg9[%c288_158, %c0_159] : memref<324x128xf32, #tpu.memory_space<vmem>>, vector<18x128xf32>
    %742 = vector.extract_strided_slice %741 {offsets = [0, 0], sizes = [16, 128], strides = [1, 1]} : vector<18x128xf32> to vector<16x128xf32>
    %743 = vector.extract_strided_slice %741 {offsets = [1, 0], sizes = [16, 128], strides = [1, 1]} : vector<18x128xf32> to vector<16x128xf32>
    %744 = vector.extract_strided_slice %741 {offsets = [2, 0], sizes = [16, 128], strides = [1, 1]} : vector<18x128xf32> to vector<16x128xf32>
    %745 = vector.broadcast %15 : vector<1x128xf32> to vector<16x128xf32>
    %746 = arith.mulf %742, %745 : vector<16x128xf32>
    %747 = arith.addf %740, %746 : vector<16x128xf32>
    %748 = vector.broadcast %16 : vector<1x128xf32> to vector<16x128xf32>
    %749 = arith.mulf %743, %748 : vector<16x128xf32>
    %750 = arith.addf %747, %749 : vector<16x128xf32>
    %751 = vector.broadcast %17 : vector<1x128xf32> to vector<16x128xf32>
    %752 = arith.mulf %744, %751 : vector<16x128xf32>
    %753 = arith.addf %750, %752 : vector<16x128xf32>
    %c306 = arith.constant 306 : index
    %c0_160 = arith.constant 0 : index
    %754 = vector.load %arg9[%c306, %c0_160] : memref<324x128xf32, #tpu.memory_space<vmem>>, vector<18x128xf32>
    %755 = vector.extract_strided_slice %754 {offsets = [0, 0], sizes = [16, 128], strides = [1, 1]} : vector<18x128xf32> to vector<16x128xf32>
    %756 = vector.extract_strided_slice %754 {offsets = [1, 0], sizes = [16, 128], strides = [1, 1]} : vector<18x128xf32> to vector<16x128xf32>
    %757 = vector.extract_strided_slice %754 {offsets = [2, 0], sizes = [16, 128], strides = [1, 1]} : vector<18x128xf32> to vector<16x128xf32>
    %758 = vector.broadcast %18 : vector<1x128xf32> to vector<16x128xf32>
    %759 = arith.mulf %755, %758 : vector<16x128xf32>
    %760 = arith.addf %753, %759 : vector<16x128xf32>
    %761 = vector.broadcast %19 : vector<1x128xf32> to vector<16x128xf32>
    %762 = arith.mulf %756, %761 : vector<16x128xf32>
    %763 = arith.addf %760, %762 : vector<16x128xf32>
    %764 = vector.broadcast %20 : vector<1x128xf32> to vector<16x128xf32>
    %765 = arith.mulf %757, %764 : vector<16x128xf32>
    %766 = arith.addf %763, %765 : vector<16x128xf32>
    %767 = vector.broadcast %21 : vector<1x128xf32> to vector<16x128xf32>
    %768 = arith.addf %766, %767 : vector<16x128xf32>
    %cst_161 = arith.constant 0.000000e+00 : f32
    %cst_162 = arith.constant 6.000000e+00 : f32
    %769 = vector.broadcast %cst_161 : f32 to vector<16x128xf32>
    %770 = arith.maximumf %769, %768 : vector<16x128xf32>
    %771 = vector.broadcast %cst_162 : f32 to vector<16x128xf32>
    %772 = arith.minimumf %771, %770 : vector<16x128xf32>
    %c240 = arith.constant 240 : index
    %c0_163 = arith.constant 0 : index
    %773 = vector.load %arg10[%c240, %c0_163] : memref<256x128xf32, #tpu.memory_space<vmem>>, vector<16x128xf32>
    tpu.vector_store %arg10[%c240, %c0_163], %772 {strides = array<i32>} : memref<256x128xf32, #tpu.memory_space<vmem>>, vector<16x128xf32>,
    %c0_164 = arith.constant 0 : index
    %c0_165 = arith.constant 0 : index
    %774 = vector.load %arg10[%c0_164, %c0_165] : memref<256x128xf32, #tpu.memory_space<vmem>>, vector<256x128xf32>
    %c0_166 = arith.constant 0 : index
    %c0_167 = arith.constant 0 : index
    %775 = vector.load %arg6[%c0_166, %c0_167] : memref<128x128xf32, #tpu.memory_space<vmem>>, vector<128x128xf32>
    %cst_168 = arith.constant dense<0.000000e+00> : vector<256x128xf32>
    %776 = tpu.matmul %774, %775, %cst_168 {dimension_numbers = #tpu.dot_dimension_numbers<[1], [0], [0], [1], [0, 0, 1, 1], [], []>} : vector<256x128xf32>, vector<128x128xf32>, vector<256x128xf32> -> vector<256x128xf32>
    %c0_169 = arith.constant 0 : index
    %c0_170 = arith.constant 0 : index
    %777 = vector.load %arg7[%c0_169, %c0_170] : memref<1x128xf32, #tpu.memory_space<vmem>>, vector<1x128xf32>
    %778 = vector.broadcast %777 : vector<1x128xf32> to vector<256x128xf32>
    %779 = arith.addf %776, %778 : vector<256x128xf32>
    %c0_171 = arith.constant 0 : index
    %c0_172 = arith.constant 0 : index
    %c0_173 = arith.constant 0 : index
    %c0_174 = arith.constant 0 : index
    %780 = vector.load %arg8[%c0_171, %c0_172, %c0_173, %c0_174] : memref<1x1x256x128xf32, #tpu.memory_space<vmem>>, vector<1x1x256x128xf32>
    %781 = vector.shape_cast %780 : vector<1x1x256x128xf32> to vector<256x128xf32>
    %782 = vector.shape_cast %779 : vector<256x128xf32> to vector<1x1x256x128xf32>
    tpu.vector_store %arg8[%c0_171, %c0_172, %c0_173, %c0_174], %782 {strides = array<i32>} : memref<1x1x256x128xf32, #tpu.memory_space<vmem>>, vector<1x1x256x128xf32>,
    %c18_i32 = arith.constant 18 : i32
    %783 = arith.addi %1, %c18_i32 : i32
    %c1_i32 = arith.constant 1 : i32
    %784 = arith.addi %783, %c1_i32 : i32
    %c0_175 = arith.constant 0 : index
    %785 = arith.index_cast %784 : i32 to index
    %c0_176 = arith.constant 0 : index
    %786 = vector.load %arg2[%c0_175, %785, %c0_176] : memref<1x324x5xf32, #tpu.memory_space<vmem>>, vector<1x16x5xf32>
    %787 = vector.shape_cast %786 : vector<1x16x5xf32> to vector<16x5xf32>
    %788 = vector.extract_strided_slice %787 {offsets = [0, 0], sizes = [16, 4], strides = [1, 1]} : vector<16x5xf32> to vector<16x4xf32>
    %c0_177 = arith.constant 0 : index
    %c0_178 = arith.constant 0 : index
    %c0_179 = arith.constant 0 : index
    %c0_180 = arith.constant 0 : index
    %789 = vector.load %arg8[%c0_177, %c0_178, %c0_179, %c0_180] : memref<1x1x256x128xf32, #tpu.memory_space<vmem>>, vector<1x1x16x4xf32>
    %790 = vector.shape_cast %789 : vector<1x1x16x4xf32> to vector<16x4xf32>
    %791 = arith.addf %790, %788 : vector<16x4xf32>
    %c0_181 = arith.constant 0 : index
    %c0_182 = arith.constant 0 : index
    %c0_183 = arith.constant 0 : index
    %c0_184 = arith.constant 0 : index
    %792 = vector.load %arg8[%c0_181, %c0_182, %c0_183, %c0_184] : memref<1x1x256x128xf32, #tpu.memory_space<vmem>>, vector<1x1x16x4xf32>
    %793 = vector.shape_cast %792 : vector<1x1x16x4xf32> to vector<16x4xf32>
    %794 = vector.shape_cast %791 : vector<16x4xf32> to vector<1x1x16x4xf32>
    tpu.vector_store %arg8[%c0_181, %c0_182, %c0_183, %c0_184], %794 {strides = array<i32>} : memref<1x1x256x128xf32, #tpu.memory_space<vmem>>, vector<1x1x16x4xf32>,
    %c36_i32 = arith.constant 36 : i32
    %795 = arith.addi %1, %c36_i32 : i32
    %c1_i32_185 = arith.constant 1 : i32
    %796 = arith.addi %795, %c1_i32_185 : i32
    %c0_186 = arith.constant 0 : index
    %797 = arith.index_cast %796 : i32 to index
    %c0_187 = arith.constant 0 : index
    %798 = vector.load %arg2[%c0_186, %797, %c0_187] : memref<1x324x5xf32, #tpu.memory_space<vmem>>, vector<1x16x5xf32>
    %799 = vector.shape_cast %798 : vector<1x16x5xf32> to vector<16x5xf32>
    %800 = vector.extract_strided_slice %799 {offsets = [0, 0], sizes = [16, 4], strides = [1, 1]} : vector<16x5xf32> to vector<16x4xf32>
    %c0_188 = arith.constant 0 : index
    %c0_189 = arith.constant 0 : index
    %c16_190 = arith.constant 16 : index
    %c0_191 = arith.constant 0 : index
    %801 = vector.load %arg8[%c0_188, %c0_189, %c16_190, %c0_191] : memref<1x1x256x128xf32, #tpu.memory_space<vmem>>, vector<1x1x16x4xf32>
    %802 = vector.shape_cast %801 : vector<1x1x16x4xf32> to vector<16x4xf32>
    %803 = arith.addf %802, %800 : vector<16x4xf32>
    %c0_192 = arith.constant 0 : index
    %c0_193 = arith.constant 0 : index
    %c16_194 = arith.constant 16 : index
    %c0_195 = arith.constant 0 : index
    %804 = vector.load %arg8[%c0_192, %c0_193, %c16_194, %c0_195] : memref<1x1x256x128xf32, #tpu.memory_space<vmem>>, vector<1x1x16x4xf32>
    %805 = vector.shape_cast %804 : vector<1x1x16x4xf32> to vector<16x4xf32>
    %806 = vector.shape_cast %803 : vector<16x4xf32> to vector<1x1x16x4xf32>
    tpu.vector_store %arg8[%c0_192, %c0_193, %c16_194, %c0_195], %806 {strides = array<i32>} : memref<1x1x256x128xf32, #tpu.memory_space<vmem>>, vector<1x1x16x4xf32>,
    %c54_i32 = arith.constant 54 : i32
    %807 = arith.addi %1, %c54_i32 : i32
    %c1_i32_196 = arith.constant 1 : i32
    %808 = arith.addi %807, %c1_i32_196 : i32
    %c0_197 = arith.constant 0 : index
    %809 = arith.index_cast %808 : i32 to index
    %c0_198 = arith.constant 0 : index
    %810 = vector.load %arg2[%c0_197, %809, %c0_198] : memref<1x324x5xf32, #tpu.memory_space<vmem>>, vector<1x16x5xf32>
    %811 = vector.shape_cast %810 : vector<1x16x5xf32> to vector<16x5xf32>
    %812 = vector.extract_strided_slice %811 {offsets = [0, 0], sizes = [16, 4], strides = [1, 1]} : vector<16x5xf32> to vector<16x4xf32>
    %c0_199 = arith.constant 0 : index
    %c0_200 = arith.constant 0 : index
    %c32_201 = arith.constant 32 : index
    %c0_202 = arith.constant 0 : index
    %813 = vector.load %arg8[%c0_199, %c0_200, %c32_201, %c0_202] : memref<1x1x256x128xf32, #tpu.memory_space<vmem>>, vector<1x1x16x4xf32>
    %814 = vector.shape_cast %813 : vector<1x1x16x4xf32> to vector<16x4xf32>
    %815 = arith.addf %814, %812 : vector<16x4xf32>
    %c0_203 = arith.constant 0 : index
    %c0_204 = arith.constant 0 : index
    %c32_205 = arith.constant 32 : index
    %c0_206 = arith.constant 0 : index
    %816 = vector.load %arg8[%c0_203, %c0_204, %c32_205, %c0_206] : memref<1x1x256x128xf32, #tpu.memory_space<vmem>>, vector<1x1x16x4xf32>
    %817 = vector.shape_cast %816 : vector<1x1x16x4xf32> to vector<16x4xf32>
    %818 = vector.shape_cast %815 : vector<16x4xf32> to vector<1x1x16x4xf32>
    tpu.vector_store %arg8[%c0_203, %c0_204, %c32_205, %c0_206], %818 {strides = array<i32>} : memref<1x1x256x128xf32, #tpu.memory_space<vmem>>, vector<1x1x16x4xf32>,
    %c72_i32 = arith.constant 72 : i32
    %819 = arith.addi %1, %c72_i32 : i32
    %c1_i32_207 = arith.constant 1 : i32
    %820 = arith.addi %819, %c1_i32_207 : i32
    %c0_208 = arith.constant 0 : index
    %821 = arith.index_cast %820 : i32 to index
    %c0_209 = arith.constant 0 : index
    %822 = vector.load %arg2[%c0_208, %821, %c0_209] : memref<1x324x5xf32, #tpu.memory_space<vmem>>, vector<1x16x5xf32>
    %823 = vector.shape_cast %822 : vector<1x16x5xf32> to vector<16x5xf32>
    %824 = vector.extract_strided_slice %823 {offsets = [0, 0], sizes = [16, 4], strides = [1, 1]} : vector<16x5xf32> to vector<16x4xf32>
    %c0_210 = arith.constant 0 : index
    %c0_211 = arith.constant 0 : index
    %c48_212 = arith.constant 48 : index
    %c0_213 = arith.constant 0 : index
    %825 = vector.load %arg8[%c0_210, %c0_211, %c48_212, %c0_213] : memref<1x1x256x128xf32, #tpu.memory_space<vmem>>, vector<1x1x16x4xf32>
    %826 = vector.shape_cast %825 : vector<1x1x16x4xf32> to vector<16x4xf32>
    %827 = arith.addf %826, %824 : vector<16x4xf32>
    %c0_214 = arith.constant 0 : index
    %c0_215 = arith.constant 0 : index
    %c48_216 = arith.constant 48 : index
    %c0_217 = arith.constant 0 : index
    %828 = vector.load %arg8[%c0_214, %c0_215, %c48_216, %c0_217] : memref<1x1x256x128xf32, #tpu.memory_space<vmem>>, vector<1x1x16x4xf32>
    %829 = vector.shape_cast %828 : vector<1x1x16x4xf32> to vector<16x4xf32>
    %830 = vector.shape_cast %827 : vector<16x4xf32> to vector<1x1x16x4xf32>
    tpu.vector_store %arg8[%c0_214, %c0_215, %c48_216, %c0_217], %830 {strides = array<i32>} : memref<1x1x256x128xf32, #tpu.memory_space<vmem>>, vector<1x1x16x4xf32>,
    %c90_i32 = arith.constant 90 : i32
    %831 = arith.addi %1, %c90_i32 : i32
    %c1_i32_218 = arith.constant 1 : i32
    %832 = arith.addi %831, %c1_i32_218 : i32
    %c0_219 = arith.constant 0 : index
    %833 = arith.index_cast %832 : i32 to index
    %c0_220 = arith.constant 0 : index
    %834 = vector.load %arg2[%c0_219, %833, %c0_220] : memref<1x324x5xf32, #tpu.memory_space<vmem>>, vector<1x16x5xf32>
    %835 = vector.shape_cast %834 : vector<1x16x5xf32> to vector<16x5xf32>
    %836 = vector.extract_strided_slice %835 {offsets = [0, 0], sizes = [16, 4], strides = [1, 1]} : vector<16x5xf32> to vector<16x4xf32>
    %c0_221 = arith.constant 0 : index
    %c0_222 = arith.constant 0 : index
    %c64_223 = arith.constant 64 : index
    %c0_224 = arith.constant 0 : index
    %837 = vector.load %arg8[%c0_221, %c0_222, %c64_223, %c0_224] : memref<1x1x256x128xf32, #tpu.memory_space<vmem>>, vector<1x1x16x4xf32>
    %838 = vector.shape_cast %837 : vector<1x1x16x4xf32> to vector<16x4xf32>
    %839 = arith.addf %838, %836 : vector<16x4xf32>
    %c0_225 = arith.constant 0 : index
    %c0_226 = arith.constant 0 : index
    %c64_227 = arith.constant 64 : index
    %c0_228 = arith.constant 0 : index
    %840 = vector.load %arg8[%c0_225, %c0_226, %c64_227, %c0_228] : memref<1x1x256x128xf32, #tpu.memory_space<vmem>>, vector<1x1x16x4xf32>
    %841 = vector.shape_cast %840 : vector<1x1x16x4xf32> to vector<16x4xf32>
    %842 = vector.shape_cast %839 : vector<16x4xf32> to vector<1x1x16x4xf32>
    tpu.vector_store %arg8[%c0_225, %c0_226, %c64_227, %c0_228], %842 {strides = array<i32>} : memref<1x1x256x128xf32, #tpu.memory_space<vmem>>, vector<1x1x16x4xf32>,
    %c108_i32 = arith.constant 108 : i32
    %843 = arith.addi %1, %c108_i32 : i32
    %c1_i32_229 = arith.constant 1 : i32
    %844 = arith.addi %843, %c1_i32_229 : i32
    %c0_230 = arith.constant 0 : index
    %845 = arith.index_cast %844 : i32 to index
    %c0_231 = arith.constant 0 : index
    %846 = vector.load %arg2[%c0_230, %845, %c0_231] : memref<1x324x5xf32, #tpu.memory_space<vmem>>, vector<1x16x5xf32>
    %847 = vector.shape_cast %846 : vector<1x16x5xf32> to vector<16x5xf32>
    %848 = vector.extract_strided_slice %847 {offsets = [0, 0], sizes = [16, 4], strides = [1, 1]} : vector<16x5xf32> to vector<16x4xf32>
    %c0_232 = arith.constant 0 : index
    %c0_233 = arith.constant 0 : index
    %c80_234 = arith.constant 80 : index
    %c0_235 = arith.constant 0 : index
    %849 = vector.load %arg8[%c0_232, %c0_233, %c80_234, %c0_235] : memref<1x1x256x128xf32, #tpu.memory_space<vmem>>, vector<1x1x16x4xf32>
    %850 = vector.shape_cast %849 : vector<1x1x16x4xf32> to vector<16x4xf32>
    %851 = arith.addf %850, %848 : vector<16x4xf32>
    %c0_236 = arith.constant 0 : index
    %c0_237 = arith.constant 0 : index
    %c80_238 = arith.constant 80 : index
    %c0_239 = arith.constant 0 : index
    %852 = vector.load %arg8[%c0_236, %c0_237, %c80_238, %c0_239] : memref<1x1x256x128xf32, #tpu.memory_space<vmem>>, vector<1x1x16x4xf32>
    %853 = vector.shape_cast %852 : vector<1x1x16x4xf32> to vector<16x4xf32>
    %854 = vector.shape_cast %851 : vector<16x4xf32> to vector<1x1x16x4xf32>
    tpu.vector_store %arg8[%c0_236, %c0_237, %c80_238, %c0_239], %854 {strides = array<i32>} : memref<1x1x256x128xf32, #tpu.memory_space<vmem>>, vector<1x1x16x4xf32>,
    %c126_i32 = arith.constant 126 : i32
    %855 = arith.addi %1, %c126_i32 : i32
    %c1_i32_240 = arith.constant 1 : i32
    %856 = arith.addi %855, %c1_i32_240 : i32
    %c0_241 = arith.constant 0 : index
    %857 = arith.index_cast %856 : i32 to index
    %c0_242 = arith.constant 0 : index
    %858 = vector.load %arg2[%c0_241, %857, %c0_242] : memref<1x324x5xf32, #tpu.memory_space<vmem>>, vector<1x16x5xf32>
    %859 = vector.shape_cast %858 : vector<1x16x5xf32> to vector<16x5xf32>
    %860 = vector.extract_strided_slice %859 {offsets = [0, 0], sizes = [16, 4], strides = [1, 1]} : vector<16x5xf32> to vector<16x4xf32>
    %c0_243 = arith.constant 0 : index
    %c0_244 = arith.constant 0 : index
    %c96_245 = arith.constant 96 : index
    %c0_246 = arith.constant 0 : index
    %861 = vector.load %arg8[%c0_243, %c0_244, %c96_245, %c0_246] : memref<1x1x256x128xf32, #tpu.memory_space<vmem>>, vector<1x1x16x4xf32>
    %862 = vector.shape_cast %861 : vector<1x1x16x4xf32> to vector<16x4xf32>
    %863 = arith.addf %862, %860 : vector<16x4xf32>
    %c0_247 = arith.constant 0 : index
    %c0_248 = arith.constant 0 : index
    %c96_249 = arith.constant 96 : index
    %c0_250 = arith.constant 0 : index
    %864 = vector.load %arg8[%c0_247, %c0_248, %c96_249, %c0_250] : memref<1x1x256x128xf32, #tpu.memory_space<vmem>>, vector<1x1x16x4xf32>
    %865 = vector.shape_cast %864 : vector<1x1x16x4xf32> to vector<16x4xf32>
    %866 = vector.shape_cast %863 : vector<16x4xf32> to vector<1x1x16x4xf32>
    tpu.vector_store %arg8[%c0_247, %c0_248, %c96_249, %c0_250], %866 {strides = array<i32>} : memref<1x1x256x128xf32, #tpu.memory_space<vmem>>, vector<1x1x16x4xf32>,
    %c144_i32 = arith.constant 144 : i32
    %867 = arith.addi %1, %c144_i32 : i32
    %c1_i32_251 = arith.constant 1 : i32
    %868 = arith.addi %867, %c1_i32_251 : i32
    %c0_252 = arith.constant 0 : index
    %869 = arith.index_cast %868 : i32 to index
    %c0_253 = arith.constant 0 : index
    %870 = vector.load %arg2[%c0_252, %869, %c0_253] : memref<1x324x5xf32, #tpu.memory_space<vmem>>, vector<1x16x5xf32>
    %871 = vector.shape_cast %870 : vector<1x16x5xf32> to vector<16x5xf32>
    %872 = vector.extract_strided_slice %871 {offsets = [0, 0], sizes = [16, 4], strides = [1, 1]} : vector<16x5xf32> to vector<16x4xf32>
    %c0_254 = arith.constant 0 : index
    %c0_255 = arith.constant 0 : index
    %c112_256 = arith.constant 112 : index
    %c0_257 = arith.constant 0 : index
    %873 = vector.load %arg8[%c0_254, %c0_255, %c112_256, %c0_257] : memref<1x1x256x128xf32, #tpu.memory_space<vmem>>, vector<1x1x16x4xf32>
    %874 = vector.shape_cast %873 : vector<1x1x16x4xf32> to vector<16x4xf32>
    %875 = arith.addf %874, %872 : vector<16x4xf32>
    %c0_258 = arith.constant 0 : index
    %c0_259 = arith.constant 0 : index
    %c112_260 = arith.constant 112 : index
    %c0_261 = arith.constant 0 : index
    %876 = vector.load %arg8[%c0_258, %c0_259, %c112_260, %c0_261] : memref<1x1x256x128xf32, #tpu.memory_space<vmem>>, vector<1x1x16x4xf32>
    %877 = vector.shape_cast %876 : vector<1x1x16x4xf32> to vector<16x4xf32>
    %878 = vector.shape_cast %875 : vector<16x4xf32> to vector<1x1x16x4xf32>
    tpu.vector_store %arg8[%c0_258, %c0_259, %c112_260, %c0_261], %878 {strides = array<i32>} : memref<1x1x256x128xf32, #tpu.memory_space<vmem>>, vector<1x1x16x4xf32>,
    %c162_i32 = arith.constant 162 : i32
    %879 = arith.addi %1, %c162_i32 : i32
    %c1_i32_262 = arith.constant 1 : i32
    %880 = arith.addi %879, %c1_i32_262 : i32
    %c0_263 = arith.constant 0 : index
    %881 = arith.index_cast %880 : i32 to index
    %c0_264 = arith.constant 0 : index
    %882 = vector.load %arg2[%c0_263, %881, %c0_264] : memref<1x324x5xf32, #tpu.memory_space<vmem>>, vector<1x16x5xf32>
    %883 = vector.shape_cast %882 : vector<1x16x5xf32> to vector<16x5xf32>
    %884 = vector.extract_strided_slice %883 {offsets = [0, 0], sizes = [16, 4], strides = [1, 1]} : vector<16x5xf32> to vector<16x4xf32>
    %c0_265 = arith.constant 0 : index
    %c0_266 = arith.constant 0 : index
    %c128_267 = arith.constant 128 : index
    %c0_268 = arith.constant 0 : index
    %885 = vector.load %arg8[%c0_265, %c0_266, %c128_267, %c0_268] : memref<1x1x256x128xf32, #tpu.memory_space<vmem>>, vector<1x1x16x4xf32>
    %886 = vector.shape_cast %885 : vector<1x1x16x4xf32> to vector<16x4xf32>
    %887 = arith.addf %886, %884 : vector<16x4xf32>
    %c0_269 = arith.constant 0 : index
    %c0_270 = arith.constant 0 : index
    %c128_271 = arith.constant 128 : index
    %c0_272 = arith.constant 0 : index
    %888 = vector.load %arg8[%c0_269, %c0_270, %c128_271, %c0_272] : memref<1x1x256x128xf32, #tpu.memory_space<vmem>>, vector<1x1x16x4xf32>
    %889 = vector.shape_cast %888 : vector<1x1x16x4xf32> to vector<16x4xf32>
    %890 = vector.shape_cast %887 : vector<16x4xf32> to vector<1x1x16x4xf32>
    tpu.vector_store %arg8[%c0_269, %c0_270, %c128_271, %c0_272], %890 {strides = array<i32>} : memref<1x1x256x128xf32, #tpu.memory_space<vmem>>, vector<1x1x16x4xf32>,
    %c180_i32 = arith.constant 180 : i32
    %891 = arith.addi %1, %c180_i32 : i32
    %c1_i32_273 = arith.constant 1 : i32
    %892 = arith.addi %891, %c1_i32_273 : i32
    %c0_274 = arith.constant 0 : index
    %893 = arith.index_cast %892 : i32 to index
    %c0_275 = arith.constant 0 : index
    %894 = vector.load %arg2[%c0_274, %893, %c0_275] : memref<1x324x5xf32, #tpu.memory_space<vmem>>, vector<1x16x5xf32>
    %895 = vector.shape_cast %894 : vector<1x16x5xf32> to vector<16x5xf32>
    %896 = vector.extract_strided_slice %895 {offsets = [0, 0], sizes = [16, 4], strides = [1, 1]} : vector<16x5xf32> to vector<16x4xf32>
    %c0_276 = arith.constant 0 : index
    %c0_277 = arith.constant 0 : index
    %c144_278 = arith.constant 144 : index
    %c0_279 = arith.constant 0 : index
    %897 = vector.load %arg8[%c0_276, %c0_277, %c144_278, %c0_279] : memref<1x1x256x128xf32, #tpu.memory_space<vmem>>, vector<1x1x16x4xf32>
    %898 = vector.shape_cast %897 : vector<1x1x16x4xf32> to vector<16x4xf32>
    %899 = arith.addf %898, %896 : vector<16x4xf32>
    %c0_280 = arith.constant 0 : index
    %c0_281 = arith.constant 0 : index
    %c144_282 = arith.constant 144 : index
    %c0_283 = arith.constant 0 : index
    %900 = vector.load %arg8[%c0_280, %c0_281, %c144_282, %c0_283] : memref<1x1x256x128xf32, #tpu.memory_space<vmem>>, vector<1x1x16x4xf32>
    %901 = vector.shape_cast %900 : vector<1x1x16x4xf32> to vector<16x4xf32>
    %902 = vector.shape_cast %899 : vector<16x4xf32> to vector<1x1x16x4xf32>
    tpu.vector_store %arg8[%c0_280, %c0_281, %c144_282, %c0_283], %902 {strides = array<i32>} : memref<1x1x256x128xf32, #tpu.memory_space<vmem>>, vector<1x1x16x4xf32>,
    %c198_i32 = arith.constant 198 : i32
    %903 = arith.addi %1, %c198_i32 : i32
    %c1_i32_284 = arith.constant 1 : i32
    %904 = arith.addi %903, %c1_i32_284 : i32
    %c0_285 = arith.constant 0 : index
    %905 = arith.index_cast %904 : i32 to index
    %c0_286 = arith.constant 0 : index
    %906 = vector.load %arg2[%c0_285, %905, %c0_286] : memref<1x324x5xf32, #tpu.memory_space<vmem>>, vector<1x16x5xf32>
    %907 = vector.shape_cast %906 : vector<1x16x5xf32> to vector<16x5xf32>
    %908 = vector.extract_strided_slice %907 {offsets = [0, 0], sizes = [16, 4], strides = [1, 1]} : vector<16x5xf32> to vector<16x4xf32>
    %c0_287 = arith.constant 0 : index
    %c0_288 = arith.constant 0 : index
    %c160_289 = arith.constant 160 : index
    %c0_290 = arith.constant 0 : index
    %909 = vector.load %arg8[%c0_287, %c0_288, %c160_289, %c0_290] : memref<1x1x256x128xf32, #tpu.memory_space<vmem>>, vector<1x1x16x4xf32>
    %910 = vector.shape_cast %909 : vector<1x1x16x4xf32> to vector<16x4xf32>
    %911 = arith.addf %910, %908 : vector<16x4xf32>
    %c0_291 = arith.constant 0 : index
    %c0_292 = arith.constant 0 : index
    %c160_293 = arith.constant 160 : index
    %c0_294 = arith.constant 0 : index
    %912 = vector.load %arg8[%c0_291, %c0_292, %c160_293, %c0_294] : memref<1x1x256x128xf32, #tpu.memory_space<vmem>>, vector<1x1x16x4xf32>
    %913 = vector.shape_cast %912 : vector<1x1x16x4xf32> to vector<16x4xf32>
    %914 = vector.shape_cast %911 : vector<16x4xf32> to vector<1x1x16x4xf32>
    tpu.vector_store %arg8[%c0_291, %c0_292, %c160_293, %c0_294], %914 {strides = array<i32>} : memref<1x1x256x128xf32, #tpu.memory_space<vmem>>, vector<1x1x16x4xf32>,
    %c216_i32 = arith.constant 216 : i32
    %915 = arith.addi %1, %c216_i32 : i32
    %c1_i32_295 = arith.constant 1 : i32
    %916 = arith.addi %915, %c1_i32_295 : i32
    %c0_296 = arith.constant 0 : index
    %917 = arith.index_cast %916 : i32 to index
    %c0_297 = arith.constant 0 : index
    %918 = vector.load %arg2[%c0_296, %917, %c0_297] : memref<1x324x5xf32, #tpu.memory_space<vmem>>, vector<1x16x5xf32>
    %919 = vector.shape_cast %918 : vector<1x16x5xf32> to vector<16x5xf32>
    %920 = vector.extract_strided_slice %919 {offsets = [0, 0], sizes = [16, 4], strides = [1, 1]} : vector<16x5xf32> to vector<16x4xf32>
    %c0_298 = arith.constant 0 : index
    %c0_299 = arith.constant 0 : index
    %c176_300 = arith.constant 176 : index
    %c0_301 = arith.constant 0 : index
    %921 = vector.load %arg8[%c0_298, %c0_299, %c176_300, %c0_301] : memref<1x1x256x128xf32, #tpu.memory_space<vmem>>, vector<1x1x16x4xf32>
    %922 = vector.shape_cast %921 : vector<1x1x16x4xf32> to vector<16x4xf32>
    %923 = arith.addf %922, %920 : vector<16x4xf32>
    %c0_302 = arith.constant 0 : index
    %c0_303 = arith.constant 0 : index
    %c176_304 = arith.constant 176 : index
    %c0_305 = arith.constant 0 : index
    %924 = vector.load %arg8[%c0_302, %c0_303, %c176_304, %c0_305] : memref<1x1x256x128xf32, #tpu.memory_space<vmem>>, vector<1x1x16x4xf32>
    %925 = vector.shape_cast %924 : vector<1x1x16x4xf32> to vector<16x4xf32>
    %926 = vector.shape_cast %923 : vector<16x4xf32> to vector<1x1x16x4xf32>
    tpu.vector_store %arg8[%c0_302, %c0_303, %c176_304, %c0_305], %926 {strides = array<i32>} : memref<1x1x256x128xf32, #tpu.memory_space<vmem>>, vector<1x1x16x4xf32>,
    %c234_i32 = arith.constant 234 : i32
    %927 = arith.addi %1, %c234_i32 : i32
    %c1_i32_306 = arith.constant 1 : i32
    %928 = arith.addi %927, %c1_i32_306 : i32
    %c0_307 = arith.constant 0 : index
    %929 = arith.index_cast %928 : i32 to index
    %c0_308 = arith.constant 0 : index
    %930 = vector.load %arg2[%c0_307, %929, %c0_308] : memref<1x324x5xf32, #tpu.memory_space<vmem>>, vector<1x16x5xf32>
    %931 = vector.shape_cast %930 : vector<1x16x5xf32> to vector<16x5xf32>
    %932 = vector.extract_strided_slice %931 {offsets = [0, 0], sizes = [16, 4], strides = [1, 1]} : vector<16x5xf32> to vector<16x4xf32>
    %c0_309 = arith.constant 0 : index
    %c0_310 = arith.constant 0 : index
    %c192_311 = arith.constant 192 : index
    %c0_312 = arith.constant 0 : index
    %933 = vector.load %arg8[%c0_309, %c0_310, %c192_311, %c0_312] : memref<1x1x256x128xf32, #tpu.memory_space<vmem>>, vector<1x1x16x4xf32>
    %934 = vector.shape_cast %933 : vector<1x1x16x4xf32> to vector<16x4xf32>
    %935 = arith.addf %934, %932 : vector<16x4xf32>
    %c0_313 = arith.constant 0 : index
    %c0_314 = arith.constant 0 : index
    %c192_315 = arith.constant 192 : index
    %c0_316 = arith.constant 0 : index
    %936 = vector.load %arg8[%c0_313, %c0_314, %c192_315, %c0_316] : memref<1x1x256x128xf32, #tpu.memory_space<vmem>>, vector<1x1x16x4xf32>
    %937 = vector.shape_cast %936 : vector<1x1x16x4xf32> to vector<16x4xf32>
    %938 = vector.shape_cast %935 : vector<16x4xf32> to vector<1x1x16x4xf32>
    tpu.vector_store %arg8[%c0_313, %c0_314, %c192_315, %c0_316], %938 {strides = array<i32>} : memref<1x1x256x128xf32, #tpu.memory_space<vmem>>, vector<1x1x16x4xf32>,
    %c252_i32 = arith.constant 252 : i32
    %939 = arith.addi %1, %c252_i32 : i32
    %c1_i32_317 = arith.constant 1 : i32
    %940 = arith.addi %939, %c1_i32_317 : i32
    %c0_318 = arith.constant 0 : index
    %941 = arith.index_cast %940 : i32 to index
    %c0_319 = arith.constant 0 : index
    %942 = vector.load %arg2[%c0_318, %941, %c0_319] : memref<1x324x5xf32, #tpu.memory_space<vmem>>, vector<1x16x5xf32>
    %943 = vector.shape_cast %942 : vector<1x16x5xf32> to vector<16x5xf32>
    %944 = vector.extract_strided_slice %943 {offsets = [0, 0], sizes = [16, 4], strides = [1, 1]} : vector<16x5xf32> to vector<16x4xf32>
    %c0_320 = arith.constant 0 : index
    %c0_321 = arith.constant 0 : index
    %c208_322 = arith.constant 208 : index
    %c0_323 = arith.constant 0 : index
    %945 = vector.load %arg8[%c0_320, %c0_321, %c208_322, %c0_323] : memref<1x1x256x128xf32, #tpu.memory_space<vmem>>, vector<1x1x16x4xf32>
    %946 = vector.shape_cast %945 : vector<1x1x16x4xf32> to vector<16x4xf32>
    %947 = arith.addf %946, %944 : vector<16x4xf32>
    %c0_324 = arith.constant 0 : index
    %c0_325 = arith.constant 0 : index
    %c208_326 = arith.constant 208 : index
    %c0_327 = arith.constant 0 : index
    %948 = vector.load %arg8[%c0_324, %c0_325, %c208_326, %c0_327] : memref<1x1x256x128xf32, #tpu.memory_space<vmem>>, vector<1x1x16x4xf32>
    %949 = vector.shape_cast %948 : vector<1x1x16x4xf32> to vector<16x4xf32>
    %950 = vector.shape_cast %947 : vector<16x4xf32> to vector<1x1x16x4xf32>
    tpu.vector_store %arg8[%c0_324, %c0_325, %c208_326, %c0_327], %950 {strides = array<i32>} : memref<1x1x256x128xf32, #tpu.memory_space<vmem>>, vector<1x1x16x4xf32>,
    %c270_i32 = arith.constant 270 : i32
    %951 = arith.addi %1, %c270_i32 : i32
    %c1_i32_328 = arith.constant 1 : i32
    %952 = arith.addi %951, %c1_i32_328 : i32
    %c0_329 = arith.constant 0 : index
    %953 = arith.index_cast %952 : i32 to index
    %c0_330 = arith.constant 0 : index
    %954 = vector.load %arg2[%c0_329, %953, %c0_330] : memref<1x324x5xf32, #tpu.memory_space<vmem>>, vector<1x16x5xf32>
    %955 = vector.shape_cast %954 : vector<1x16x5xf32> to vector<16x5xf32>
    %956 = vector.extract_strided_slice %955 {offsets = [0, 0], sizes = [16, 4], strides = [1, 1]} : vector<16x5xf32> to vector<16x4xf32>
    %c0_331 = arith.constant 0 : index
    %c0_332 = arith.constant 0 : index
    %c224_333 = arith.constant 224 : index
    %c0_334 = arith.constant 0 : index
    %957 = vector.load %arg8[%c0_331, %c0_332, %c224_333, %c0_334] : memref<1x1x256x128xf32, #tpu.memory_space<vmem>>, vector<1x1x16x4xf32>
    %958 = vector.shape_cast %957 : vector<1x1x16x4xf32> to vector<16x4xf32>
    %959 = arith.addf %958, %956 : vector<16x4xf32>
    %c0_335 = arith.constant 0 : index
    %c0_336 = arith.constant 0 : index
    %c224_337 = arith.constant 224 : index
    %c0_338 = arith.constant 0 : index
    %960 = vector.load %arg8[%c0_335, %c0_336, %c224_337, %c0_338] : memref<1x1x256x128xf32, #tpu.memory_space<vmem>>, vector<1x1x16x4xf32>
    %961 = vector.shape_cast %960 : vector<1x1x16x4xf32> to vector<16x4xf32>
    %962 = vector.shape_cast %959 : vector<16x4xf32> to vector<1x1x16x4xf32>
    tpu.vector_store %arg8[%c0_335, %c0_336, %c224_337, %c0_338], %962 {strides = array<i32>} : memref<1x1x256x128xf32, #tpu.memory_space<vmem>>, vector<1x1x16x4xf32>,
    %c288_i32_339 = arith.constant 288 : i32
    %963 = arith.addi %1, %c288_i32_339 : i32
    %c1_i32_340 = arith.constant 1 : i32
    %964 = arith.addi %963, %c1_i32_340 : i32
    %c0_341 = arith.constant 0 : index
    %965 = arith.index_cast %964 : i32 to index
    %c0_342 = arith.constant 0 : index
    %966 = vector.load %arg2[%c0_341, %965, %c0_342] : memref<1x324x5xf32, #tpu.memory_space<vmem>>, vector<1x16x5xf32>
    %967 = vector.shape_cast %966 : vector<1x16x5xf32> to vector<16x5xf32>
    %968 = vector.extract_strided_slice %967 {offsets = [0, 0], sizes = [16, 4], strides = [1, 1]} : vector<16x5xf32> to vector<16x4xf32>
    %c0_343 = arith.constant 0 : index
    %c0_344 = arith.constant 0 : index
    %c240_345 = arith.constant 240 : index
    %c0_346 = arith.constant 0 : index
    %969 = vector.load %arg8[%c0_343, %c0_344, %c240_345, %c0_346] : memref<1x1x256x128xf32, #tpu.memory_space<vmem>>, vector<1x1x16x4xf32>
    %970 = vector.shape_cast %969 : vector<1x1x16x4xf32> to vector<16x4xf32>
    %971 = arith.addf %970, %968 : vector<16x4xf32>
    %c0_347 = arith.constant 0 : index
    %c0_348 = arith.constant 0 : index
    %c240_349 = arith.constant 240 : index
    %c0_350 = arith.constant 0 : index
    %972 = vector.load %arg8[%c0_347, %c0_348, %c240_349, %c0_350] : memref<1x1x256x128xf32, #tpu.memory_space<vmem>>, vector<1x1x16x4xf32>
    %973 = vector.shape_cast %972 : vector<1x1x16x4xf32> to vector<16x4xf32>
    %974 = vector.shape_cast %971 : vector<16x4xf32> to vector<1x1x16x4xf32>
    tpu.vector_store %arg8[%c0_347, %c0_348, %c240_349, %c0_350], %974 {strides = array<i32>} : memref<1x1x256x128xf32, #tpu.memory_space<vmem>>, vector<1x1x16x4xf32>,
    return
  }
  func.func @transform_0(%arg0: i32, %arg1: i32) -> (i32, i32, i32) {
    %c0_i32 = arith.constant 0 : i32
    %c0_i32_0 = arith.constant 0 : i32
    %c0_i32_1 = arith.constant 0 : i32
    return %arg0, %c0_i32, %c0_i32_0 : i32, i32, i32
  }
  func.func @transform_1(%arg0: i32, %arg1: i32) -> (i32, i32) {
    %c0_i32 = arith.constant 0 : i32
    %c0_i32_0 = arith.constant 0 : i32
    %c0_i32_1 = arith.constant 0 : i32
    return %c0_i32, %c0_i32_0 : i32, i32
  }
  func.func @transform_2(%arg0: i32, %arg1: i32) -> (i32, i32) {
    %c0_i32 = arith.constant 0 : i32
    %c0_i32_0 = arith.constant 0 : i32
    %c0_i32_1 = arith.constant 0 : i32
    return %c0_i32, %c0_i32_0 : i32, i32
  }
  func.func @transform_3(%arg0: i32, %arg1: i32) -> (i32, i32) {
    %c0_i32 = arith.constant 0 : i32
    %c0_i32_0 = arith.constant 0 : i32
    %c0_i32_1 = arith.constant 0 : i32
    return %c0_i32, %c0_i32_0 : i32, i32
  }
  func.func @transform_4(%arg0: i32, %arg1: i32) -> (i32, i32) {
    %c0_i32 = arith.constant 0 : i32
    %c0_i32_0 = arith.constant 0 : i32
    %c0_i32_1 = arith.constant 0 : i32
    return %c0_i32, %c0_i32_0 : i32, i32
  }
  func.func @transform_5(%arg0: i32, %arg1: i32) -> (i32, i32) {
    %c0_i32 = arith.constant 0 : i32
    %c0_i32_0 = arith.constant 0 : i32
    %c0_i32_1 = arith.constant 0 : i32
    return %c0_i32, %c0_i32_0 : i32, i32
  }
  func.func @transform_6(%arg0: i32, %arg1: i32) -> (i32, i32, i32, i32) {
    %c0_i32 = arith.constant 0 : i32
    %c0_i32_0 = arith.constant 0 : i32
    %c0_i32_1 = arith.constant 0 : i32
    return %arg0, %arg1, %c0_i32, %c0_i32_0 : i32, i32, i32, i32
  }
}

</mosaic_0001>

<llo_original>
// kernel: tpu_custom_call.1
$region0: #{tpu_custom_call.1}
  #allocation0 [shape = 'u32[]', space=smem, size = 0x4, offset = 0x4, fixed_abs, tag = 'smem constant byte address 0x4 - core index']
  #allocation1 [shape = 'u32[144,128]{1,0:T(1,128)}', space=vmem, size = 0x12000, scoped, tag = 'internal scratch']
  #allocation2 [shape = 'f32[324,128]{1,0:T(8,128)}', space=vmem, size = 0x29000, scoped, tag = 'scratch operand']
  #allocation3 [shape = 'f32[256,128]{1,0:T(8,128)}', space=vmem, size = 0x20000, scoped, tag = 'scratch operand']
  %s0 = inlined_call_operand.vmem [shape: f32[2,324,5], index: 0, kind: input, shape index: {}]
  %s1 = inlined_call_operand.vmem [shape: f32[5,128], index: 1, kind: input, shape index: {}]
  %s2 = inlined_call_operand.vmem [shape: f32[9,128], index: 2, kind: input, shape index: {}]
  %s3 = inlined_call_operand.vmem [shape: f32[1,128], index: 3, kind: input, shape index: {}]
  %s4 = inlined_call_operand.vmem [shape: f32[128,128], index: 4, kind: input, shape index: {}]
  %s5 = inlined_call_operand.vmem [shape: f32[1,128], index: 5, kind: input, shape index: {}]
  %s6 = inlined_call_operand.hbm [shape: f32[2,1,256,128], index: 6, kind: output, shape index: {}]
  %s7 = sld [smem:[#allocation0]]
  $region57: #{tpu_custom_call.1} parent=0
    _
  %s9 = ssub.s32 1, %s7
  %s10 = scalar_select 0, %s9, %s7
  $region1: #{tpu_custom_call.1} parent=0
    #allocation4 [shape = 'u8[262144]{0}', space=vmem, size = 0x40000, scoped, tag = 'output window, operand 0']
    #allocation5 [shape = 's32[2]{0}', space=sflag, size = 0x8, scoped, tag = 'scoped memory for tpu_custom_call.1']
    %11 = vsyncpa [#allocation5], 0
    %s12 = scalar_lea.sflag [#allocation5], 1
    %13 = vsyncpa %s12, 0
    loop: start=0, step=1, limit=4
    $region2: #{tpu_custom_call.1} parent=1 // loop_pre_header
      _
    $region3: #{tpu_custom_call.1} parent=1 // loop_header
      %s15 = sphi 0, %s19
      %p16 = scmp.ge.s32.totalorder %s15, 4
      %s22 = sphi 0, %s34
      %s23 = sphi 0, %s30
      %s24 = sphi 0, %s22
      %s25 = sphi 0, %s23
      %s26 = sphi 0, %s24
      %s27 = sphi 0, %s25
      %s37 = sphi 0, %s39
      %s40 = sphi 0, %s37
      %s41 = sphi 0, %s40
      %s57 = sphi 0, %s41
      %s61 = sphi 0, %s61
      %s63 = sphi 0, %s61
      %s64 = sphi 0, %s63
      %s78 = sphi 0, %s64
      %s82 = sphi 0, %s82
      %s84 = sphi 0, %s82
      %s85 = sphi 0, %s84
      %s99 = sphi 0, %s85
      %s103 = sphi 0, %s103
      %s105 = sphi 0, %s103
      %s106 = sphi 0, %s105
      %s120 = sphi 0, %s106
      %s124 = sphi 0, %s124
      %s126 = sphi 0, %s124
      %s127 = sphi 0, %s126
      %s141 = sphi 0, %s127
      %s145 = sphi 0, %s145
      %s147 = sphi 0, %s145
      %s148 = sphi 0, %s147
      %s162 = sphi 0, %s148
      %s170 = sphi 0, %s172
      %s173 = sphi 0, %s170
      %s174 = sphi 0, %s173
      %s190 = sphi 0, %s174
    $region4: #{tpu_custom_call.1} parent=1 // loop_header_branch
      %18 = sbr.rel (%p16) target = $region8
    $region5: #{tpu_custom_call.1} parent=1 // loop_body
      %s20 = ssub.s32 %s15, 1
      %s21 = ssub.s32 %s15, 2
      %s28 = sadd.s32 1, %s23
      %p29 = scmp.ge.s32.totalorder %s28, 1
      %s30 = scalar_select %p29, 0, %s28
      %s31 = sadd.s32 1, %s22
      %s32 = scalar_select %p29, %s31, %s22
      %p33 = scmp.ge.s32.totalorder %s32, 2
      %s34 = scalar_select %p33, 0, %s32
      %s35 = ssub.s32 %s22, %s34
      %p36 = scmp.eq.s32.totalorder %s35, 0
      %s38 = sadd.s32 %s37, 1
      %s39 = scalar_select %p36, %s37, %s38
      %p42 = pneg %p36
      %p43 = scmp.eq.s32.totalorder %s15, 1
      %p44 = por %p42, %p43
      %p45 = scmp.ne.s32.totalorder %s37, %s40
      %p46 = scmp.eq.s32.totalorder %s15, 0
      %p47 = por %p45, %p46
      %p48 = scmp.ne.s32.totalorder %s37, %s40
      %p49 = scmp.eq.s32.totalorder %s20, 1
      %p50 = por %p48, %p49
      %p51 = scmp.ne.s32.totalorder %s40, %s41
      %p52 = scmp.eq.s32.totalorder %s20, 0
      %p53 = por %p51, %p52
      %p54 = scmp.ne.s32.totalorder %s40, %s41
      %p55 = scmp.eq.s32.totalorder %s21, 1
      %p56 = por %p54, %p55
      %p58 = scmp.ne.s32.totalorder %s41, %s57
      %p59 = scmp.eq.s32.totalorder %s21, 0
      %p60 = por %p58, %p59
      %s62 = sadd.s32 %s61, 1
      %p65 = scmp.eq.s32.totalorder %s15, 1
      %p66 = scmp.ne.s32.totalorder %s61, %s63
      %p67 = scmp.eq.s32.totalorder %s15, 0
      %p68 = por %p66, %p67
      %p69 = scmp.ne.s32.totalorder %s61, %s63
      %p70 = scmp.eq.s32.totalorder %s20, 1
      %p71 = por %p69, %p70
      %p72 = scmp.ne.s32.totalorder %s63, %s64
      %p73 = scmp.eq.s32.totalorder %s20, 0
      %p74 = por %p72, %p73
      %p75 = scmp.ne.s32.totalorder %s63, %s64
      %p76 = scmp.eq.s32.totalorder %s21, 1
      %p77 = por %p75, %p76
      %p79 = scmp.ne.s32.totalorder %s64, %s78
      %p80 = scmp.eq.s32.totalorder %s21, 0
      %p81 = por %p79, %p80
      %s83 = sadd.s32 %s82, 1
      %p86 = scmp.eq.s32.totalorder %s15, 1
      %p87 = scmp.ne.s32.totalorder %s82, %s84
      %p88 = scmp.eq.s32.totalorder %s15, 0
      %p89 = por %p87, %p88
      %p90 = scmp.ne.s32.totalorder %s82, %s84
      %p91 = scmp.eq.s32.totalorder %s20, 1
      %p92 = por %p90, %p91
      %p93 = scmp.ne.s32.totalorder %s84, %s85
      %p94 = scmp.eq.s32.totalorder %s20, 0
      %p95 = por %p93, %p94
      %p96 = scmp.ne.s32.totalorder %s84, %s85
      %p97 = scmp.eq.s32.totalorder %s21, 1
      %p98 = por %p96, %p97
      %p100 = scmp.ne.s32.totalorder %s85, %s99
      %p101 = scmp.eq.s32.totalorder %s21, 0
      %p102 = por %p100, %p101
      %s104 = sadd.s32 %s103, 1
      %p107 = scmp.eq.s32.totalorder %s15, 1
      %p108 = scmp.ne.s32.totalorder %s103, %s105
      %p109 = scmp.eq.s32.totalorder %s15, 0
      %p110 = por %p108, %p109
      %p111 = scmp.ne.s32.totalorder %s103, %s105
      %p112 = scmp.eq.s32.totalorder %s20, 1
      %p113 = por %p111, %p112
      %p114 = scmp.ne.s32.totalorder %s105, %s106
      %p115 = scmp.eq.s32.totalorder %s20, 0
      %p116 = por %p114, %p115
      %p117 = scmp.ne.s32.totalorder %s105, %s106
      %p118 = scmp.eq.s32.totalorder %s21, 1
      %p119 = por %p117, %p118
      %p121 = scmp.ne.s32.totalorder %s106, %s120
      %p122 = scmp.eq.s32.totalorder %s21, 0
      %p123 = por %p121, %p122
      %s125 = sadd.s32 %s124, 1
      %p128 = scmp.eq.s32.totalorder %s15, 1
      %p129 = scmp.ne.s32.totalorder %s124, %s126
      %p130 = scmp.eq.s32.totalorder %s15, 0
      %p131 = por %p129, %p130
      %p132 = scmp.ne.s32.totalorder %s124, %s126
      %p133 = scmp.eq.s32.totalorder %s20, 1
      %p134 = por %p132, %p133
      %p135 = scmp.ne.s32.totalorder %s126, %s127
      %p136 = scmp.eq.s32.totalorder %s20, 0
      %p137 = por %p135, %p136
      %p138 = scmp.ne.s32.totalorder %s126, %s127
      %p139 = scmp.eq.s32.totalorder %s21, 1
      %p140 = por %p138, %p139
      %p142 = scmp.ne.s32.totalorder %s127, %s141
      %p143 = scmp.eq.s32.totalorder %s21, 0
      %p144 = por %p142, %p143
      %s146 = sadd.s32 %s145, 1
      %p149 = scmp.eq.s32.totalorder %s15, 1
      %p150 = scmp.ne.s32.totalorder %s145, %s147
      %p151 = scmp.eq.s32.totalorder %s15, 0
      %p152 = por %p150, %p151
      %p153 = scmp.ne.s32.totalorder %s145, %s147
      %p154 = scmp.eq.s32.totalorder %s20, 1
      %p155 = por %p153, %p154
      %p156 = scmp.ne.s32.totalorder %s147, %s148
      %p157 = scmp.eq.s32.totalorder %s20, 0
      %p158 = por %p156, %p157
      %p159 = scmp.ne.s32.totalorder %s147, %s148
      %p160 = scmp.eq.s32.totalorder %s21, 1
      %p161 = por %p159, %p160
      %p163 = scmp.ne.s32.totalorder %s148, %s162
      %p164 = scmp.eq.s32.totalorder %s21, 0
      %p165 = por %p163, %p164
      %s166 = ssub.s32 %s22, %s34
      %s167 = ssub.s32 %s23, %s30
      %s168 = sor.u32 %s166, %s167
      %p169 = scmp.eq.s32.totalorder %s168, 0
      %s171 = sadd.s32 %s170, 1
      %s172 = scalar_select %p169, %s170, %s171
      %p175 = pneg %p169
      %p176 = scmp.eq.s32.totalorder %s15, 1
      %p177 = por %p175, %p176
      %p178 = scmp.ne.s32.totalorder %s170, %s173
      %p179 = scmp.eq.s32.totalorder %s15, 0
      %p180 = por %p178, %p179
      %p181 = scmp.ne.s32.totalorder %s170, %s173
      %p182 = scmp.eq.s32.totalorder %s20, 1
      %p183 = por %p181, %p182
      %p184 = scmp.ne.s32.totalorder %s173, %s174
      %p185 = scmp.eq.s32.totalorder %s20, 0
      %p186 = por %p184, %p185
      %p187 = scmp.ne.s32.totalorder %s173, %s174
      %p188 = scmp.eq.s32.totalorder %s21, 1
      %p189 = por %p187, %p188
      %p191 = scmp.ne.s32.totalorder %s174, %s190
      %p192 = scmp.eq.s32.totalorder %s21, 0
      %p193 = por %p191, %p192
      %p194 = scmp.le.s32.totalorder 1, %s15
      %p195 = scmp.lt.s32.totalorder %s15, 3
      %p196 = pnand %p194, %p195
      %p197 = pneg %p196
      // Predicated region
      $region9: #{tpu_custom_call.1} parent=5 // pred_check
        _
      $region10: #{tpu_custom_call.1} parent=5 // pred_check_branch
        %199 = sbr.rel (%p196) target = $region12
      $region11: #{tpu_custom_call.1} parent=5 // pred_region
        %s200 = ssub.s32 %s15, 1
        // Predicated region
        $region13: #{tpu_custom_call.1} parent=11 // pred_check
          %p201 = pneg %p74
        $region14: #{tpu_custom_call.1} parent=11 // pred_check_branch
          %203 = sbr.rel (%p201) target = $region16
        $region15: #{tpu_custom_call.1} parent=11 // pred_region
          _
        $region16: #{tpu_custom_call.1} parent=11 // pred_fallthru
          _
        // Predicated region
        $region17: #{tpu_custom_call.1} parent=11 // pred_check
          %p204 = pneg %p95
        $region18: #{tpu_custom_call.1} parent=11 // pred_check_branch
          %206 = sbr.rel (%p204) target = $region20
        $region19: #{tpu_custom_call.1} parent=11 // pred_region
          _
        $region20: #{tpu_custom_call.1} parent=11 // pred_fallthru
          _
        // Predicated region
        $region21: #{tpu_custom_call.1} parent=11 // pred_check
          %p207 = pneg %p116
        $region22: #{tpu_custom_call.1} parent=11 // pred_check_branch
          %209 = sbr.rel (%p207) target = $region24
        $region23: #{tpu_custom_call.1} parent=11 // pred_region
          _
        $region24: #{tpu_custom_call.1} parent=11 // pred_fallthru
          _
        // Predicated region
        $region25: #{tpu_custom_call.1} parent=11 // pred_check
          %p210 = pneg %p137
        $region26: #{tpu_custom_call.1} parent=11 // pred_check_branch
          %212 = sbr.rel (%p210) target = $region28
        $region27: #{tpu_custom_call.1} parent=11 // pred_region
          _
        $region28: #{tpu_custom_call.1} parent=11 // pred_fallthru
          _
        // Predicated region
        $region29: #{tpu_custom_call.1} parent=11 // pred_check
          %p213 = pneg %p158
        $region30: #{tpu_custom_call.1} parent=11 // pred_check_branch
          %215 = sbr.rel (%p213) target = $region32
        $region31: #{tpu_custom_call.1} parent=11 // pred_region
          _
        $region32: #{tpu_custom_call.1} parent=11 // pred_fallthru
          _
      $region12: #{tpu_custom_call.1} parent=5 // pred_fallthru
        _
      %p216 = scmp.lt.s32.totalorder %s15, 2
      // Predicated region
      $region33: #{tpu_custom_call.1} parent=5 // pred_check
        %p217 = pneg %p216
      $region34: #{tpu_custom_call.1} parent=5 // pred_check_branch
        %219 = sbr.rel (%p217) target = $region36
      $region35: #{tpu_custom_call.1} parent=5 // pred_region
        // Predicated region
        $region37: #{tpu_custom_call.1} parent=35 // pred_check
          %p220 = pneg %p47
        $region38: #{tpu_custom_call.1} parent=35 // pred_check_branch
          %222 = sbr.rel (%p220) target = $region40
        $region39: #{tpu_custom_call.1} parent=35 // pred_region
          %p223 = scmp.lt.s32.totalorder %s22, 1
          %s224 = scalar_select %p223, %s22, 1
          %s225 = smul.addr %s224, 41
          %s226 = smul.addr %s225, 8
          %s227 = scalar_lea.vmem %s0, %s226
        $region40: #{tpu_custom_call.1} parent=35 // pred_fallthru
          _
      $region36: #{tpu_custom_call.1} parent=5 // pred_fallthru
        _
      %p228 = scmp.le.s32.totalorder 1, %s15
      %p229 = scmp.lt.s32.totalorder %s15, 3
      %p230 = pnand %p228, %p229
      %p231 = pneg %p230
      // Predicated region
      $region41: #{tpu_custom_call.1} parent=5 // pred_check
        _
      $region42: #{tpu_custom_call.1} parent=5 // pred_check_branch
        %233 = sbr.rel (%p230) target = $region44
      $region43: #{tpu_custom_call.1} parent=5 // pred_region
        %s234 = ssub.s32 %s15, 1
        %p235 = scmp.lt.s32.totalorder %s24, 1
        %s236 = scalar_select %p235, %s24, 1
        %s237 = smul.addr %s236, 41
        %s238 = smul.addr %s237, 8
        %s239 = scalar_lea.vmem %s0, %s238
        %p240 = pneg %p53
        %p241 = pneg %p50
        %p242 = pneg %p74
        %p243 = pneg %p71
        %p244 = pneg %p95
        %p245 = pneg %p92
        %p246 = pneg %p116
        %p247 = pneg %p113
        %p248 = pneg %p137
        %p249 = pneg %p134
        %p250 = pneg %p158
        %p251 = pneg %p155
        %p252 = pneg %p186
        %p253 = pneg %p183
        %s254 = sand.u32 %s173, 1
        %s255 = scalar_lea.sflag [#allocation5], %s254
        %s256 = sand.u32 %s173, 1
        %s257 = smul.addr %s256, 256
        %s258 = scalar_lea.vmem [#allocation4], %s257
        %p259 = scmp.lt.s32.totalorder %s24, 1
        %s260 = scalar_select %p259, %s24, 1
        %s261 = smul.addr %s260, 41
        %s262 = smul.addr %s261, 8
        %s263 = scalar_lea.vmem %s0, %s262
        %s264 = smul.u32 %s25, 288
        %s265 = scalar_lea.vmem %s263, %s264
        %v266 = vld [vmem:[%s265] sm:$0xff]
        %v267 = vld [vmem:[%s265 + $0x8] sm:$0xff]
        %v268 = vld [vmem:[%s265 + $0x10] sm:$0xff]
        %v269 = vld [vmem:[%s265 + $0x18] sm:$0xff]
        %v270 = vld [vmem:[%s265 + $0x20] sm:$0xff]
        %v271 = vld [vmem:[%s265 + $0x28] sm:$0xff]
        %v272 = vld [vmem:[%s265 + $0x30] sm:$0xff]
        %v273 = vld [vmem:[%s265 + $0x38] sm:$0xff]
        %v274 = vld [vmem:[%s265 + $0x40] sm:$0xff]
        %v275 = vld [vmem:[%s265 + $0x48] sm:$0xff]
        %v276 = vld [vmem:[%s265 + $0x50] sm:$0xff]
        %v277 = vld [vmem:[%s265 + $0x58] sm:$0xff]
        %v278 = vld [vmem:[%s265 + $0x60] sm:$0xff]
        %v279 = vld [vmem:[%s265 + $0x68] sm:$0xff]
        %v280 = vld [vmem:[%s265 + $0x70] sm:$0xff]
        %v281 = vld [vmem:[%s265 + $0x78] sm:$0xff]
        %v282 = vld [vmem:[%s265 + $0x80] sm:$0xff]
        %v283 = vld [vmem:[%s265 + $0x88] sm:$0xff]
        %v284 = vld [vmem:[%s265 + $0x90] sm:$0xff]
        %v285 = vld [vmem:[%s265 + $0x98] sm:$0xff]
        %v286 = vld [vmem:[%s265 + $0xa0] sm:$0xff]
        %v287 = vld [vmem:[%s265 + $0xa8] sm:$0xff]
        %v288 = vld [vmem:[%s265 + $0xb0] sm:$0xff]
        %v289 = vld [vmem:[%s265 + $0xb8] sm:$0xff]
        %v290 = vld [vmem:[%s265 + $0xc0] sm:$0xff]
        %v291 = vld [vmem:[%s265 + $0xc8] sm:$0xff]
        %v292 = vld [vmem:[%s265 + $0xd0] sm:$0xff]
        %v293 = vld [vmem:[%s265 + $0xd8] sm:$0xff]
        %v294 = vld [vmem:[%s265 + $0xe0] sm:$0xff]
        %v295 = vld [vmem:[%s265 + $0xe8] sm:$0xff]
        %v296 = vld [vmem:[%s265 + $0xf0] sm:$0xff]
        %v297 = vld [vmem:[%s265 + $0xf8] sm:$0xff]
        %v298 = vld [vmem:[%s265 + $0x100] sm:$0xff]
        %v299 = vld [vmem:[%s265 + $0x108] sm:$0xff]
        %v300 = vld [vmem:[%s265 + $0x110] sm:$0xff]
        %v301 = vld [vmem:[%s265 + $0x118] sm:$0xff]
        %v302 = vld [vmem:[%s265 + $0x120] sm:$0xff]
        %v303 = vld [vmem:[%s265 + $0x128] sm:$0xff]
        %v304 = vld [vmem:[%s265 + $0x130] sm:$0xff]
        %v305 = vld [vmem:[%s265 + $0x138] sm:$0xff]
        %v306 = vld [vmem:[%s265 + $0x140] sm:$0xf]
        %v307 = vld [vmem:[%s1] sm:$0x1f]
        %vm308 = vcmask 39936
        %v310 = vsel %vm308, %v266, 0
        %v313 = vsel %vm308, %v267, 0
        %v316 = vsel %vm308, %v268, 0
        %v319 = vsel %vm308, %v269, 0
        %v322 = vsel %vm308, %v270, 0
        %v325 = vsel %vm308, %v271, 0
        %v328 = vsel %vm308, %v272, 0
        %v331 = vsel %vm308, %v273, 0
        %v334 = vsel %vm308, %v274, 0
        %v337 = vsel %vm308, %v275, 0
        %v340 = vsel %vm308, %v276, 0
        %v343 = vsel %vm308, %v277, 0
        %v346 = vsel %vm308, %v278, 0
        %v349 = vsel %vm308, %v279, 0
        %v352 = vsel %vm308, %v280, 0
        %v355 = vsel %vm308, %v281, 0
        %v358 = vsel %vm308, %v282, 0
        %v361 = vsel %vm308, %v283, 0
        %v364 = vsel %vm308, %v284, 0
        %v367 = vsel %vm308, %v285, 0
        %v370 = vsel %vm308, %v286, 0
        %v373 = vsel %vm308, %v287, 0
        %v376 = vsel %vm308, %v288, 0
        %v379 = vsel %vm308, %v289, 0
        %v382 = vsel %vm308, %v290, 0
        %v385 = vsel %vm308, %v291, 0
        %v388 = vsel %vm308, %v292, 0
        %v391 = vsel %vm308, %v293, 0
        %v394 = vsel %vm308, %v294, 0
        %v397 = vsel %vm308, %v295, 0
        %v400 = vsel %vm308, %v296, 0
        %v403 = vsel %vm308, %v297, 0
        %v406 = vsel %vm308, %v298, 0
        %v409 = vsel %vm308, %v299, 0
        %v412 = vsel %vm308, %v300, 0
        %v415 = vsel %vm308, %v301, 0
        %v418 = vsel %vm308, %v302, 0
        %v421 = vsel %vm308, %v303, 0
        %v424 = vsel %vm308, %v304, 0
        %v427 = vsel %vm308, %v305, 0
        %v430 = vsel %vm308, %v306, 0
        %vm432 = vcmask 1044480
        %v434 = vsel %vm432, %v307, 0
        %436 = vmatprep.subr.mxu0 0.0
        %437 = vmatpush1.msra.mxu0 %v434
        %438 = vmatprep.subr.mxu0 0.0
        %439 = vmatpush1.msra.mxu0 0.0
        %440 = vmatprep.subr.mxu0 0.0
        %441 = vmatpush1.msra.mxu0 0.0
        %442 = vmatprep.subr.mxu0 0.0
        %443 = vmatpush1.msra.mxu0 0.0
        %444 = vmatprep.subr.mxu0 0.0
        %445 = vmatpush1.msra.mxu0 0.0
        %446 = vmatprep.subr.mxu0 0.0
        %447 = vmatpush1.msra.mxu0 0.0
        %448 = vmatprep.subr.mxu0 0.0
        %449 = vmatpush1.msra.mxu0 0.0
        %450 = vmatprep.subr.mxu0 0.0
        %451 = vmatpush1.msra.mxu0 0.0
        %452 = vmatprep.subr.mxu0 0.0
        %453 = vmatpush1.msra.mxu0 0.0
        %454 = vmatprep.subr.mxu0 0.0
        %455 = vmatpush1.msra.mxu0 0.0
        %456 = vmatprep.subr.mxu0 0.0
        %457 = vmatpush1.msra.mxu0 0.0
        %458 = vmatprep.subr.mxu0 0.0
        %459 = vmatpush1.msra.mxu0 0.0
        %460 = vmatprep.subr.mxu0 0.0
        %461 = vmatpush1.msra.mxu0 0.0
        %462 = vmatprep.subr.mxu0 0.0
        %463 = vmatpush1.msra.mxu0 0.0
        %464 = vmatprep.subr.mxu0 0.0
        %465 = vmatpush1.msra.mxu0 0.0
        %466 = vmatprep.subr.mxu0 0.0
        %467 = vmatpush1.msra.mxu0 0.0
        %468 = vmatprep.subr.mxu0 0.0
        %469 = vmatpush1.msra.mxu0 0.0
        %470 = vmatprep.subr.mxu0 0.0
        %471 = vmatpush1.msra.mxu0 0.0
        %472 = vmatprep.subr.mxu0 0.0
        %473 = vmatpush1.msra.mxu0 0.0
        %474 = vmatprep.subr.mxu0 0.0
        %475 = vmatpush1.msra.mxu0 0.0
        %476 = vmatprep.subr.mxu0 0.0
        %477 = vmatpush1.msra.mxu0 0.0
        %478 = vmatprep.subr.mxu0 0.0
        %479 = vmatpush1.msra.mxu0 0.0
        %480 = vmatprep.subr.mxu0 0.0
        %481 = vmatpush1.msra.mxu0 0.0
        %482 = vmatprep.subr.mxu0 0.0
        %483 = vmatpush1.msra.mxu0 0.0
        %484 = vmatprep.subr.mxu0 0.0
        %485 = vmatpush1.msra.mxu0 0.0
        %486 = vmatprep.subr.mxu0 0.0
        %487 = vmatpush1.msra.mxu0 0.0
        %488 = vmatprep.subr.mxu0 0.0
        %489 = vmatpush1.msra.mxu0 0.0
        %490 = vmatprep.subr.mxu0 0.0
        %491 = vmatpush1.msra.mxu0 0.0
        %492 = vmatprep.subr.mxu0 0.0
        %493 = vmatpush1.msra.mxu0 0.0
        %494 = vmatprep.subr.mxu0 0.0
        %495 = vmatpush1.msra.mxu0 0.0
        %496 = vmatprep.subr.mxu0 0.0
        %497 = vmatpush1.msra.mxu0 0.0
        %498 = vmatprep.subr.mxu0 0.0
        %499 = vmatpush1.msra.mxu0 0.0
        %500 = vmatprep.mubr.f32.mxu0 0.0
        %501 = vmatmul.mubr.f32.gmra.mrb[0].mxu0 %v310
        %v502 = vpop.f32.mrb[0].mxu0
        %v503 = vadd.f32 0.0, %v502
        %v504 = vpop.f32.mrb[0].mxu0
        %505 = vmatprep.mubr.f32.mxu0 0.0
        %506 = vmatmul.mubr.f32.gmra.mrb[0].mxu0 %v313
        %v507 = vpop.f32.mrb[0].mxu0
        %v508 = vadd.f32 0.0, %v507
        %v509 = vpop.f32.mrb[0].mxu0
        %510 = vmatprep.mubr.f32.mxu0 0.0
        %511 = vmatmul.mubr.f32.gmra.mrb[0].mxu0 %v316
        %v512 = vpop.f32.mrb[0].mxu0
        %v513 = vadd.f32 0.0, %v512
        %v514 = vpop.f32.mrb[0].mxu0
        %515 = vmatprep.mubr.f32.mxu0 0.0
        %516 = vmatmul.mubr.f32.gmra.mrb[0].mxu0 %v319
        %v517 = vpop.f32.mrb[0].mxu0
        %v518 = vadd.f32 0.0, %v517
        %v519 = vpop.f32.mrb[0].mxu0
        %520 = vmatprep.mubr.f32.mxu0 0.0
        %521 = vmatmul.mubr.f32.gmra.mrb[0].mxu0 %v322
        %v522 = vpop.f32.mrb[0].mxu0
        %v523 = vadd.f32 0.0, %v522
        %v524 = vpop.f32.mrb[0].mxu0
        %525 = vmatprep.mubr.f32.mxu0 0.0
        %526 = vmatmul.mubr.f32.gmra.mrb[0].mxu0 %v325
        %v527 = vpop.f32.mrb[0].mxu0
        %v528 = vadd.f32 0.0, %v527
        %v529 = vpop.f32.mrb[0].mxu0
        %530 = vmatprep.mubr.f32.mxu0 0.0
        %531 = vmatmul.mubr.f32.gmra.mrb[0].mxu0 %v328
        %v532 = vpop.f32.mrb[0].mxu0
        %v533 = vadd.f32 0.0, %v532
        %v534 = vpop.f32.mrb[0].mxu0
        %535 = vmatprep.mubr.f32.mxu0 0.0
        %536 = vmatmul.mubr.f32.gmra.mrb[0].mxu0 %v331
        %v537 = vpop.f32.mrb[0].mxu0
        %v538 = vadd.f32 0.0, %v537
        %v539 = vpop.f32.mrb[0].mxu0
        %540 = vmatprep.mubr.f32.mxu0 0.0
        %541 = vmatmul.mubr.f32.gmra.mrb[0].mxu0 %v334
        %v542 = vpop.f32.mrb[0].mxu0
        %v543 = vadd.f32 0.0, %v542
        %v544 = vpop.f32.mrb[0].mxu0
        %545 = vmatprep.mubr.f32.mxu0 0.0
        %546 = vmatmul.mubr.f32.gmra.mrb[0].mxu0 %v337
        %v547 = vpop.f32.mrb[0].mxu0
        %v548 = vadd.f32 0.0, %v547
        %v549 = vpop.f32.mrb[0].mxu0
        %550 = vmatprep.mubr.f32.mxu0 0.0
        %551 = vmatmul.mubr.f32.gmra.mrb[0].mxu0 %v340
        %v552 = vpop.f32.mrb[0].mxu0
        %v553 = vadd.f32 0.0, %v552
        %v554 = vpop.f32.mrb[0].mxu0
        %555 = vmatprep.mubr.f32.mxu0 0.0
        %556 = vmatmul.mubr.f32.gmra.mrb[0].mxu0 %v343
        %v557 = vpop.f32.mrb[0].mxu0
        %v558 = vadd.f32 0.0, %v557
        %v559 = vpop.f32.mrb[0].mxu0
        %560 = vmatprep.mubr.f32.mxu0 0.0
        %561 = vmatmul.mubr.f32.gmra.mrb[0].mxu0 %v346
        %v562 = vpop.f32.mrb[0].mxu0
        %v563 = vadd.f32 0.0, %v562
        %v564 = vpop.f32.mrb[0].mxu0
        %565 = vmatprep.mubr.f32.mxu0 0.0
        %566 = vmatmul.mubr.f32.gmra.mrb[0].mxu0 %v349
        %v567 = vpop.f32.mrb[0].mxu0
        %v568 = vadd.f32 0.0, %v567
        %v569 = vpop.f32.mrb[0].mxu0
        %570 = vmatprep.mubr.f32.mxu0 0.0
        %571 = vmatmul.mubr.f32.gmra.mrb[0].mxu0 %v352
        %v572 = vpop.f32.mrb[0].mxu0
        %v573 = vadd.f32 0.0, %v572
        %v574 = vpop.f32.mrb[0].mxu0
        %575 = vmatprep.mubr.f32.mxu0 0.0
        %576 = vmatmul.mubr.f32.gmra.mrb[0].mxu0 %v355
        %v577 = vpop.f32.mrb[0].mxu0
        %v578 = vadd.f32 0.0, %v577
        %v579 = vpop.f32.mrb[0].mxu0
        %580 = vmatprep.mubr.f32.mxu0 0.0
        %581 = vmatmul.mubr.f32.gmra.mrb[0].mxu0 %v358
        %v582 = vpop.f32.mrb[0].mxu0
        %v583 = vadd.f32 0.0, %v582
        %v584 = vpop.f32.mrb[0].mxu0
        %585 = vmatprep.mubr.f32.mxu0 0.0
        %586 = vmatmul.mubr.f32.gmra.mrb[0].mxu0 %v361
        %v587 = vpop.f32.mrb[0].mxu0
        %v588 = vadd.f32 0.0, %v587
        %v589 = vpop.f32.mrb[0].mxu0
        %590 = vmatprep.mubr.f32.mxu0 0.0
        %591 = vmatmul.mubr.f32.gmra.mrb[0].mxu0 %v364
        %v592 = vpop.f32.mrb[0].mxu0
        %v593 = vadd.f32 0.0, %v592
        %v594 = vpop.f32.mrb[0].mxu0
        %595 = vmatprep.mubr.f32.mxu0 0.0
        %596 = vmatmul.mubr.f32.gmra.mrb[0].mxu0 %v367
        %v597 = vpop.f32.mrb[0].mxu0
        %v598 = vadd.f32 0.0, %v597
        %v599 = vpop.f32.mrb[0].mxu0
        %600 = vmatprep.mubr.f32.mxu0 0.0
        %601 = vmatmul.mubr.f32.gmra.mrb[0].mxu0 %v370
        %v602 = vpop.f32.mrb[0].mxu0
        %v603 = vadd.f32 0.0, %v602
        %v604 = vpop.f32.mrb[0].mxu0
        %605 = vmatprep.mubr.f32.mxu0 0.0
        %606 = vmatmul.mubr.f32.gmra.mrb[0].mxu0 %v373
        %v607 = vpop.f32.mrb[0].mxu0
        %v608 = vadd.f32 0.0, %v607
        %v609 = vpop.f32.mrb[0].mxu0
        %610 = vmatprep.mubr.f32.mxu0 0.0
        %611 = vmatmul.mubr.f32.gmra.mrb[0].mxu0 %v376
        %v612 = vpop.f32.mrb[0].mxu0
        %v613 = vadd.f32 0.0, %v612
        %v614 = vpop.f32.mrb[0].mxu0
        %615 = vmatprep.mubr.f32.mxu0 0.0
        %616 = vmatmul.mubr.f32.gmra.mrb[0].mxu0 %v379
        %v617 = vpop.f32.mrb[0].mxu0
        %v618 = vadd.f32 0.0, %v617
        %v619 = vpop.f32.mrb[0].mxu0
        %620 = vmatprep.mubr.f32.mxu0 0.0
        %621 = vmatmul.mubr.f32.gmra.mrb[0].mxu0 %v382
        %v622 = vpop.f32.mrb[0].mxu0
        %v623 = vadd.f32 0.0, %v622
        %v624 = vpop.f32.mrb[0].mxu0
        %625 = vmatprep.mubr.f32.mxu0 0.0
        %626 = vmatmul.mubr.f32.gmra.mrb[0].mxu0 %v385
        %v627 = vpop.f32.mrb[0].mxu0
        %v628 = vadd.f32 0.0, %v627
        %v629 = vpop.f32.mrb[0].mxu0
        %630 = vmatprep.mubr.f32.mxu0 0.0
        %631 = vmatmul.mubr.f32.gmra.mrb[0].mxu0 %v388
        %v632 = vpop.f32.mrb[0].mxu0
        %v633 = vadd.f32 0.0, %v632
        %v634 = vpop.f32.mrb[0].mxu0
        %635 = vmatprep.mubr.f32.mxu0 0.0
        %636 = vmatmul.mubr.f32.gmra.mrb[0].mxu0 %v391
        %v637 = vpop.f32.mrb[0].mxu0
        %v638 = vadd.f32 0.0, %v637
        %v639 = vpop.f32.mrb[0].mxu0
        %640 = vmatprep.mubr.f32.mxu0 0.0
        %641 = vmatmul.mubr.f32.gmra.mrb[0].mxu0 %v394
        %v642 = vpop.f32.mrb[0].mxu0
        %v643 = vadd.f32 0.0, %v642
        %v644 = vpop.f32.mrb[0].mxu0
        %645 = vmatprep.mubr.f32.mxu0 0.0
        %646 = vmatmul.mubr.f32.gmra.mrb[0].mxu0 %v397
        %v647 = vpop.f32.mrb[0].mxu0
        %v648 = vadd.f32 0.0, %v647
        %v649 = vpop.f32.mrb[0].mxu0
        %650 = vmatprep.mubr.f32.mxu0 0.0
        %651 = vmatmul.mubr.f32.gmra.mrb[0].mxu0 %v400
        %v652 = vpop.f32.mrb[0].mxu0
        %v653 = vadd.f32 0.0, %v652
        %v654 = vpop.f32.mrb[0].mxu0
        %655 = vmatprep.mubr.f32.mxu0 0.0
        %656 = vmatmul.mubr.f32.gmra.mrb[0].mxu0 %v403
        %v657 = vpop.f32.mrb[0].mxu0
        %v658 = vadd.f32 0.0, %v657
        %v659 = vpop.f32.mrb[0].mxu0
        %660 = vmatprep.mubr.f32.mxu0 0.0
        %661 = vmatmul.mubr.f32.gmra.mrb[0].mxu0 %v406
        %v662 = vpop.f32.mrb[0].mxu0
        %v663 = vadd.f32 0.0, %v662
        %v664 = vpop.f32.mrb[0].mxu0
        %665 = vmatprep.mubr.f32.mxu0 0.0
        %666 = vmatmul.mubr.f32.gmra.mrb[0].mxu0 %v409
        %v667 = vpop.f32.mrb[0].mxu0
        %v668 = vadd.f32 0.0, %v667
        %v669 = vpop.f32.mrb[0].mxu0
        %670 = vmatprep.mubr.f32.mxu0 0.0
        %671 = vmatmul.mubr.f32.gmra.mrb[0].mxu0 %v412
        %v672 = vpop.f32.mrb[0].mxu0
        %v673 = vadd.f32 0.0, %v672
        %v674 = vpop.f32.mrb[0].mxu0
        %675 = vmatprep.mubr.f32.mxu0 0.0
        %676 = vmatmul.mubr.f32.gmra.mrb[0].mxu0 %v415
        %v677 = vpop.f32.mrb[0].mxu0
        %v678 = vadd.f32 0.0, %v677
        %v679 = vpop.f32.mrb[0].mxu0
        %680 = vmatprep.mubr.f32.mxu0 0.0
        %681 = vmatmul.mubr.f32.gmra.mrb[0].mxu0 %v418
        %v682 = vpop.f32.mrb[0].mxu0
        %v683 = vadd.f32 0.0, %v682
        %v684 = vpop.f32.mrb[0].mxu0
        %685 = vmatprep.mubr.f32.mxu0 0.0
        %686 = vmatmul.mubr.f32.gmra.mrb[0].mxu0 %v421
        %v687 = vpop.f32.mrb[0].mxu0
        %v688 = vadd.f32 0.0, %v687
        %v689 = vpop.f32.mrb[0].mxu0
        %690 = vmatprep.mubr.f32.mxu0 0.0
        %691 = vmatmul.mubr.f32.gmra.mrb[0].mxu0 %v424
        %v692 = vpop.f32.mrb[0].mxu0
        %v693 = vadd.f32 0.0, %v692
        %v694 = vpop.f32.mrb[0].mxu0
        %695 = vmatprep.mubr.f32.mxu0 0.0
        %696 = vmatmul.mubr.f32.gmra.mrb[0].mxu0 %v427
        %v697 = vpop.f32.mrb[0].mxu0
        %v698 = vadd.f32 0.0, %v697
        %v699 = vpop.f32.mrb[0].mxu0
        %700 = vmatprep.mubr.f32.mxu0 0.0
        %701 = vmatmul.mubr.f32.gmra.mrb[0].mxu0 %v430
        %v702 = vpop.f32.mrb[0].mxu0
        %v703 = vadd.f32 0.0, %v702
        %v704 = vpop.f32.mrb[0].mxu0
        %705 = vdwg.mxu0
        %v706 = vmax.f32 %v503, 0.0
        %v707 = vmax.f32 %v508, 0.0
        %v708 = vmax.f32 %v513, 0.0
        %v709 = vmax.f32 %v518, 0.0
        %v710 = vmax.f32 %v523, 0.0
        %v711 = vmax.f32 %v528, 0.0
        %v712 = vmax.f32 %v533, 0.0
        %v713 = vmax.f32 %v538, 0.0
        %v714 = vmax.f32 %v543, 0.0
        %v715 = vmax.f32 %v548, 0.0
        %v716 = vmax.f32 %v553, 0.0
        %v717 = vmax.f32 %v558, 0.0
        %v718 = vmax.f32 %v563, 0.0
        %v719 = vmax.f32 %v568, 0.0
        %v720 = vmax.f32 %v573, 0.0
        %v721 = vmax.f32 %v578, 0.0
        %v722 = vmax.f32 %v583, 0.0
        %v723 = vmax.f32 %v588, 0.0
        %v724 = vmax.f32 %v593, 0.0
        %v725 = vmax.f32 %v598, 0.0
        %v726 = vmax.f32 %v603, 0.0
        %v727 = vmax.f32 %v608, 0.0
        %v728 = vmax.f32 %v613, 0.0
        %v729 = vmax.f32 %v618, 0.0
        %v730 = vmax.f32 %v623, 0.0
        %v731 = vmax.f32 %v628, 0.0
        %v732 = vmax.f32 %v633, 0.0
        %v733 = vmax.f32 %v638, 0.0
        %v734 = vmax.f32 %v643, 0.0
        %v735 = vmax.f32 %v648, 0.0
        %v736 = vmax.f32 %v653, 0.0
        %v737 = vmax.f32 %v658, 0.0
        %v738 = vmax.f32 %v663, 0.0
        %v739 = vmax.f32 %v668, 0.0
        %v740 = vmax.f32 %v673, 0.0
        %v741 = vmax.f32 %v678, 0.0
        %v742 = vmax.f32 %v683, 0.0
        %v743 = vmax.f32 %v688, 0.0
        %v744 = vmax.f32 %v693, 0.0
        %v745 = vmax.f32 %v698, 0.0
        %v746 = vmax.f32 %v703, 0.0
        %v747 = vmin.f32 %v706, 6.0
        %v748 = vmin.f32 %v707, 6.0
        %v749 = vmin.f32 %v708, 6.0
        %v750 = vmin.f32 %v709, 6.0
        %v751 = vmin.f32 %v710, 6.0
        %v752 = vmin.f32 %v711, 6.0
        %v753 = vmin.f32 %v712, 6.0
        %v754 = vmin.f32 %v713, 6.0
        %v755 = vmin.f32 %v714, 6.0
        %v756 = vmin.f32 %v715, 6.0
        %v757 = vmin.f32 %v716, 6.0
        %v758 = vmin.f32 %v717, 6.0
        %v759 = vmin.f32 %v718, 6.0
        %v760 = vmin.f32 %v719, 6.0
        %v761 = vmin.f32 %v720, 6.0
        %v762 = vmin.f32 %v721, 6.0
        %v763 = vmin.f32 %v722, 6.0
        %v764 = vmin.f32 %v723, 6.0
        %v765 = vmin.f32 %v724, 6.0
        %v766 = vmin.f32 %v725, 6.0
        %v767 = vmin.f32 %v726, 6.0
        %v768 = vmin.f32 %v727, 6.0
        %v769 = vmin.f32 %v728, 6.0
        %v770 = vmin.f32 %v729, 6.0
        %v771 = vmin.f32 %v730, 6.0
        %v772 = vmin.f32 %v731, 6.0
        %v773 = vmin.f32 %v732, 6.0
        %v774 = vmin.f32 %v733, 6.0
        %v775 = vmin.f32 %v734, 6.0
        %v776 = vmin.f32 %v735, 6.0
        %v777 = vmin.f32 %v736, 6.0
        %v778 = vmin.f32 %v737, 6.0
        %v779 = vmin.f32 %v738, 6.0
        %v780 = vmin.f32 %v739, 6.0
        %v781 = vmin.f32 %v740, 6.0
        %v782 = vmin.f32 %v741, 6.0
        %v783 = vmin.f32 %v742, 6.0
        %v784 = vmin.f32 %v743, 6.0
        %v785 = vmin.f32 %v744, 6.0
        %v786 = vmin.f32 %v745, 6.0
        %v787 = vmin.f32 %v746, 6.0
        %788 = vst [vmem:[#allocation2] sm:$0xff] %v747
        %789 = vst [vmem:[#allocation2 + $0x8] sm:$0xff] %v748
        %790 = vst [vmem:[#allocation2 + $0x10] sm:$0xff] %v749
        %791 = vst [vmem:[#allocation2 + $0x18] sm:$0xff] %v750
        %792 = vst [vmem:[#allocation2 + $0x20] sm:$0xff] %v751
        %793 = vst [vmem:[#allocation2 + $0x28] sm:$0xff] %v752
        %794 = vst [vmem:[#allocation2 + $0x30] sm:$0xff] %v753
        %795 = vst [vmem:[#allocation2 + $0x38] sm:$0xff] %v754
        %796 = vst [vmem:[#allocation2 + $0x40] sm:$0xff] %v755
        %797 = vst [vmem:[#allocation2 + $0x48] sm:$0xff] %v756
        %798 = vst [vmem:[#allocation2 + $0x50] sm:$0xff] %v757
        %799 = vst [vmem:[#allocation2 + $0x58] sm:$0xff] %v758
        %800 = vst [vmem:[#allocation2 + $0x60] sm:$0xff] %v759
        %801 = vst [vmem:[#allocation2 + $0x68] sm:$0xff] %v760
        %802 = vst [vmem:[#allocation2 + $0x70] sm:$0xff] %v761
        %803 = vst [vmem:[#allocation2 + $0x78] sm:$0xff] %v762
        %804 = vst [vmem:[#allocation2 + $0x80] sm:$0xff] %v763
        %805 = vst [vmem:[#allocation2 + $0x88] sm:$0xff] %v764
        %806 = vst [vmem:[#allocation2 + $0x90] sm:$0xff] %v765
        %807 = vst [vmem:[#allocation2 + $0x98] sm:$0xff] %v766
        %808 = vst [vmem:[#allocation2 + $0xa0] sm:$0xff] %v767
        %809 = vst [vmem:[#allocation2 + $0xa8] sm:$0xff] %v768
        %810 = vst [vmem:[#allocation2 + $0xb0] sm:$0xff] %v769
        %811 = vst [vmem:[#allocation2 + $0xb8] sm:$0xff] %v770
        %812 = vst [vmem:[#allocation2 + $0xc0] sm:$0xff] %v771
        %813 = vst [vmem:[#allocation2 + $0xc8] sm:$0xff] %v772
        %814 = vst [vmem:[#allocation2 + $0xd0] sm:$0xff] %v773
        %815 = vst [vmem:[#allocation2 + $0xd8] sm:$0xff] %v774
        %816 = vst [vmem:[#allocation2 + $0xe0] sm:$0xff] %v775
        %817 = vst [vmem:[#allocation2 + $0xe8] sm:$0xff] %v776
        %818 = vst [vmem:[#allocation2 + $0xf0] sm:$0xff] %v777
        %819 = vst [vmem:[#allocation2 + $0xf8] sm:$0xff] %v778
        %820 = vst [vmem:[#allocation2 + $0x100] sm:$0xff] %v779
        %821 = vst [vmem:[#allocation2 + $0x108] sm:$0xff] %v780
        %822 = vst [vmem:[#allocation2 + $0x110] sm:$0xff] %v781
        %823 = vst [vmem:[#allocation2 + $0x118] sm:$0xff] %v782
        %824 = vst [vmem:[#allocation2 + $0x120] sm:$0xff] %v783
        %825 = vst [vmem:[#allocation2 + $0x128] sm:$0xff] %v784
        %826 = vst [vmem:[#allocation2 + $0x130] sm:$0xff] %v785
        %827 = vst [vmem:[#allocation2 + $0x138] sm:$0xff] %v786
        %828 = vst [vmem:[#allocation2 + $0x140] sm:$0xf] %v787
        %v829 = vld [vmem:[%s2] sm:$0x1]
        %v830 = vld [vmem:[%s2 + $0x1] sm:$0x1]
        %v831 = vld [vmem:[%s2 + $0x2] sm:$0x1]
        %v832 = vld [vmem:[%s2 + $0x3] sm:$0x1]
        %v833 = vld [vmem:[%s2 + $0x4] sm:$0x1]
        %v834 = vld [vmem:[%s2 + $0x5] sm:$0x1]
        %v835 = vld [vmem:[%s2 + $0x6] sm:$0x1]
        %v836 = vld [vmem:[%s2 + $0x7] sm:$0x1]
        %v837 = vld [vmem:[%s2 + $0x8] sm:$0x1]
        %v838 = vld [vmem:[%s3] sm:$0x1]
        %v839 = vld [vmem:[#allocation2] sm:$0xff]
        %v840 = vld [vmem:[#allocation2 + $0x8] sm:$0xff]
        %v841 = vld [vmem:[#allocation2 + $0x10] sm:$0x3]
        %v842 = vlaneseq
        %v843 = vshrl.u32 %v842, 7
        %v844 = vsub.s32 0, %v843
        %v845 = vrot.slane %v829, %v844
        %v846 = vmul.f32 %v839, %v845
        %v847 = vmul.f32 %v840, %v845
        %v848 = vadd.f32 %v846, 0.0
        %v849 = vadd.f32 %v847, 0.0
        %v850 = vlaneseq
        %v851 = vshrl.u32 %v850, 7
        %v852 = vsub.s32 0, %v851
        %v853 = vrot.slane %v830, %v852
        %v854 = vmul.f32 %v839, %v853
        %v855 = vmul.f32 %v840, %v853
        %v856 = vmul.f32 %v841, %v853
        %vm860 = vcmask 1046528
        %v861 = vrot.slane %v854, 1
        %v862 = vrot.slane %v855, 1
        %v863 = vsel %vm860, %v861, %v862
        %v864 = vrot.slane %v856, 1
        %v865 = vsel %vm860, %v862, %v864
        %v868 = vadd.f32 %v848, %v863
        %v869 = vadd.f32 %v849, %v865
        %v870 = vlaneseq
        %v871 = vshrl.u32 %v870, 7
        %v872 = vsub.s32 0, %v871
        %v873 = vrot.slane %v831, %v872
        %v874 = vmul.f32 %v839, %v873
        %v875 = vmul.f32 %v840, %v873
        %v876 = vmul.f32 %v841, %v873
        %vm880 = vcmask 1045504
        %v881 = vrot.slane %v874, 2
        %v882 = vrot.slane %v875, 2
        %v883 = vsel %vm880, %v881, %v882
        %v884 = vrot.slane %v876, 2
        %v885 = vsel %vm880, %v882, %v884
        %v888 = vadd.f32 %v868, %v883
        %v889 = vadd.f32 %v869, %v885
        %v890 = vld [vmem:[#allocation2 + $0x12] sm:$0xff]
        %v891 = vld [vmem:[#allocation2 + $0x1a] sm:$0xff]
        %v892 = vld [vmem:[#allocation2 + $0x22] sm:$0x3]
        %v893 = vlaneseq
        %v894 = vshrl.u32 %v893, 7
        %v895 = vsub.s32 0, %v894
        %v896 = vrot.slane %v832, %v895
        %v897 = vmul.f32 %v890, %v896
        %v898 = vmul.f32 %v891, %v896
        %v899 = vadd.f32 %v888, %v897
        %v900 = vadd.f32 %v889, %v898
        %v901 = vlaneseq
        %v902 = vshrl.u32 %v901, 7
        %v903 = vsub.s32 0, %v902
        %v904 = vrot.slane %v833, %v903
        %v905 = vmul.f32 %v890, %v904
        %v906 = vmul.f32 %v891, %v904
        %v907 = vmul.f32 %v892, %v904
        %v911 = vrot.slane %v905, 1
        %v912 = vrot.slane %v906, 1
        %v913 = vsel %vm860, %v911, %v912
        %v914 = vrot.slane %v907, 1
        %v915 = vsel %vm860, %v912, %v914
        %v918 = vadd.f32 %v899, %v913
        %v919 = vadd.f32 %v900, %v915
        %v920 = vlaneseq
        %v921 = vshrl.u32 %v920, 7
        %v922 = vsub.s32 0, %v921
        %v923 = vrot.slane %v834, %v922
        %v924 = vmul.f32 %v890, %v923
        %v925 = vmul.f32 %v891, %v923
        %v926 = vmul.f32 %v892, %v923
        %v930 = vrot.slane %v924, 2
        %v931 = vrot.slane %v925, 2
        %v932 = vsel %vm880, %v930, %v931
        %v933 = vrot.slane %v926, 2
        %v934 = vsel %vm880, %v931, %v933
        %v937 = vadd.f32 %v918, %v932
        %v938 = vadd.f32 %v919, %v934
        %v939 = vld [vmem:[#allocation2 + $0x24] sm:$0xff]
        %v940 = vld [vmem:[#allocation2 + $0x2c] sm:$0xff]
        %v941 = vld [vmem:[#allocation2 + $0x34] sm:$0x3]
        %v942 = vlaneseq
        %v943 = vshrl.u32 %v942, 7
        %v944 = vsub.s32 0, %v943
        %v945 = vrot.slane %v835, %v944
        %v946 = vmul.f32 %v939, %v945
        %v947 = vmul.f32 %v940, %v945
        %v948 = vadd.f32 %v937, %v946
        %v949 = vadd.f32 %v938, %v947
        %v950 = vlaneseq
        %v951 = vshrl.u32 %v950, 7
        %v952 = vsub.s32 0, %v951
        %v953 = vrot.slane %v836, %v952
        %v954 = vmul.f32 %v939, %v953
        %v955 = vmul.f32 %v940, %v953
        %v956 = vmul.f32 %v941, %v953
        %v960 = vrot.slane %v954, 1
        %v961 = vrot.slane %v955, 1
        %v962 = vsel %vm860, %v960, %v961
        %v963 = vrot.slane %v956, 1
        %v964 = vsel %vm860, %v961, %v963
        %v967 = vadd.f32 %v948, %v962
        %v968 = vadd.f32 %v949, %v964
        %v969 = vlaneseq
        %v970 = vshrl.u32 %v969, 7
        %v971 = vsub.s32 0, %v970
        %v972 = vrot.slane %v837, %v971
        %v973 = vmul.f32 %v939, %v972
        %v974 = vmul.f32 %v940, %v972
        %v975 = vmul.f32 %v941, %v972
        %v979 = vrot.slane %v973, 2
        %v980 = vrot.slane %v974, 2
        %v981 = vsel %vm880, %v979, %v980
        %v982 = vrot.slane %v975, 2
        %v983 = vsel %vm880, %v980, %v982
        %v986 = vadd.f32 %v967, %v981
        %v987 = vadd.f32 %v968, %v983
        %v989 = vlaneseq
        %v990 = vshrl.u32 %v989, 7
        %v991 = vsub.s32 0, %v990
        %v992 = vrot.slane %v838, %v991
        %v994 = vadd.f32 %v986, %v992
        %v995 = vadd.f32 %v987, %v992
        %v996 = vmax.f32 %v994, 0.0
        %v997 = vmax.f32 %v995, 0.0
        %v998 = vmin.f32 %v996, 6.0
        %v999 = vmin.f32 %v997, 6.0
        %1000 = vst [vmem:[#allocation3] sm:$0xff] %v998
        %1001 = vst [vmem:[#allocation3 + $0x8] sm:$0xff] %v999
        %v1002 = vld [vmem:[#allocation2 + $0x12] sm:$0xff]
        %v1003 = vld [vmem:[#allocation2 + $0x1a] sm:$0xff]
        %v1004 = vld [vmem:[#allocation2 + $0x22] sm:$0x3]
        %v1005 = vmul.f32 %v1002, %v845
        %v1006 = vmul.f32 %v1003, %v845
        %v1007 = vadd.f32 %v1005, 0.0
        %v1008 = vadd.f32 %v1006, 0.0
        %v1009 = vmul.f32 %v1002, %v853
        %v1010 = vmul.f32 %v1003, %v853
        %v1011 = vmul.f32 %v1004, %v853
        %v1015 = vrot.slane %v1009, 1
        %v1016 = vrot.slane %v1010, 1
        %v1017 = vsel %vm860, %v1015, %v1016
        %v1018 = vrot.slane %v1011, 1
        %v1019 = vsel %vm860, %v1016, %v1018
        %v1022 = vadd.f32 %v1007, %v1017
        %v1023 = vadd.f32 %v1008, %v1019
        %v1024 = vmul.f32 %v1002, %v873
        %v1025 = vmul.f32 %v1003, %v873
        %v1026 = vmul.f32 %v1004, %v873
        %v1030 = vrot.slane %v1024, 2
        %v1031 = vrot.slane %v1025, 2
        %v1032 = vsel %vm880, %v1030, %v1031
        %v1033 = vrot.slane %v1026, 2
        %v1034 = vsel %vm880, %v1031, %v1033
        %v1037 = vadd.f32 %v1022, %v1032
        %v1038 = vadd.f32 %v1023, %v1034
        %v1039 = vld [vmem:[#allocation2 + $0x24] sm:$0xff]
        %v1040 = vld [vmem:[#allocation2 + $0x2c] sm:$0xff]
        %v1041 = vld [vmem:[#allocation2 + $0x34] sm:$0x3]
        %v1042 = vmul.f32 %v1039, %v896
        %v1043 = vmul.f32 %v1040, %v896
        %v1044 = vadd.f32 %v1037, %v1042
        %v1045 = vadd.f32 %v1038, %v1043
        %v1046 = vmul.f32 %v1039, %v904
        %v1047 = vmul.f32 %v1040, %v904
        %v1048 = vmul.f32 %v1041, %v904
        %v1052 = vrot.slane %v1046, 1
        %v1053 = vrot.slane %v1047, 1
        %v1054 = vsel %vm860, %v1052, %v1053
        %v1055 = vrot.slane %v1048, 1
        %v1056 = vsel %vm860, %v1053, %v1055
        %v1059 = vadd.f32 %v1044, %v1054
        %v1060 = vadd.f32 %v1045, %v1056
        %v1061 = vmul.f32 %v1039, %v923
        %v1062 = vmul.f32 %v1040, %v923
        %v1063 = vmul.f32 %v1041, %v923
        %v1067 = vrot.slane %v1061, 2
        %v1068 = vrot.slane %v1062, 2
        %v1069 = vsel %vm880, %v1067, %v1068
        %v1070 = vrot.slane %v1063, 2
        %v1071 = vsel %vm880, %v1068, %v1070
        %v1074 = vadd.f32 %v1059, %v1069
        %v1075 = vadd.f32 %v1060, %v1071
        %v1076 = vld [vmem:[#allocation2 + $0x36] sm:$0xff]
        %v1077 = vld [vmem:[#allocation2 + $0x3e] sm:$0xff]
        %v1078 = vld [vmem:[#allocation2 + $0x46] sm:$0x3]
        %v1079 = vmul.f32 %v1076, %v945
        %v1080 = vmul.f32 %v1077, %v945
        %v1081 = vadd.f32 %v1074, %v1079
        %v1082 = vadd.f32 %v1075, %v1080
        %v1083 = vmul.f32 %v1076, %v953
        %v1084 = vmul.f32 %v1077, %v953
        %v1085 = vmul.f32 %v1078, %v953
        %v1089 = vrot.slane %v1083, 1
        %v1090 = vrot.slane %v1084, 1
        %v1091 = vsel %vm860, %v1089, %v1090
        %v1092 = vrot.slane %v1085, 1
        %v1093 = vsel %vm860, %v1090, %v1092
        %v1096 = vadd.f32 %v1081, %v1091
        %v1097 = vadd.f32 %v1082, %v1093
        %v1098 = vmul.f32 %v1076, %v972
        %v1099 = vmul.f32 %v1077, %v972
        %v1100 = vmul.f32 %v1078, %v972
        %v1104 = vrot.slane %v1098, 2
        %v1105 = vrot.slane %v1099, 2
        %v1106 = vsel %vm880, %v1104, %v1105
        %v1107 = vrot.slane %v1100, 2
        %v1108 = vsel %vm880, %v1105, %v1107
        %v1111 = vadd.f32 %v1096, %v1106
        %v1112 = vadd.f32 %v1097, %v1108
        %v1113 = vadd.f32 %v1111, %v992
        %v1114 = vadd.f32 %v1112, %v992
        %v1115 = vmax.f32 %v1113, 0.0
        %v1116 = vmax.f32 %v1114, 0.0
        %v1117 = vmin.f32 %v1115, 6.0
        %v1118 = vmin.f32 %v1116, 6.0
        %1119 = vst [vmem:[#allocation3 + $0x10] sm:$0xff] %v1117
        %1120 = vst [vmem:[#allocation3 + $0x18] sm:$0xff] %v1118
        %v1121 = vld [vmem:[#allocation2 + $0x24] sm:$0xff]
        %v1122 = vld [vmem:[#allocation2 + $0x2c] sm:$0xff]
        %v1123 = vld [vmem:[#allocation2 + $0x34] sm:$0x3]
        %v1124 = vmul.f32 %v1121, %v845
        %v1125 = vmul.f32 %v1122, %v845
        %v1126 = vadd.f32 %v1124, 0.0
        %v1127 = vadd.f32 %v1125, 0.0
        %v1128 = vmul.f32 %v1121, %v853
        %v1129 = vmul.f32 %v1122, %v853
        %v1130 = vmul.f32 %v1123, %v853
        %v1134 = vrot.slane %v1128, 1
        %v1135 = vrot.slane %v1129, 1
        %v1136 = vsel %vm860, %v1134, %v1135
        %v1137 = vrot.slane %v1130, 1
        %v1138 = vsel %vm860, %v1135, %v1137
        %v1141 = vadd.f32 %v1126, %v1136
        %v1142 = vadd.f32 %v1127, %v1138
        %v1143 = vmul.f32 %v1121, %v873
        %v1144 = vmul.f32 %v1122, %v873
        %v1145 = vmul.f32 %v1123, %v873
        %v1149 = vrot.slane %v1143, 2
        %v1150 = vrot.slane %v1144, 2
        %v1151 = vsel %vm880, %v1149, %v1150
        %v1152 = vrot.slane %v1145, 2
        %v1153 = vsel %vm880, %v1150, %v1152
        %v1156 = vadd.f32 %v1141, %v1151
        %v1157 = vadd.f32 %v1142, %v1153
        %v1158 = vld [vmem:[#allocation2 + $0x36] sm:$0xff]
        %v1159 = vld [vmem:[#allocation2 + $0x3e] sm:$0xff]
        %v1160 = vld [vmem:[#allocation2 + $0x46] sm:$0x3]
        %v1161 = vmul.f32 %v1158, %v896
        %v1162 = vmul.f32 %v1159, %v896
        %v1163 = vadd.f32 %v1156, %v1161
        %v1164 = vadd.f32 %v1157, %v1162
        %v1165 = vmul.f32 %v1158, %v904
        %v1166 = vmul.f32 %v1159, %v904
        %v1167 = vmul.f32 %v1160, %v904
        %v1171 = vrot.slane %v1165, 1
        %v1172 = vrot.slane %v1166, 1
        %v1173 = vsel %vm860, %v1171, %v1172
        %v1174 = vrot.slane %v1167, 1
        %v1175 = vsel %vm860, %v1172, %v1174
        %v1178 = vadd.f32 %v1163, %v1173
        %v1179 = vadd.f32 %v1164, %v1175
        %v1180 = vmul.f32 %v1158, %v923
        %v1181 = vmul.f32 %v1159, %v923
        %v1182 = vmul.f32 %v1160, %v923
        %v1186 = vrot.slane %v1180, 2
        %v1187 = vrot.slane %v1181, 2
        %v1188 = vsel %vm880, %v1186, %v1187
        %v1189 = vrot.slane %v1182, 2
        %v1190 = vsel %vm880, %v1187, %v1189
        %v1193 = vadd.f32 %v1178, %v1188
        %v1194 = vadd.f32 %v1179, %v1190
        %v1195 = vld [vmem:[#allocation2 + $0x48] sm:$0xff]
        %v1196 = vld [vmem:[#allocation2 + $0x50] sm:$0xff]
        %v1197 = vld [vmem:[#allocation2 + $0x58] sm:$0x3]
        %v1198 = vmul.f32 %v1195, %v945
        %v1199 = vmul.f32 %v1196, %v945
        %v1200 = vadd.f32 %v1193, %v1198
        %v1201 = vadd.f32 %v1194, %v1199
        %v1202 = vmul.f32 %v1195, %v953
        %v1203 = vmul.f32 %v1196, %v953
        %v1204 = vmul.f32 %v1197, %v953
        %v1208 = vrot.slane %v1202, 1
        %v1209 = vrot.slane %v1203, 1
        %v1210 = vsel %vm860, %v1208, %v1209
        %v1211 = vrot.slane %v1204, 1
        %v1212 = vsel %vm860, %v1209, %v1211
        %v1215 = vadd.f32 %v1200, %v1210
        %v1216 = vadd.f32 %v1201, %v1212
        %v1217 = vmul.f32 %v1195, %v972
        %v1218 = vmul.f32 %v1196, %v972
        %v1219 = vmul.f32 %v1197, %v972
        %v1223 = vrot.slane %v1217, 2
        %v1224 = vrot.slane %v1218, 2
        %v1225 = vsel %vm880, %v1223, %v1224
        %v1226 = vrot.slane %v1219, 2
        %v1227 = vsel %vm880, %v1224, %v1226
        %v1230 = vadd.f32 %v1215, %v1225
        %v1231 = vadd.f32 %v1216, %v1227
        %v1232 = vadd.f32 %v1230, %v992
        %v1233 = vadd.f32 %v1231, %v992
        %v1234 = vmax.f32 %v1232, 0.0
        %v1235 = vmax.f32 %v1233, 0.0
        %v1236 = vmin.f32 %v1234, 6.0
        %v1237 = vmin.f32 %v1235, 6.0
        %1238 = vst [vmem:[#allocation3 + $0x20] sm:$0xff] %v1236
        %1239 = vst [vmem:[#allocation3 + $0x28] sm:$0xff] %v1237
        %v1240 = vld [vmem:[#allocation2 + $0x36] sm:$0xff]
        %v1241 = vld [vmem:[#allocation2 + $0x3e] sm:$0xff]
        %v1242 = vld [vmem:[#allocation2 + $0x46] sm:$0x3]
        %v1243 = vmul.f32 %v1240, %v845
        %v1244 = vmul.f32 %v1241, %v845
        %v1245 = vadd.f32 %v1243, 0.0
        %v1246 = vadd.f32 %v1244, 0.0
        %v1247 = vmul.f32 %v1240, %v853
        %v1248 = vmul.f32 %v1241, %v853
        %v1249 = vmul.f32 %v1242, %v853
        %v1253 = vrot.slane %v1247, 1
        %v1254 = vrot.slane %v1248, 1
        %v1255 = vsel %vm860, %v1253, %v1254
        %v1256 = vrot.slane %v1249, 1
        %v1257 = vsel %vm860, %v1254, %v1256
        %v1260 = vadd.f32 %v1245, %v1255
        %v1261 = vadd.f32 %v1246, %v1257
        %v1262 = vmul.f32 %v1240, %v873
        %v1263 = vmul.f32 %v1241, %v873
        %v1264 = vmul.f32 %v1242, %v873
        %v1268 = vrot.slane %v1262, 2
        %v1269 = vrot.slane %v1263, 2
        %v1270 = vsel %vm880, %v1268, %v1269
        %v1271 = vrot.slane %v1264, 2
        %v1272 = vsel %vm880, %v1269, %v1271
        %v1275 = vadd.f32 %v1260, %v1270
        %v1276 = vadd.f32 %v1261, %v1272
        %v1277 = vld [vmem:[#allocation2 + $0x48] sm:$0xff]
        %v1278 = vld [vmem:[#allocation2 + $0x50] sm:$0xff]
        %v1279 = vld [vmem:[#allocation2 + $0x58] sm:$0x3]
        %v1280 = vmul.f32 %v1277, %v896
        %v1281 = vmul.f32 %v1278, %v896
        %v1282 = vadd.f32 %v1275, %v1280
        %v1283 = vadd.f32 %v1276, %v1281
        %v1284 = vmul.f32 %v1277, %v904
        %v1285 = vmul.f32 %v1278, %v904
        %v1286 = vmul.f32 %v1279, %v904
        %v1290 = vrot.slane %v1284, 1
        %v1291 = vrot.slane %v1285, 1
        %v1292 = vsel %vm860, %v1290, %v1291
        %v1293 = vrot.slane %v1286, 1
        %v1294 = vsel %vm860, %v1291, %v1293
        %v1297 = vadd.f32 %v1282, %v1292
        %v1298 = vadd.f32 %v1283, %v1294
        %v1299 = vmul.f32 %v1277, %v923
        %v1300 = vmul.f32 %v1278, %v923
        %v1301 = vmul.f32 %v1279, %v923
        %v1305 = vrot.slane %v1299, 2
        %v1306 = vrot.slane %v1300, 2
        %v1307 = vsel %vm880, %v1305, %v1306
        %v1308 = vrot.slane %v1301, 2
        %v1309 = vsel %vm880, %v1306, %v1308
        %v1312 = vadd.f32 %v1297, %v1307
        %v1313 = vadd.f32 %v1298, %v1309
        %v1314 = vld [vmem:[#allocation2 + $0x5a] sm:$0xff]
        %v1315 = vld [vmem:[#allocation2 + $0x62] sm:$0xff]
        %v1316 = vld [vmem:[#allocation2 + $0x6a] sm:$0x3]
        %v1317 = vmul.f32 %v1314, %v945
        %v1318 = vmul.f32 %v1315, %v945
        %v1319 = vadd.f32 %v1312, %v1317
        %v1320 = vadd.f32 %v1313, %v1318
        %v1321 = vmul.f32 %v1314, %v953
        %v1322 = vmul.f32 %v1315, %v953
        %v1323 = vmul.f32 %v1316, %v953
        %v1327 = vrot.slane %v1321, 1
        %v1328 = vrot.slane %v1322, 1
        %v1329 = vsel %vm860, %v1327, %v1328
        %v1330 = vrot.slane %v1323, 1
        %v1331 = vsel %vm860, %v1328, %v1330
        %v1334 = vadd.f32 %v1319, %v1329
        %v1335 = vadd.f32 %v1320, %v1331
        %v1336 = vmul.f32 %v1314, %v972
        %v1337 = vmul.f32 %v1315, %v972
        %v1338 = vmul.f32 %v1316, %v972
        %v1342 = vrot.slane %v1336, 2
        %v1343 = vrot.slane %v1337, 2
        %v1344 = vsel %vm880, %v1342, %v1343
        %v1345 = vrot.slane %v1338, 2
        %v1346 = vsel %vm880, %v1343, %v1345
        %v1349 = vadd.f32 %v1334, %v1344
        %v1350 = vadd.f32 %v1335, %v1346
        %v1351 = vadd.f32 %v1349, %v992
        %v1352 = vadd.f32 %v1350, %v992
        %v1353 = vmax.f32 %v1351, 0.0
        %v1354 = vmax.f32 %v1352, 0.0
        %v1355 = vmin.f32 %v1353, 6.0
        %v1356 = vmin.f32 %v1354, 6.0
        %1357 = vst [vmem:[#allocation3 + $0x30] sm:$0xff] %v1355
        %1358 = vst [vmem:[#allocation3 + $0x38] sm:$0xff] %v1356
        %v1359 = vld [vmem:[#allocation2 + $0x48] sm:$0xff]
        %v1360 = vld [vmem:[#allocation2 + $0x50] sm:$0xff]
        %v1361 = vld [vmem:[#allocation2 + $0x58] sm:$0x3]
        %v1362 = vmul.f32 %v1359, %v845
        %v1363 = vmul.f32 %v1360, %v845
        %v1364 = vadd.f32 %v1362, 0.0
        %v1365 = vadd.f32 %v1363, 0.0
        %v1366 = vmul.f32 %v1359, %v853
        %v1367 = vmul.f32 %v1360, %v853
        %v1368 = vmul.f32 %v1361, %v853
        %v1372 = vrot.slane %v1366, 1
        %v1373 = vrot.slane %v1367, 1
        %v1374 = vsel %vm860, %v1372, %v1373
        %v1375 = vrot.slane %v1368, 1
        %v1376 = vsel %vm860, %v1373, %v1375
        %v1379 = vadd.f32 %v1364, %v1374
        %v1380 = vadd.f32 %v1365, %v1376
        %v1381 = vmul.f32 %v1359, %v873
        %v1382 = vmul.f32 %v1360, %v873
        %v1383 = vmul.f32 %v1361, %v873
        %v1387 = vrot.slane %v1381, 2
        %v1388 = vrot.slane %v1382, 2
        %v1389 = vsel %vm880, %v1387, %v1388
        %v1390 = vrot.slane %v1383, 2
        %v1391 = vsel %vm880, %v1388, %v1390
        %v1394 = vadd.f32 %v1379, %v1389
        %v1395 = vadd.f32 %v1380, %v1391
        %v1396 = vld [vmem:[#allocation2 + $0x5a] sm:$0xff]
        %v1397 = vld [vmem:[#allocation2 + $0x62] sm:$0xff]
        %v1398 = vld [vmem:[#allocation2 + $0x6a] sm:$0x3]
        %v1399 = vmul.f32 %v1396, %v896
        %v1400 = vmul.f32 %v1397, %v896
        %v1401 = vadd.f32 %v1394, %v1399
        %v1402 = vadd.f32 %v1395, %v1400
        %v1403 = vmul.f32 %v1396, %v904
        %v1404 = vmul.f32 %v1397, %v904
        %v1405 = vmul.f32 %v1398, %v904
        %v1409 = vrot.slane %v1403, 1
        %v1410 = vrot.slane %v1404, 1
        %v1411 = vsel %vm860, %v1409, %v1410
        %v1412 = vrot.slane %v1405, 1
        %v1413 = vsel %vm860, %v1410, %v1412
        %v1416 = vadd.f32 %v1401, %v1411
        %v1417 = vadd.f32 %v1402, %v1413
        %v1418 = vmul.f32 %v1396, %v923
        %v1419 = vmul.f32 %v1397, %v923
        %v1420 = vmul.f32 %v1398, %v923
        %v1424 = vrot.slane %v1418, 2
        %v1425 = vrot.slane %v1419, 2
        %v1426 = vsel %vm880, %v1424, %v1425
        %v1427 = vrot.slane %v1420, 2
        %v1428 = vsel %vm880, %v1425, %v1427
        %v1431 = vadd.f32 %v1416, %v1426
        %v1432 = vadd.f32 %v1417, %v1428
        %v1433 = vld [vmem:[#allocation2 + $0x6c] sm:$0xff]
        %v1434 = vld [vmem:[#allocation2 + $0x74] sm:$0xff]
        %v1435 = vld [vmem:[#allocation2 + $0x7c] sm:$0x3]
        %v1436 = vmul.f32 %v1433, %v945
        %v1437 = vmul.f32 %v1434, %v945
        %v1438 = vadd.f32 %v1431, %v1436
        %v1439 = vadd.f32 %v1432, %v1437
        %v1440 = vmul.f32 %v1433, %v953
        %v1441 = vmul.f32 %v1434, %v953
        %v1442 = vmul.f32 %v1435, %v953
        %v1446 = vrot.slane %v1440, 1
        %v1447 = vrot.slane %v1441, 1
        %v1448 = vsel %vm860, %v1446, %v1447
        %v1449 = vrot.slane %v1442, 1
        %v1450 = vsel %vm860, %v1447, %v1449
        %v1453 = vadd.f32 %v1438, %v1448
        %v1454 = vadd.f32 %v1439, %v1450
        %v1455 = vmul.f32 %v1433, %v972
        %v1456 = vmul.f32 %v1434, %v972
        %v1457 = vmul.f32 %v1435, %v972
        %v1461 = vrot.slane %v1455, 2
        %v1462 = vrot.slane %v1456, 2
        %v1463 = vsel %vm880, %v1461, %v1462
        %v1464 = vrot.slane %v1457, 2
        %v1465 = vsel %vm880, %v1462, %v1464
        %v1468 = vadd.f32 %v1453, %v1463
        %v1469 = vadd.f32 %v1454, %v1465
        %v1470 = vadd.f32 %v1468, %v992
        %v1471 = vadd.f32 %v1469, %v992
        %v1472 = vmax.f32 %v1470, 0.0
        %v1473 = vmax.f32 %v1471, 0.0
        %v1474 = vmin.f32 %v1472, 6.0
        %v1475 = vmin.f32 %v1473, 6.0
        %1476 = vst [vmem:[#allocation3 + $0x40] sm:$0xff] %v1474
        %1477 = vst [vmem:[#allocation3 + $0x48] sm:$0xff] %v1475
        %v1478 = vld [vmem:[#allocation2 + $0x5a] sm:$0xff]
        %v1479 = vld [vmem:[#allocation2 + $0x62] sm:$0xff]
        %v1480 = vld [vmem:[#allocation2 + $0x6a] sm:$0x3]
        %v1481 = vmul.f32 %v1478, %v845
        %v1482 = vmul.f32 %v1479, %v845
        %v1483 = vadd.f32 %v1481, 0.0
        %v1484 = vadd.f32 %v1482, 0.0
        %v1485 = vmul.f32 %v1478, %v853
        %v1486 = vmul.f32 %v1479, %v853
        %v1487 = vmul.f32 %v1480, %v853
        %v1491 = vrot.slane %v1485, 1
        %v1492 = vrot.slane %v1486, 1
        %v1493 = vsel %vm860, %v1491, %v1492
        %v1494 = vrot.slane %v1487, 1
        %v1495 = vsel %vm860, %v1492, %v1494
        %v1498 = vadd.f32 %v1483, %v1493
        %v1499 = vadd.f32 %v1484, %v1495
        %v1500 = vmul.f32 %v1478, %v873
        %v1501 = vmul.f32 %v1479, %v873
        %v1502 = vmul.f32 %v1480, %v873
        %v1506 = vrot.slane %v1500, 2
        %v1507 = vrot.slane %v1501, 2
        %v1508 = vsel %vm880, %v1506, %v1507
        %v1509 = vrot.slane %v1502, 2
        %v1510 = vsel %vm880, %v1507, %v1509
        %v1513 = vadd.f32 %v1498, %v1508
        %v1514 = vadd.f32 %v1499, %v1510
        %v1515 = vld [vmem:[#allocation2 + $0x6c] sm:$0xff]
        %v1516 = vld [vmem:[#allocation2 + $0x74] sm:$0xff]
        %v1517 = vld [vmem:[#allocation2 + $0x7c] sm:$0x3]
        %v1518 = vmul.f32 %v1515, %v896
        %v1519 = vmul.f32 %v1516, %v896
        %v1520 = vadd.f32 %v1513, %v1518
        %v1521 = vadd.f32 %v1514, %v1519
        %v1522 = vmul.f32 %v1515, %v904
        %v1523 = vmul.f32 %v1516, %v904
        %v1524 = vmul.f32 %v1517, %v904
        %v1528 = vrot.slane %v1522, 1
        %v1529 = vrot.slane %v1523, 1
        %v1530 = vsel %vm860, %v1528, %v1529
        %v1531 = vrot.slane %v1524, 1
        %v1532 = vsel %vm860, %v1529, %v1531
        %v1535 = vadd.f32 %v1520, %v1530
        %v1536 = vadd.f32 %v1521, %v1532
        %v1537 = vmul.f32 %v1515, %v923
        %v1538 = vmul.f32 %v1516, %v923
        %v1539 = vmul.f32 %v1517, %v923
        %v1543 = vrot.slane %v1537, 2
        %v1544 = vrot.slane %v1538, 2
        %v1545 = vsel %vm880, %v1543, %v1544
        %v1546 = vrot.slane %v1539, 2
        %v1547 = vsel %vm880, %v1544, %v1546
        %v1550 = vadd.f32 %v1535, %v1545
        %v1551 = vadd.f32 %v1536, %v1547
        %v1552 = vld [vmem:[#allocation2 + $0x7e] sm:$0xff]
        %v1553 = vld [vmem:[#allocation2 + $0x86] sm:$0xff]
        %v1554 = vld [vmem:[#allocation2 + $0x8e] sm:$0x3]
        %v1555 = vmul.f32 %v1552, %v945
        %v1556 = vmul.f32 %v1553, %v945
        %v1557 = vadd.f32 %v1550, %v1555
        %v1558 = vadd.f32 %v1551, %v1556
        %v1559 = vmul.f32 %v1552, %v953
        %v1560 = vmul.f32 %v1553, %v953
        %v1561 = vmul.f32 %v1554, %v953
        %v1565 = vrot.slane %v1559, 1
        %v1566 = vrot.slane %v1560, 1
        %v1567 = vsel %vm860, %v1565, %v1566
        %v1568 = vrot.slane %v1561, 1
        %v1569 = vsel %vm860, %v1566, %v1568
        %v1572 = vadd.f32 %v1557, %v1567
        %v1573 = vadd.f32 %v1558, %v1569
        %v1574 = vmul.f32 %v1552, %v972
        %v1575 = vmul.f32 %v1553, %v972
        %v1576 = vmul.f32 %v1554, %v972
        %v1580 = vrot.slane %v1574, 2
        %v1581 = vrot.slane %v1575, 2
        %v1582 = vsel %vm880, %v1580, %v1581
        %v1583 = vrot.slane %v1576, 2
        %v1584 = vsel %vm880, %v1581, %v1583
        %v1587 = vadd.f32 %v1572, %v1582
        %v1588 = vadd.f32 %v1573, %v1584
        %v1589 = vadd.f32 %v1587, %v992
        %v1590 = vadd.f32 %v1588, %v992
        %v1591 = vmax.f32 %v1589, 0.0
        %v1592 = vmax.f32 %v1590, 0.0
        %v1593 = vmin.f32 %v1591, 6.0
        %v1594 = vmin.f32 %v1592, 6.0
        %1595 = vst [vmem:[#allocation3 + $0x50] sm:$0xff] %v1593
        %1596 = vst [vmem:[#allocation3 + $0x58] sm:$0xff] %v1594
        %v1597 = vld [vmem:[#allocation2 + $0x6c] sm:$0xff]
        %v1598 = vld [vmem:[#allocation2 + $0x74] sm:$0xff]
        %v1599 = vld [vmem:[#allocation2 + $0x7c] sm:$0x3]
        %v1600 = vmul.f32 %v1597, %v845
        %v1601 = vmul.f32 %v1598, %v845
        %v1602 = vadd.f32 %v1600, 0.0
        %v1603 = vadd.f32 %v1601, 0.0
        %v1604 = vmul.f32 %v1597, %v853
        %v1605 = vmul.f32 %v1598, %v853
        %v1606 = vmul.f32 %v1599, %v853
        %v1610 = vrot.slane %v1604, 1
        %v1611 = vrot.slane %v1605, 1
        %v1612 = vsel %vm860, %v1610, %v1611
        %v1613 = vrot.slane %v1606, 1
        %v1614 = vsel %vm860, %v1611, %v1613
        %v1617 = vadd.f32 %v1602, %v1612
        %v1618 = vadd.f32 %v1603, %v1614
        %v1619 = vmul.f32 %v1597, %v873
        %v1620 = vmul.f32 %v1598, %v873
        %v1621 = vmul.f32 %v1599, %v873
        %v1625 = vrot.slane %v1619, 2
        %v1626 = vrot.slane %v1620, 2
        %v1627 = vsel %vm880, %v1625, %v1626
        %v1628 = vrot.slane %v1621, 2
        %v1629 = vsel %vm880, %v1626, %v1628
        %v1632 = vadd.f32 %v1617, %v1627
        %v1633 = vadd.f32 %v1618, %v1629
        %v1634 = vld [vmem:[#allocation2 + $0x7e] sm:$0xff]
        %v1635 = vld [vmem:[#allocation2 + $0x86] sm:$0xff]
        %v1636 = vld [vmem:[#allocation2 + $0x8e] sm:$0x3]
        %v1637 = vmul.f32 %v1634, %v896
        %v1638 = vmul.f32 %v1635, %v896
        %v1639 = vadd.f32 %v1632, %v1637
        %v1640 = vadd.f32 %v1633, %v1638
        %v1641 = vmul.f32 %v1634, %v904
        %v1642 = vmul.f32 %v1635, %v904
        %v1643 = vmul.f32 %v1636, %v904
        %v1647 = vrot.slane %v1641, 1
        %v1648 = vrot.slane %v1642, 1
        %v1649 = vsel %vm860, %v1647, %v1648
        %v1650 = vrot.slane %v1643, 1
        %v1651 = vsel %vm860, %v1648, %v1650
        %v1654 = vadd.f32 %v1639, %v1649
        %v1655 = vadd.f32 %v1640, %v1651
        %v1656 = vmul.f32 %v1634, %v923
        %v1657 = vmul.f32 %v1635, %v923
        %v1658 = vmul.f32 %v1636, %v923
        %v1662 = vrot.slane %v1656, 2
        %v1663 = vrot.slane %v1657, 2
        %v1664 = vsel %vm880, %v1662, %v1663
        %v1665 = vrot.slane %v1658, 2
        %v1666 = vsel %vm880, %v1663, %v1665
        %v1669 = vadd.f32 %v1654, %v1664
        %v1670 = vadd.f32 %v1655, %v1666
        %v1671 = vld [vmem:[#allocation2 + $0x90] sm:$0xff]
        %v1672 = vld [vmem:[#allocation2 + $0x98] sm:$0xff]
        %v1673 = vld [vmem:[#allocation2 + $0xa0] sm:$0x3]
        %v1674 = vmul.f32 %v1671, %v945
        %v1675 = vmul.f32 %v1672, %v945
        %v1676 = vadd.f32 %v1669, %v1674
        %v1677 = vadd.f32 %v1670, %v1675
        %v1678 = vmul.f32 %v1671, %v953
        %v1679 = vmul.f32 %v1672, %v953
        %v1680 = vmul.f32 %v1673, %v953
        %v1684 = vrot.slane %v1678, 1
        %v1685 = vrot.slane %v1679, 1
        %v1686 = vsel %vm860, %v1684, %v1685
        %v1687 = vrot.slane %v1680, 1
        %v1688 = vsel %vm860, %v1685, %v1687
        %v1691 = vadd.f32 %v1676, %v1686
        %v1692 = vadd.f32 %v1677, %v1688
        %v1693 = vmul.f32 %v1671, %v972
        %v1694 = vmul.f32 %v1672, %v972
        %v1695 = vmul.f32 %v1673, %v972
        %v1699 = vrot.slane %v1693, 2
        %v1700 = vrot.slane %v1694, 2
        %v1701 = vsel %vm880, %v1699, %v1700
        %v1702 = vrot.slane %v1695, 2
        %v1703 = vsel %vm880, %v1700, %v1702
        %v1706 = vadd.f32 %v1691, %v1701
        %v1707 = vadd.f32 %v1692, %v1703
        %v1708 = vadd.f32 %v1706, %v992
        %v1709 = vadd.f32 %v1707, %v992
        %v1710 = vmax.f32 %v1708, 0.0
        %v1711 = vmax.f32 %v1709, 0.0
        %v1712 = vmin.f32 %v1710, 6.0
        %v1713 = vmin.f32 %v1711, 6.0
        %1714 = vst [vmem:[#allocation3 + $0x60] sm:$0xff] %v1712
        %1715 = vst [vmem:[#allocation3 + $0x68] sm:$0xff] %v1713
        %v1716 = vld [vmem:[#allocation2 + $0x7e] sm:$0xff]
        %v1717 = vld [vmem:[#allocation2 + $0x86] sm:$0xff]
        %v1718 = vld [vmem:[#allocation2 + $0x8e] sm:$0x3]
        %v1719 = vmul.f32 %v1716, %v845
        %v1720 = vmul.f32 %v1717, %v845
        %v1721 = vadd.f32 %v1719, 0.0
        %v1722 = vadd.f32 %v1720, 0.0
        %v1723 = vmul.f32 %v1716, %v853
        %v1724 = vmul.f32 %v1717, %v853
        %v1725 = vmul.f32 %v1718, %v853
        %v1729 = vrot.slane %v1723, 1
        %v1730 = vrot.slane %v1724, 1
        %v1731 = vsel %vm860, %v1729, %v1730
        %v1732 = vrot.slane %v1725, 1
        %v1733 = vsel %vm860, %v1730, %v1732
        %v1736 = vadd.f32 %v1721, %v1731
        %v1737 = vadd.f32 %v1722, %v1733
        %v1738 = vmul.f32 %v1716, %v873
        %v1739 = vmul.f32 %v1717, %v873
        %v1740 = vmul.f32 %v1718, %v873
        %v1744 = vrot.slane %v1738, 2
        %v1745 = vrot.slane %v1739, 2
        %v1746 = vsel %vm880, %v1744, %v1745
        %v1747 = vrot.slane %v1740, 2
        %v1748 = vsel %vm880, %v1745, %v1747
        %v1751 = vadd.f32 %v1736, %v1746
        %v1752 = vadd.f32 %v1737, %v1748
        %v1753 = vld [vmem:[#allocation2 + $0x90] sm:$0xff]
        %v1754 = vld [vmem:[#allocation2 + $0x98] sm:$0xff]
        %v1755 = vld [vmem:[#allocation2 + $0xa0] sm:$0x3]
        %v1756 = vmul.f32 %v1753, %v896
        %v1757 = vmul.f32 %v1754, %v896
        %v1758 = vadd.f32 %v1751, %v1756
        %v1759 = vadd.f32 %v1752, %v1757
        %v1760 = vmul.f32 %v1753, %v904
        %v1761 = vmul.f32 %v1754, %v904
        %v1762 = vmul.f32 %v1755, %v904
        %v1766 = vrot.slane %v1760, 1
        %v1767 = vrot.slane %v1761, 1
        %v1768 = vsel %vm860, %v1766, %v1767
        %v1769 = vrot.slane %v1762, 1
        %v1770 = vsel %vm860, %v1767, %v1769
        %v1773 = vadd.f32 %v1758, %v1768
        %v1774 = vadd.f32 %v1759, %v1770
        %v1775 = vmul.f32 %v1753, %v923
        %v1776 = vmul.f32 %v1754, %v923
        %v1777 = vmul.f32 %v1755, %v923
        %v1781 = vrot.slane %v1775, 2
        %v1782 = vrot.slane %v1776, 2
        %v1783 = vsel %vm880, %v1781, %v1782
        %v1784 = vrot.slane %v1777, 2
        %v1785 = vsel %vm880, %v1782, %v1784
        %v1788 = vadd.f32 %v1773, %v1783
        %v1789 = vadd.f32 %v1774, %v1785
        %v1790 = vld [vmem:[#allocation2 + $0xa2] sm:$0xff]
        %v1791 = vld [vmem:[#allocation2 + $0xaa] sm:$0xff]
        %v1792 = vld [vmem:[#allocation2 + $0xb2] sm:$0x3]
        %v1793 = vmul.f32 %v1790, %v945
        %v1794 = vmul.f32 %v1791, %v945
        %v1795 = vadd.f32 %v1788, %v1793
        %v1796 = vadd.f32 %v1789, %v1794
        %v1797 = vmul.f32 %v1790, %v953
        %v1798 = vmul.f32 %v1791, %v953
        %v1799 = vmul.f32 %v1792, %v953
        %v1803 = vrot.slane %v1797, 1
        %v1804 = vrot.slane %v1798, 1
        %v1805 = vsel %vm860, %v1803, %v1804
        %v1806 = vrot.slane %v1799, 1
        %v1807 = vsel %vm860, %v1804, %v1806
        %v1810 = vadd.f32 %v1795, %v1805
        %v1811 = vadd.f32 %v1796, %v1807
        %v1812 = vmul.f32 %v1790, %v972
        %v1813 = vmul.f32 %v1791, %v972
        %v1814 = vmul.f32 %v1792, %v972
        %v1818 = vrot.slane %v1812, 2
        %v1819 = vrot.slane %v1813, 2
        %v1820 = vsel %vm880, %v1818, %v1819
        %v1821 = vrot.slane %v1814, 2
        %v1822 = vsel %vm880, %v1819, %v1821
        %v1825 = vadd.f32 %v1810, %v1820
        %v1826 = vadd.f32 %v1811, %v1822
        %v1827 = vadd.f32 %v1825, %v992
        %v1828 = vadd.f32 %v1826, %v992
        %v1829 = vmax.f32 %v1827, 0.0
        %v1830 = vmax.f32 %v1828, 0.0
        %v1831 = vmin.f32 %v1829, 6.0
        %v1832 = vmin.f32 %v1830, 6.0
        %1833 = vst [vmem:[#allocation3 + $0x70] sm:$0xff] %v1831
        %1834 = vst [vmem:[#allocation3 + $0x78] sm:$0xff] %v1832
        %v1835 = vld [vmem:[#allocation2 + $0x90] sm:$0xff]
        %v1836 = vld [vmem:[#allocation2 + $0x98] sm:$0xff]
        %v1837 = vld [vmem:[#allocation2 + $0xa0] sm:$0x3]
        %v1838 = vmul.f32 %v1835, %v845
        %v1839 = vmul.f32 %v1836, %v845
        %v1840 = vadd.f32 %v1838, 0.0
        %v1841 = vadd.f32 %v1839, 0.0
        %v1842 = vmul.f32 %v1835, %v853
        %v1843 = vmul.f32 %v1836, %v853
        %v1844 = vmul.f32 %v1837, %v853
        %v1848 = vrot.slane %v1842, 1
        %v1849 = vrot.slane %v1843, 1
        %v1850 = vsel %vm860, %v1848, %v1849
        %v1851 = vrot.slane %v1844, 1
        %v1852 = vsel %vm860, %v1849, %v1851
        %v1855 = vadd.f32 %v1840, %v1850
        %v1856 = vadd.f32 %v1841, %v1852
        %v1857 = vmul.f32 %v1835, %v873
        %v1858 = vmul.f32 %v1836, %v873
        %v1859 = vmul.f32 %v1837, %v873
        %v1863 = vrot.slane %v1857, 2
        %v1864 = vrot.slane %v1858, 2
        %v1865 = vsel %vm880, %v1863, %v1864
        %v1866 = vrot.slane %v1859, 2
        %v1867 = vsel %vm880, %v1864, %v1866
        %v1870 = vadd.f32 %v1855, %v1865
        %v1871 = vadd.f32 %v1856, %v1867
        %v1872 = vld [vmem:[#allocation2 + $0xa2] sm:$0xff]
        %v1873 = vld [vmem:[#allocation2 + $0xaa] sm:$0xff]
        %v1874 = vld [vmem:[#allocation2 + $0xb2] sm:$0x3]
        %v1875 = vmul.f32 %v1872, %v896
        %v1876 = vmul.f32 %v1873, %v896
        %v1877 = vadd.f32 %v1870, %v1875
        %v1878 = vadd.f32 %v1871, %v1876
        %v1879 = vmul.f32 %v1872, %v904
        %v1880 = vmul.f32 %v1873, %v904
        %v1881 = vmul.f32 %v1874, %v904
        %v1885 = vrot.slane %v1879, 1
        %v1886 = vrot.slane %v1880, 1
        %v1887 = vsel %vm860, %v1885, %v1886
        %v1888 = vrot.slane %v1881, 1
        %v1889 = vsel %vm860, %v1886, %v1888
        %v1892 = vadd.f32 %v1877, %v1887
        %v1893 = vadd.f32 %v1878, %v1889
        %v1894 = vmul.f32 %v1872, %v923
        %v1895 = vmul.f32 %v1873, %v923
        %v1896 = vmul.f32 %v1874, %v923
        %v1900 = vrot.slane %v1894, 2
        %v1901 = vrot.slane %v1895, 2
        %v1902 = vsel %vm880, %v1900, %v1901
        %v1903 = vrot.slane %v1896, 2
        %v1904 = vsel %vm880, %v1901, %v1903
        %v1907 = vadd.f32 %v1892, %v1902
        %v1908 = vadd.f32 %v1893, %v1904
        %v1909 = vld [vmem:[#allocation2 + $0xb4] sm:$0xff]
        %v1910 = vld [vmem:[#allocation2 + $0xbc] sm:$0xff]
        %v1911 = vld [vmem:[#allocation2 + $0xc4] sm:$0x3]
        %v1912 = vmul.f32 %v1909, %v945
        %v1913 = vmul.f32 %v1910, %v945
        %v1914 = vadd.f32 %v1907, %v1912
        %v1915 = vadd.f32 %v1908, %v1913
        %v1916 = vmul.f32 %v1909, %v953
        %v1917 = vmul.f32 %v1910, %v953
        %v1918 = vmul.f32 %v1911, %v953
        %v1922 = vrot.slane %v1916, 1
        %v1923 = vrot.slane %v1917, 1
        %v1924 = vsel %vm860, %v1922, %v1923
        %v1925 = vrot.slane %v1918, 1
        %v1926 = vsel %vm860, %v1923, %v1925
        %v1929 = vadd.f32 %v1914, %v1924
        %v1930 = vadd.f32 %v1915, %v1926
        %v1931 = vmul.f32 %v1909, %v972
        %v1932 = vmul.f32 %v1910, %v972
        %v1933 = vmul.f32 %v1911, %v972
        %v1937 = vrot.slane %v1931, 2
        %v1938 = vrot.slane %v1932, 2
        %v1939 = vsel %vm880, %v1937, %v1938
        %v1940 = vrot.slane %v1933, 2
        %v1941 = vsel %vm880, %v1938, %v1940
        %v1944 = vadd.f32 %v1929, %v1939
        %v1945 = vadd.f32 %v1930, %v1941
        %v1946 = vadd.f32 %v1944, %v992
        %v1947 = vadd.f32 %v1945, %v992
        %v1948 = vmax.f32 %v1946, 0.0
        %v1949 = vmax.f32 %v1947, 0.0
        %v1950 = vmin.f32 %v1948, 6.0
        %v1951 = vmin.f32 %v1949, 6.0
        %1952 = vst [vmem:[#allocation3 + $0x80] sm:$0xff] %v1950
        %1953 = vst [vmem:[#allocation3 + $0x88] sm:$0xff] %v1951
        %v1954 = vld [vmem:[#allocation2 + $0xa2] sm:$0xff]
        %v1955 = vld [vmem:[#allocation2 + $0xaa] sm:$0xff]
        %v1956 = vld [vmem:[#allocation2 + $0xb2] sm:$0x3]
        %v1957 = vmul.f32 %v1954, %v845
        %v1958 = vmul.f32 %v1955, %v845
        %v1959 = vadd.f32 %v1957, 0.0
        %v1960 = vadd.f32 %v1958, 0.0
        %v1961 = vmul.f32 %v1954, %v853
        %v1962 = vmul.f32 %v1955, %v853
        %v1963 = vmul.f32 %v1956, %v853
        %v1967 = vrot.slane %v1961, 1
        %v1968 = vrot.slane %v1962, 1
        %v1969 = vsel %vm860, %v1967, %v1968
        %v1970 = vrot.slane %v1963, 1
        %v1971 = vsel %vm860, %v1968, %v1970
        %v1974 = vadd.f32 %v1959, %v1969
        %v1975 = vadd.f32 %v1960, %v1971
        %v1976 = vmul.f32 %v1954, %v873
        %v1977 = vmul.f32 %v1955, %v873
        %v1978 = vmul.f32 %v1956, %v873
        %v1982 = vrot.slane %v1976, 2
        %v1983 = vrot.slane %v1977, 2
        %v1984 = vsel %vm880, %v1982, %v1983
        %v1985 = vrot.slane %v1978, 2
        %v1986 = vsel %vm880, %v1983, %v1985
        %v1989 = vadd.f32 %v1974, %v1984
        %v1990 = vadd.f32 %v1975, %v1986
        %v1991 = vld [vmem:[#allocation2 + $0xb4] sm:$0xff]
        %v1992 = vld [vmem:[#allocation2 + $0xbc] sm:$0xff]
        %v1993 = vld [vmem:[#allocation2 + $0xc4] sm:$0x3]
        %v1994 = vmul.f32 %v1991, %v896
        %v1995 = vmul.f32 %v1992, %v896
        %v1996 = vadd.f32 %v1989, %v1994
        %v1997 = vadd.f32 %v1990, %v1995
        %v1998 = vmul.f32 %v1991, %v904
        %v1999 = vmul.f32 %v1992, %v904
        %v2000 = vmul.f32 %v1993, %v904
        %v2004 = vrot.slane %v1998, 1
        %v2005 = vrot.slane %v1999, 1
        %v2006 = vsel %vm860, %v2004, %v2005
        %v2007 = vrot.slane %v2000, 1
        %v2008 = vsel %vm860, %v2005, %v2007
        %v2011 = vadd.f32 %v1996, %v2006
        %v2012 = vadd.f32 %v1997, %v2008
        %v2013 = vmul.f32 %v1991, %v923
        %v2014 = vmul.f32 %v1992, %v923
        %v2015 = vmul.f32 %v1993, %v923
        %v2019 = vrot.slane %v2013, 2
        %v2020 = vrot.slane %v2014, 2
        %v2021 = vsel %vm880, %v2019, %v2020
        %v2022 = vrot.slane %v2015, 2
        %v2023 = vsel %vm880, %v2020, %v2022
        %v2026 = vadd.f32 %v2011, %v2021
        %v2027 = vadd.f32 %v2012, %v2023
        %v2028 = vld [vmem:[#allocation2 + $0xc6] sm:$0xff]
        %v2029 = vld [vmem:[#allocation2 + $0xce] sm:$0xff]
        %v2030 = vld [vmem:[#allocation2 + $0xd6] sm:$0x3]
        %v2031 = vmul.f32 %v2028, %v945
        %v2032 = vmul.f32 %v2029, %v945
        %v2033 = vadd.f32 %v2026, %v2031
        %v2034 = vadd.f32 %v2027, %v2032
        %v2035 = vmul.f32 %v2028, %v953
        %v2036 = vmul.f32 %v2029, %v953
        %v2037 = vmul.f32 %v2030, %v953
        %v2041 = vrot.slane %v2035, 1
        %v2042 = vrot.slane %v2036, 1
        %v2043 = vsel %vm860, %v2041, %v2042
        %v2044 = vrot.slane %v2037, 1
        %v2045 = vsel %vm860, %v2042, %v2044
        %v2048 = vadd.f32 %v2033, %v2043
        %v2049 = vadd.f32 %v2034, %v2045
        %v2050 = vmul.f32 %v2028, %v972
        %v2051 = vmul.f32 %v2029, %v972
        %v2052 = vmul.f32 %v2030, %v972
        %v2056 = vrot.slane %v2050, 2
        %v2057 = vrot.slane %v2051, 2
        %v2058 = vsel %vm880, %v2056, %v2057
        %v2059 = vrot.slane %v2052, 2
        %v2060 = vsel %vm880, %v2057, %v2059
        %v2063 = vadd.f32 %v2048, %v2058
        %v2064 = vadd.f32 %v2049, %v2060
        %v2065 = vadd.f32 %v2063, %v992
        %v2066 = vadd.f32 %v2064, %v992
        %v2067 = vmax.f32 %v2065, 0.0
        %v2068 = vmax.f32 %v2066, 0.0
        %v2069 = vmin.f32 %v2067, 6.0
        %v2070 = vmin.f32 %v2068, 6.0
        %2071 = vst [vmem:[#allocation3 + $0x90] sm:$0xff] %v2069
        %2072 = vst [vmem:[#allocation3 + $0x98] sm:$0xff] %v2070
        %v2073 = vld [vmem:[#allocation2 + $0xb4] sm:$0xff]
        %v2074 = vld [vmem:[#allocation2 + $0xbc] sm:$0xff]
        %v2075 = vld [vmem:[#allocation2 + $0xc4] sm:$0x3]
        %v2076 = vmul.f32 %v2073, %v845
        %v2077 = vmul.f32 %v2074, %v845
        %v2078 = vadd.f32 %v2076, 0.0
        %v2079 = vadd.f32 %v2077, 0.0
        %v2080 = vmul.f32 %v2073, %v853
        %v2081 = vmul.f32 %v2074, %v853
        %v2082 = vmul.f32 %v2075, %v853
        %v2086 = vrot.slane %v2080, 1
        %v2087 = vrot.slane %v2081, 1
        %v2088 = vsel %vm860, %v2086, %v2087
        %v2089 = vrot.slane %v2082, 1
        %v2090 = vsel %vm860, %v2087, %v2089
        %v2093 = vadd.f32 %v2078, %v2088
        %v2094 = vadd.f32 %v2079, %v2090
        %v2095 = vmul.f32 %v2073, %v873
        %v2096 = vmul.f32 %v2074, %v873
        %v2097 = vmul.f32 %v2075, %v873
        %v2101 = vrot.slane %v2095, 2
        %v2102 = vrot.slane %v2096, 2
        %v2103 = vsel %vm880, %v2101, %v2102
        %v2104 = vrot.slane %v2097, 2
        %v2105 = vsel %vm880, %v2102, %v2104
        %v2108 = vadd.f32 %v2093, %v2103
        %v2109 = vadd.f32 %v2094, %v2105
        %v2110 = vld [vmem:[#allocation2 + $0xc6] sm:$0xff]
        %v2111 = vld [vmem:[#allocation2 + $0xce] sm:$0xff]
        %v2112 = vld [vmem:[#allocation2 + $0xd6] sm:$0x3]
        %v2113 = vmul.f32 %v2110, %v896
        %v2114 = vmul.f32 %v2111, %v896
        %v2115 = vadd.f32 %v2108, %v2113
        %v2116 = vadd.f32 %v2109, %v2114
        %v2117 = vmul.f32 %v2110, %v904
        %v2118 = vmul.f32 %v2111, %v904
        %v2119 = vmul.f32 %v2112, %v904
        %v2123 = vrot.slane %v2117, 1
        %v2124 = vrot.slane %v2118, 1
        %v2125 = vsel %vm860, %v2123, %v2124
        %v2126 = vrot.slane %v2119, 1
        %v2127 = vsel %vm860, %v2124, %v2126
        %v2130 = vadd.f32 %v2115, %v2125
        %v2131 = vadd.f32 %v2116, %v2127
        %v2132 = vmul.f32 %v2110, %v923
        %v2133 = vmul.f32 %v2111, %v923
        %v2134 = vmul.f32 %v2112, %v923
        %v2138 = vrot.slane %v2132, 2
        %v2139 = vrot.slane %v2133, 2
        %v2140 = vsel %vm880, %v2138, %v2139
        %v2141 = vrot.slane %v2134, 2
        %v2142 = vsel %vm880, %v2139, %v2141
        %v2145 = vadd.f32 %v2130, %v2140
        %v2146 = vadd.f32 %v2131, %v2142
        %v2147 = vld [vmem:[#allocation2 + $0xd8] sm:$0xff]
        %v2148 = vld [vmem:[#allocation2 + $0xe0] sm:$0xff]
        %v2149 = vld [vmem:[#allocation2 + $0xe8] sm:$0x3]
        %v2150 = vmul.f32 %v2147, %v945
        %v2151 = vmul.f32 %v2148, %v945
        %v2152 = vadd.f32 %v2145, %v2150
        %v2153 = vadd.f32 %v2146, %v2151
        %v2154 = vmul.f32 %v2147, %v953
        %v2155 = vmul.f32 %v2148, %v953
        %v2156 = vmul.f32 %v2149, %v953
        %v2160 = vrot.slane %v2154, 1
        %v2161 = vrot.slane %v2155, 1
        %v2162 = vsel %vm860, %v2160, %v2161
        %v2163 = vrot.slane %v2156, 1
        %v2164 = vsel %vm860, %v2161, %v2163
        %v2167 = vadd.f32 %v2152, %v2162
        %v2168 = vadd.f32 %v2153, %v2164
        %v2169 = vmul.f32 %v2147, %v972
        %v2170 = vmul.f32 %v2148, %v972
        %v2171 = vmul.f32 %v2149, %v972
        %v2175 = vrot.slane %v2169, 2
        %v2176 = vrot.slane %v2170, 2
        %v2177 = vsel %vm880, %v2175, %v2176
        %v2178 = vrot.slane %v2171, 2
        %v2179 = vsel %vm880, %v2176, %v2178
        %v2182 = vadd.f32 %v2167, %v2177
        %v2183 = vadd.f32 %v2168, %v2179
        %v2184 = vadd.f32 %v2182, %v992
        %v2185 = vadd.f32 %v2183, %v992
        %v2186 = vmax.f32 %v2184, 0.0
        %v2187 = vmax.f32 %v2185, 0.0
        %v2188 = vmin.f32 %v2186, 6.0
        %v2189 = vmin.f32 %v2187, 6.0
        %2190 = vst [vmem:[#allocation3 + $0xa0] sm:$0xff] %v2188
        %2191 = vst [vmem:[#allocation3 + $0xa8] sm:$0xff] %v2189
        %v2192 = vld [vmem:[#allocation2 + $0xc6] sm:$0xff]
        %v2193 = vld [vmem:[#allocation2 + $0xce] sm:$0xff]
        %v2194 = vld [vmem:[#allocation2 + $0xd6] sm:$0x3]
        %v2195 = vmul.f32 %v2192, %v845
        %v2196 = vmul.f32 %v2193, %v845
        %v2197 = vadd.f32 %v2195, 0.0
        %v2198 = vadd.f32 %v2196, 0.0
        %v2199 = vmul.f32 %v2192, %v853
        %v2200 = vmul.f32 %v2193, %v853
        %v2201 = vmul.f32 %v2194, %v853
        %v2205 = vrot.slane %v2199, 1
        %v2206 = vrot.slane %v2200, 1
        %v2207 = vsel %vm860, %v2205, %v2206
        %v2208 = vrot.slane %v2201, 1
        %v2209 = vsel %vm860, %v2206, %v2208
        %v2212 = vadd.f32 %v2197, %v2207
        %v2213 = vadd.f32 %v2198, %v2209
        %v2214 = vmul.f32 %v2192, %v873
        %v2215 = vmul.f32 %v2193, %v873
        %v2216 = vmul.f32 %v2194, %v873
        %v2220 = vrot.slane %v2214, 2
        %v2221 = vrot.slane %v2215, 2
        %v2222 = vsel %vm880, %v2220, %v2221
        %v2223 = vrot.slane %v2216, 2
        %v2224 = vsel %vm880, %v2221, %v2223
        %v2227 = vadd.f32 %v2212, %v2222
        %v2228 = vadd.f32 %v2213, %v2224
        %v2229 = vld [vmem:[#allocation2 + $0xd8] sm:$0xff]
        %v2230 = vld [vmem:[#allocation2 + $0xe0] sm:$0xff]
        %v2231 = vld [vmem:[#allocation2 + $0xe8] sm:$0x3]
        %v2232 = vmul.f32 %v2229, %v896
        %v2233 = vmul.f32 %v2230, %v896
        %v2234 = vadd.f32 %v2227, %v2232
        %v2235 = vadd.f32 %v2228, %v2233
        %v2236 = vmul.f32 %v2229, %v904
        %v2237 = vmul.f32 %v2230, %v904
        %v2238 = vmul.f32 %v2231, %v904
        %v2242 = vrot.slane %v2236, 1
        %v2243 = vrot.slane %v2237, 1
        %v2244 = vsel %vm860, %v2242, %v2243
        %v2245 = vrot.slane %v2238, 1
        %v2246 = vsel %vm860, %v2243, %v2245
        %v2249 = vadd.f32 %v2234, %v2244
        %v2250 = vadd.f32 %v2235, %v2246
        %v2251 = vmul.f32 %v2229, %v923
        %v2252 = vmul.f32 %v2230, %v923
        %v2253 = vmul.f32 %v2231, %v923
        %v2257 = vrot.slane %v2251, 2
        %v2258 = vrot.slane %v2252, 2
        %v2259 = vsel %vm880, %v2257, %v2258
        %v2260 = vrot.slane %v2253, 2
        %v2261 = vsel %vm880, %v2258, %v2260
        %v2264 = vadd.f32 %v2249, %v2259
        %v2265 = vadd.f32 %v2250, %v2261
        %v2266 = vld [vmem:[#allocation2 + $0xea] sm:$0xff]
        %v2267 = vld [vmem:[#allocation2 + $0xf2] sm:$0xff]
        %v2268 = vld [vmem:[#allocation2 + $0xfa] sm:$0x3]
        %v2269 = vmul.f32 %v2266, %v945
        %v2270 = vmul.f32 %v2267, %v945
        %v2271 = vadd.f32 %v2264, %v2269
        %v2272 = vadd.f32 %v2265, %v2270
        %v2273 = vmul.f32 %v2266, %v953
        %v2274 = vmul.f32 %v2267, %v953
        %v2275 = vmul.f32 %v2268, %v953
        %v2279 = vrot.slane %v2273, 1
        %v2280 = vrot.slane %v2274, 1
        %v2281 = vsel %vm860, %v2279, %v2280
        %v2282 = vrot.slane %v2275, 1
        %v2283 = vsel %vm860, %v2280, %v2282
        %v2286 = vadd.f32 %v2271, %v2281
        %v2287 = vadd.f32 %v2272, %v2283
        %v2288 = vmul.f32 %v2266, %v972
        %v2289 = vmul.f32 %v2267, %v972
        %v2290 = vmul.f32 %v2268, %v972
        %v2294 = vrot.slane %v2288, 2
        %v2295 = vrot.slane %v2289, 2
        %v2296 = vsel %vm880, %v2294, %v2295
        %v2297 = vrot.slane %v2290, 2
        %v2298 = vsel %vm880, %v2295, %v2297
        %v2301 = vadd.f32 %v2286, %v2296
        %v2302 = vadd.f32 %v2287, %v2298
        %v2303 = vadd.f32 %v2301, %v992
        %v2304 = vadd.f32 %v2302, %v992
        %v2305 = vmax.f32 %v2303, 0.0
        %v2306 = vmax.f32 %v2304, 0.0
        %v2307 = vmin.f32 %v2305, 6.0
        %v2308 = vmin.f32 %v2306, 6.0
        %2309 = vst [vmem:[#allocation3 + $0xb0] sm:$0xff] %v2307
        %2310 = vst [vmem:[#allocation3 + $0xb8] sm:$0xff] %v2308
        %v2311 = vld [vmem:[#allocation2 + $0xd8] sm:$0xff]
        %v2312 = vld [vmem:[#allocation2 + $0xe0] sm:$0xff]
        %v2313 = vld [vmem:[#allocation2 + $0xe8] sm:$0x3]
        %v2314 = vmul.f32 %v2311, %v845
        %v2315 = vmul.f32 %v2312, %v845
        %v2316 = vadd.f32 %v2314, 0.0
        %v2317 = vadd.f32 %v2315, 0.0
        %v2318 = vmul.f32 %v2311, %v853
        %v2319 = vmul.f32 %v2312, %v853
        %v2320 = vmul.f32 %v2313, %v853
        %v2324 = vrot.slane %v2318, 1
        %v2325 = vrot.slane %v2319, 1
        %v2326 = vsel %vm860, %v2324, %v2325
        %v2327 = vrot.slane %v2320, 1
        %v2328 = vsel %vm860, %v2325, %v2327
        %v2331 = vadd.f32 %v2316, %v2326
        %v2332 = vadd.f32 %v2317, %v2328
        %v2333 = vmul.f32 %v2311, %v873
        %v2334 = vmul.f32 %v2312, %v873
        %v2335 = vmul.f32 %v2313, %v873
        %v2339 = vrot.slane %v2333, 2
        %v2340 = vrot.slane %v2334, 2
        %v2341 = vsel %vm880, %v2339, %v2340
        %v2342 = vrot.slane %v2335, 2
        %v2343 = vsel %vm880, %v2340, %v2342
        %v2346 = vadd.f32 %v2331, %v2341
        %v2347 = vadd.f32 %v2332, %v2343
        %v2348 = vld [vmem:[#allocation2 + $0xea] sm:$0xff]
        %v2349 = vld [vmem:[#allocation2 + $0xf2] sm:$0xff]
        %v2350 = vld [vmem:[#allocation2 + $0xfa] sm:$0x3]
        %v2351 = vmul.f32 %v2348, %v896
        %v2352 = vmul.f32 %v2349, %v896
        %v2353 = vadd.f32 %v2346, %v2351
        %v2354 = vadd.f32 %v2347, %v2352
        %v2355 = vmul.f32 %v2348, %v904
        %v2356 = vmul.f32 %v2349, %v904
        %v2357 = vmul.f32 %v2350, %v904
        %v2361 = vrot.slane %v2355, 1
        %v2362 = vrot.slane %v2356, 1
        %v2363 = vsel %vm860, %v2361, %v2362
        %v2364 = vrot.slane %v2357, 1
        %v2365 = vsel %vm860, %v2362, %v2364
        %v2368 = vadd.f32 %v2353, %v2363
        %v2369 = vadd.f32 %v2354, %v2365
        %v2370 = vmul.f32 %v2348, %v923
        %v2371 = vmul.f32 %v2349, %v923
        %v2372 = vmul.f32 %v2350, %v923
        %v2376 = vrot.slane %v2370, 2
        %v2377 = vrot.slane %v2371, 2
        %v2378 = vsel %vm880, %v2376, %v2377
        %v2379 = vrot.slane %v2372, 2
        %v2380 = vsel %vm880, %v2377, %v2379
        %v2383 = vadd.f32 %v2368, %v2378
        %v2384 = vadd.f32 %v2369, %v2380
        %v2385 = vld [vmem:[#allocation2 + $0xfc] sm:$0xff]
        %v2386 = vld [vmem:[#allocation2 + $0x104] sm:$0xff]
        %v2387 = vld [vmem:[#allocation2 + $0x10c] sm:$0x3]
        %v2388 = vmul.f32 %v2385, %v945
        %v2389 = vmul.f32 %v2386, %v945
        %v2390 = vadd.f32 %v2383, %v2388
        %v2391 = vadd.f32 %v2384, %v2389
        %v2392 = vmul.f32 %v2385, %v953
        %v2393 = vmul.f32 %v2386, %v953
        %v2394 = vmul.f32 %v2387, %v953
        %v2398 = vrot.slane %v2392, 1
        %v2399 = vrot.slane %v2393, 1
        %v2400 = vsel %vm860, %v2398, %v2399
        %v2401 = vrot.slane %v2394, 1
        %v2402 = vsel %vm860, %v2399, %v2401
        %v2405 = vadd.f32 %v2390, %v2400
        %v2406 = vadd.f32 %v2391, %v2402
        %v2407 = vmul.f32 %v2385, %v972
        %v2408 = vmul.f32 %v2386, %v972
        %v2409 = vmul.f32 %v2387, %v972
        %v2413 = vrot.slane %v2407, 2
        %v2414 = vrot.slane %v2408, 2
        %v2415 = vsel %vm880, %v2413, %v2414
        %v2416 = vrot.slane %v2409, 2
        %v2417 = vsel %vm880, %v2414, %v2416
        %v2420 = vadd.f32 %v2405, %v2415
        %v2421 = vadd.f32 %v2406, %v2417
        %v2422 = vadd.f32 %v2420, %v992
        %v2423 = vadd.f32 %v2421, %v992
        %v2424 = vmax.f32 %v2422, 0.0
        %v2425 = vmax.f32 %v2423, 0.0
        %v2426 = vmin.f32 %v2424, 6.0
        %v2427 = vmin.f32 %v2425, 6.0
        %2428 = vst [vmem:[#allocation3 + $0xc0] sm:$0xff] %v2426
        %2429 = vst [vmem:[#allocation3 + $0xc8] sm:$0xff] %v2427
        %v2430 = vld [vmem:[#allocation2 + $0xea] sm:$0xff]
        %v2431 = vld [vmem:[#allocation2 + $0xf2] sm:$0xff]
        %v2432 = vld [vmem:[#allocation2 + $0xfa] sm:$0x3]
        %v2433 = vmul.f32 %v2430, %v845
        %v2434 = vmul.f32 %v2431, %v845
        %v2435 = vadd.f32 %v2433, 0.0
        %v2436 = vadd.f32 %v2434, 0.0
        %v2437 = vmul.f32 %v2430, %v853
        %v2438 = vmul.f32 %v2431, %v853
        %v2439 = vmul.f32 %v2432, %v853
        %v2443 = vrot.slane %v2437, 1
        %v2444 = vrot.slane %v2438, 1
        %v2445 = vsel %vm860, %v2443, %v2444
        %v2446 = vrot.slane %v2439, 1
        %v2447 = vsel %vm860, %v2444, %v2446
        %v2450 = vadd.f32 %v2435, %v2445
        %v2451 = vadd.f32 %v2436, %v2447
        %v2452 = vmul.f32 %v2430, %v873
        %v2453 = vmul.f32 %v2431, %v873
        %v2454 = vmul.f32 %v2432, %v873
        %v2458 = vrot.slane %v2452, 2
        %v2459 = vrot.slane %v2453, 2
        %v2460 = vsel %vm880, %v2458, %v2459
        %v2461 = vrot.slane %v2454, 2
        %v2462 = vsel %vm880, %v2459, %v2461
        %v2465 = vadd.f32 %v2450, %v2460
        %v2466 = vadd.f32 %v2451, %v2462
        %v2467 = vld [vmem:[#allocation2 + $0xfc] sm:$0xff]
        %v2468 = vld [vmem:[#allocation2 + $0x104] sm:$0xff]
        %v2469 = vld [vmem:[#allocation2 + $0x10c] sm:$0x3]
        %v2470 = vmul.f32 %v2467, %v896
        %v2471 = vmul.f32 %v2468, %v896
        %v2472 = vadd.f32 %v2465, %v2470
        %v2473 = vadd.f32 %v2466, %v2471
        %v2474 = vmul.f32 %v2467, %v904
        %v2475 = vmul.f32 %v2468, %v904
        %v2476 = vmul.f32 %v2469, %v904
        %v2480 = vrot.slane %v2474, 1
        %v2481 = vrot.slane %v2475, 1
        %v2482 = vsel %vm860, %v2480, %v2481
        %v2483 = vrot.slane %v2476, 1
        %v2484 = vsel %vm860, %v2481, %v2483
        %v2487 = vadd.f32 %v2472, %v2482
        %v2488 = vadd.f32 %v2473, %v2484
        %v2489 = vmul.f32 %v2467, %v923
        %v2490 = vmul.f32 %v2468, %v923
        %v2491 = vmul.f32 %v2469, %v923
        %v2495 = vrot.slane %v2489, 2
        %v2496 = vrot.slane %v2490, 2
        %v2497 = vsel %vm880, %v2495, %v2496
        %v2498 = vrot.slane %v2491, 2
        %v2499 = vsel %vm880, %v2496, %v2498
        %v2502 = vadd.f32 %v2487, %v2497
        %v2503 = vadd.f32 %v2488, %v2499
        %v2504 = vld [vmem:[#allocation2 + $0x10e] sm:$0xff]
        %v2505 = vld [vmem:[#allocation2 + $0x116] sm:$0xff]
        %v2506 = vld [vmem:[#allocation2 + $0x11e] sm:$0x3]
        %v2507 = vmul.f32 %v2504, %v945
        %v2508 = vmul.f32 %v2505, %v945
        %v2509 = vadd.f32 %v2502, %v2507
        %v2510 = vadd.f32 %v2503, %v2508
        %v2511 = vmul.f32 %v2504, %v953
        %v2512 = vmul.f32 %v2505, %v953
        %v2513 = vmul.f32 %v2506, %v953
        %v2517 = vrot.slane %v2511, 1
        %v2518 = vrot.slane %v2512, 1
        %v2519 = vsel %vm860, %v2517, %v2518
        %v2520 = vrot.slane %v2513, 1
        %v2521 = vsel %vm860, %v2518, %v2520
        %v2524 = vadd.f32 %v2509, %v2519
        %v2525 = vadd.f32 %v2510, %v2521
        %v2526 = vmul.f32 %v2504, %v972
        %v2527 = vmul.f32 %v2505, %v972
        %v2528 = vmul.f32 %v2506, %v972
        %v2532 = vrot.slane %v2526, 2
        %v2533 = vrot.slane %v2527, 2
        %v2534 = vsel %vm880, %v2532, %v2533
        %v2535 = vrot.slane %v2528, 2
        %v2536 = vsel %vm880, %v2533, %v2535
        %v2539 = vadd.f32 %v2524, %v2534
        %v2540 = vadd.f32 %v2525, %v2536
        %v2541 = vadd.f32 %v2539, %v992
        %v2542 = vadd.f32 %v2540, %v992
        %v2543 = vmax.f32 %v2541, 0.0
        %v2544 = vmax.f32 %v2542, 0.0
        %v2545 = vmin.f32 %v2543, 6.0
        %v2546 = vmin.f32 %v2544, 6.0
        %2547 = vst [vmem:[#allocation3 + $0xd0] sm:$0xff] %v2545
        %2548 = vst [vmem:[#allocation3 + $0xd8] sm:$0xff] %v2546
        %v2549 = vld [vmem:[#allocation2 + $0xfc] sm:$0xff]
        %v2550 = vld [vmem:[#allocation2 + $0x104] sm:$0xff]
        %v2551 = vld [vmem:[#allocation2 + $0x10c] sm:$0x3]
        %v2552 = vmul.f32 %v2549, %v845
        %v2553 = vmul.f32 %v2550, %v845
        %v2554 = vadd.f32 %v2552, 0.0
        %v2555 = vadd.f32 %v2553, 0.0
        %v2556 = vmul.f32 %v2549, %v853
        %v2557 = vmul.f32 %v2550, %v853
        %v2558 = vmul.f32 %v2551, %v853
        %v2562 = vrot.slane %v2556, 1
        %v2563 = vrot.slane %v2557, 1
        %v2564 = vsel %vm860, %v2562, %v2563
        %v2565 = vrot.slane %v2558, 1
        %v2566 = vsel %vm860, %v2563, %v2565
        %v2569 = vadd.f32 %v2554, %v2564
        %v2570 = vadd.f32 %v2555, %v2566
        %v2571 = vmul.f32 %v2549, %v873
        %v2572 = vmul.f32 %v2550, %v873
        %v2573 = vmul.f32 %v2551, %v873
        %v2577 = vrot.slane %v2571, 2
        %v2578 = vrot.slane %v2572, 2
        %v2579 = vsel %vm880, %v2577, %v2578
        %v2580 = vrot.slane %v2573, 2
        %v2581 = vsel %vm880, %v2578, %v2580
        %v2584 = vadd.f32 %v2569, %v2579
        %v2585 = vadd.f32 %v2570, %v2581
        %v2586 = vld [vmem:[#allocation2 + $0x10e] sm:$0xff]
        %v2587 = vld [vmem:[#allocation2 + $0x116] sm:$0xff]
        %v2588 = vld [vmem:[#allocation2 + $0x11e] sm:$0x3]
        %v2589 = vmul.f32 %v2586, %v896
        %v2590 = vmul.f32 %v2587, %v896
        %v2591 = vadd.f32 %v2584, %v2589
        %v2592 = vadd.f32 %v2585, %v2590
        %v2593 = vmul.f32 %v2586, %v904
        %v2594 = vmul.f32 %v2587, %v904
        %v2595 = vmul.f32 %v2588, %v904
        %v2599 = vrot.slane %v2593, 1
        %v2600 = vrot.slane %v2594, 1
        %v2601 = vsel %vm860, %v2599, %v2600
        %v2602 = vrot.slane %v2595, 1
        %v2603 = vsel %vm860, %v2600, %v2602
        %v2606 = vadd.f32 %v2591, %v2601
        %v2607 = vadd.f32 %v2592, %v2603
        %v2608 = vmul.f32 %v2586, %v923
        %v2609 = vmul.f32 %v2587, %v923
        %v2610 = vmul.f32 %v2588, %v923
        %v2614 = vrot.slane %v2608, 2
        %v2615 = vrot.slane %v2609, 2
        %v2616 = vsel %vm880, %v2614, %v2615
        %v2617 = vrot.slane %v2610, 2
        %v2618 = vsel %vm880, %v2615, %v2617
        %v2621 = vadd.f32 %v2606, %v2616
        %v2622 = vadd.f32 %v2607, %v2618
        %v2623 = vld [vmem:[#allocation2 + $0x120] sm:$0xff]
        %v2624 = vld [vmem:[#allocation2 + $0x128] sm:$0xff]
        %v2625 = vld [vmem:[#allocation2 + $0x130] sm:$0x3]
        %v2626 = vmul.f32 %v2623, %v945
        %v2627 = vmul.f32 %v2624, %v945
        %v2628 = vadd.f32 %v2621, %v2626
        %v2629 = vadd.f32 %v2622, %v2627
        %v2630 = vmul.f32 %v2623, %v953
        %v2631 = vmul.f32 %v2624, %v953
        %v2632 = vmul.f32 %v2625, %v953
        %v2636 = vrot.slane %v2630, 1
        %v2637 = vrot.slane %v2631, 1
        %v2638 = vsel %vm860, %v2636, %v2637
        %v2639 = vrot.slane %v2632, 1
        %v2640 = vsel %vm860, %v2637, %v2639
        %v2643 = vadd.f32 %v2628, %v2638
        %v2644 = vadd.f32 %v2629, %v2640
        %v2645 = vmul.f32 %v2623, %v972
        %v2646 = vmul.f32 %v2624, %v972
        %v2647 = vmul.f32 %v2625, %v972
        %v2651 = vrot.slane %v2645, 2
        %v2652 = vrot.slane %v2646, 2
        %v2653 = vsel %vm880, %v2651, %v2652
        %v2654 = vrot.slane %v2647, 2
        %v2655 = vsel %vm880, %v2652, %v2654
        %v2658 = vadd.f32 %v2643, %v2653
        %v2659 = vadd.f32 %v2644, %v2655
        %v2660 = vadd.f32 %v2658, %v992
        %v2661 = vadd.f32 %v2659, %v992
        %v2662 = vmax.f32 %v2660, 0.0
        %v2663 = vmax.f32 %v2661, 0.0
        %v2664 = vmin.f32 %v2662, 6.0
        %v2665 = vmin.f32 %v2663, 6.0
        %2666 = vst [vmem:[#allocation3 + $0xe0] sm:$0xff] %v2664
        %2667 = vst [vmem:[#allocation3 + $0xe8] sm:$0xff] %v2665
        %v2668 = vld [vmem:[#allocation2 + $0x10e] sm:$0xff]
        %v2669 = vld [vmem:[#allocation2 + $0x116] sm:$0xff]
        %v2670 = vld [vmem:[#allocation2 + $0x11e] sm:$0x3]
        %v2671 = vmul.f32 %v2668, %v845
        %v2672 = vmul.f32 %v2669, %v845
        %v2673 = vadd.f32 %v2671, 0.0
        %v2674 = vadd.f32 %v2672, 0.0
        %v2675 = vmul.f32 %v2668, %v853
        %v2676 = vmul.f32 %v2669, %v853
        %v2677 = vmul.f32 %v2670, %v853
        %v2681 = vrot.slane %v2675, 1
        %v2682 = vrot.slane %v2676, 1
        %v2683 = vsel %vm860, %v2681, %v2682
        %v2684 = vrot.slane %v2677, 1
        %v2685 = vsel %vm860, %v2682, %v2684
        %v2688 = vadd.f32 %v2673, %v2683
        %v2689 = vadd.f32 %v2674, %v2685
        %v2690 = vmul.f32 %v2668, %v873
        %v2691 = vmul.f32 %v2669, %v873
        %v2692 = vmul.f32 %v2670, %v873
        %v2696 = vrot.slane %v2690, 2
        %v2697 = vrot.slane %v2691, 2
        %v2698 = vsel %vm880, %v2696, %v2697
        %v2699 = vrot.slane %v2692, 2
        %v2700 = vsel %vm880, %v2697, %v2699
        %v2703 = vadd.f32 %v2688, %v2698
        %v2704 = vadd.f32 %v2689, %v2700
        %v2705 = vld [vmem:[#allocation2 + $0x120] sm:$0xff]
        %v2706 = vld [vmem:[#allocation2 + $0x128] sm:$0xff]
        %v2707 = vld [vmem:[#allocation2 + $0x130] sm:$0x3]
        %v2708 = vmul.f32 %v2705, %v896
        %v2709 = vmul.f32 %v2706, %v896
        %v2710 = vadd.f32 %v2703, %v2708
        %v2711 = vadd.f32 %v2704, %v2709
        %v2712 = vmul.f32 %v2705, %v904
        %v2713 = vmul.f32 %v2706, %v904
        %v2714 = vmul.f32 %v2707, %v904
        %v2718 = vrot.slane %v2712, 1
        %v2719 = vrot.slane %v2713, 1
        %v2720 = vsel %vm860, %v2718, %v2719
        %v2721 = vrot.slane %v2714, 1
        %v2722 = vsel %vm860, %v2719, %v2721
        %v2725 = vadd.f32 %v2710, %v2720
        %v2726 = vadd.f32 %v2711, %v2722
        %v2727 = vmul.f32 %v2705, %v923
        %v2728 = vmul.f32 %v2706, %v923
        %v2729 = vmul.f32 %v2707, %v923
        %v2733 = vrot.slane %v2727, 2
        %v2734 = vrot.slane %v2728, 2
        %v2735 = vsel %vm880, %v2733, %v2734
        %v2736 = vrot.slane %v2729, 2
        %v2737 = vsel %vm880, %v2734, %v2736
        %v2740 = vadd.f32 %v2725, %v2735
        %v2741 = vadd.f32 %v2726, %v2737
        %v2742 = vld [vmem:[#allocation2 + $0x132] sm:$0xff]
        %v2743 = vld [vmem:[#allocation2 + $0x13a] sm:$0xff]
        %v2744 = vld [vmem:[#allocation2 + $0x142] sm:$0x3]
        %v2745 = vmul.f32 %v2742, %v945
        %v2746 = vmul.f32 %v2743, %v945
        %v2747 = vadd.f32 %v2740, %v2745
        %v2748 = vadd.f32 %v2741, %v2746
        %v2749 = vmul.f32 %v2742, %v953
        %v2750 = vmul.f32 %v2743, %v953
        %v2751 = vmul.f32 %v2744, %v953
        %v2755 = vrot.slane %v2749, 1
        %v2756 = vrot.slane %v2750, 1
        %v2757 = vsel %vm860, %v2755, %v2756
        %v2758 = vrot.slane %v2751, 1
        %v2759 = vsel %vm860, %v2756, %v2758
        %v2762 = vadd.f32 %v2747, %v2757
        %v2763 = vadd.f32 %v2748, %v2759
        %v2764 = vmul.f32 %v2742, %v972
        %v2765 = vmul.f32 %v2743, %v972
        %v2766 = vmul.f32 %v2744, %v972
        %v2770 = vrot.slane %v2764, 2
        %v2771 = vrot.slane %v2765, 2
        %v2772 = vsel %vm880, %v2770, %v2771
        %v2773 = vrot.slane %v2766, 2
        %v2774 = vsel %vm880, %v2771, %v2773
        %v2777 = vadd.f32 %v2762, %v2772
        %v2778 = vadd.f32 %v2763, %v2774
        %v2779 = vadd.f32 %v2777, %v992
        %v2780 = vadd.f32 %v2778, %v992
        %v2781 = vmax.f32 %v2779, 0.0
        %v2782 = vmax.f32 %v2780, 0.0
        %v2783 = vmin.f32 %v2781, 6.0
        %v2784 = vmin.f32 %v2782, 6.0
        %2785 = vst [vmem:[#allocation3 + $0xf0] sm:$0xff] %v2783
        %2786 = vst [vmem:[#allocation3 + $0xf8] sm:$0xff] %v2784
        %v2787 = vld [vmem:[#allocation3] sm:$0xff]
        %v2788 = vld [vmem:[#allocation3 + $0x8] sm:$0xff]
        %v2789 = vld [vmem:[#allocation3 + $0x10] sm:$0xff]
        %v2790 = vld [vmem:[#allocation3 + $0x18] sm:$0xff]
        %v2791 = vld [vmem:[#allocation3 + $0x20] sm:$0xff]
        %v2792 = vld [vmem:[#allocation3 + $0x28] sm:$0xff]
        %v2793 = vld [vmem:[#allocation3 + $0x30] sm:$0xff]
        %v2794 = vld [vmem:[#allocation3 + $0x38] sm:$0xff]
        %v2795 = vld [vmem:[#allocation3 + $0x40] sm:$0xff]
        %v2796 = vld [vmem:[#allocation3 + $0x48] sm:$0xff]
        %v2797 = vld [vmem:[#allocation3 + $0x50] sm:$0xff]
        %v2798 = vld [vmem:[#allocation3 + $0x58] sm:$0xff]
        %v2799 = vld [vmem:[#allocation3 + $0x60] sm:$0xff]
        %v2800 = vld [vmem:[#allocation3 + $0x68] sm:$0xff]
        %v2801 = vld [vmem:[#allocation3 + $0x70] sm:$0xff]
        %v2802 = vld [vmem:[#allocation3 + $0x78] sm:$0xff]
        %v2803 = vld [vmem:[#allocation3 + $0x80] sm:$0xff]
        %v2804 = vld [vmem:[#allocation3 + $0x88] sm:$0xff]
        %v2805 = vld [vmem:[#allocation3 + $0x90] sm:$0xff]
        %v2806 = vld [vmem:[#allocation3 + $0x98] sm:$0xff]
        %v2807 = vld [vmem:[#allocation3 + $0xa0] sm:$0xff]
        %v2808 = vld [vmem:[#allocation3 + $0xa8] sm:$0xff]
        %v2809 = vld [vmem:[#allocation3 + $0xb0] sm:$0xff]
        %v2810 = vld [vmem:[#allocation3 + $0xb8] sm:$0xff]
        %v2811 = vld [vmem:[#allocation3 + $0xc0] sm:$0xff]
        %v2812 = vld [vmem:[#allocation3 + $0xc8] sm:$0xff]
        %v2813 = vld [vmem:[#allocation3 + $0xd0] sm:$0xff]
        %v2814 = vld [vmem:[#allocation3 + $0xd8] sm:$0xff]
        %v2815 = vld [vmem:[#allocation3 + $0xe0] sm:$0xff]
        %v2816 = vld [vmem:[#allocation3 + $0xe8] sm:$0xff]
        %v2817 = vld [vmem:[#allocation3 + $0xf0] sm:$0xff]
        %v2818 = vld [vmem:[#allocation3 + $0xf8] sm:$0xff]
        %v2819 = vld [vmem:[%s4] sm:$0xff]
        %v2820 = vld [vmem:[%s4 + $0x8] sm:$0xff]
        %v2821 = vld [vmem:[%s4 + $0x10] sm:$0xff]
        %v2822 = vld [vmem:[%s4 + $0x18] sm:$0xff]
        %v2823 = vld [vmem:[%s4 + $0x20] sm:$0xff]
        %v2824 = vld [vmem:[%s4 + $0x28] sm:$0xff]
        %v2825 = vld [vmem:[%s4 + $0x30] sm:$0xff]
        %v2826 = vld [vmem:[%s4 + $0x38] sm:$0xff]
        %v2827 = vld [vmem:[%s4 + $0x40] sm:$0xff]
        %v2828 = vld [vmem:[%s4 + $0x48] sm:$0xff]
        %v2829 = vld [vmem:[%s4 + $0x50] sm:$0xff]
        %v2830 = vld [vmem:[%s4 + $0x58] sm:$0xff]
        %v2831 = vld [vmem:[%s4 + $0x60] sm:$0xff]
        %v2832 = vld [vmem:[%s4 + $0x68] sm:$0xff]
        %v2833 = vld [vmem:[%s4 + $0x70] sm:$0xff]
        %v2834 = vld [vmem:[%s4 + $0x78] sm:$0xff]
        %v2835 = vld [vmem:[%s5] sm:$0x1]
        %v2837 = vlaneseq
        %v2838 = vshrl.u32 %v2837, 7
        %v2839 = vsub.s32 0, %v2838
        %v2840 = vrot.slane %v2835, %v2839
        %2842 = vmatprep.subr.mxu0 0.0
        %2843 = vmatpush1.msra.mxu0 %v2819
        %2844 = vmatprep.subr.mxu0 0.0
        %2845 = vmatpush1.msra.mxu0 %v2820
        %2846 = vmatprep.subr.mxu0 0.0
        %2847 = vmatpush1.msra.mxu0 %v2821
        %2848 = vmatprep.subr.mxu0 0.0
        %2849 = vmatpush1.msra.mxu0 %v2822
        %2850 = vmatprep.subr.mxu0 0.0
        %2851 = vmatpush1.msra.mxu0 %v2823
        %2852 = vmatprep.subr.mxu0 0.0
        %2853 = vmatpush1.msra.mxu0 %v2824
        %2854 = vmatprep.subr.mxu0 0.0
        %2855 = vmatpush1.msra.mxu0 %v2825
        %2856 = vmatprep.subr.mxu0 0.0
        %2857 = vmatpush1.msra.mxu0 %v2826
        %2858 = vmatprep.subr.mxu0 0.0
        %2859 = vmatpush1.msra.mxu0 %v2827
        %2860 = vmatprep.subr.mxu0 0.0
        %2861 = vmatpush1.msra.mxu0 %v2828
        %2862 = vmatprep.subr.mxu0 0.0
        %2863 = vmatpush1.msra.mxu0 %v2829
        %2864 = vmatprep.subr.mxu0 0.0
        %2865 = vmatpush1.msra.mxu0 %v2830
        %2866 = vmatprep.subr.mxu0 0.0
        %2867 = vmatpush1.msra.mxu0 %v2831
        %2868 = vmatprep.subr.mxu0 0.0
        %2869 = vmatpush1.msra.mxu0 %v2832
        %2870 = vmatprep.subr.mxu0 0.0
        %2871 = vmatpush1.msra.mxu0 %v2833
        %2872 = vmatprep.subr.mxu0 0.0
        %2873 = vmatpush1.msra.mxu0 %v2834
        %2874 = vmatprep.subr.mxu0 0.0
        %2875 = vmatpush1.msra.mxu0 0.0
        %2876 = vmatprep.subr.mxu0 0.0
        %2877 = vmatpush1.msra.mxu0 0.0
        %2878 = vmatprep.subr.mxu0 0.0
        %2879 = vmatpush1.msra.mxu0 0.0
        %2880 = vmatprep.subr.mxu0 0.0
        %2881 = vmatpush1.msra.mxu0 0.0
        %2882 = vmatprep.subr.mxu0 0.0
        %2883 = vmatpush1.msra.mxu0 0.0
        %2884 = vmatprep.subr.mxu0 0.0
        %2885 = vmatpush1.msra.mxu0 0.0
        %2886 = vmatprep.subr.mxu0 0.0
        %2887 = vmatpush1.msra.mxu0 0.0
        %2888 = vmatprep.subr.mxu0 0.0
        %2889 = vmatpush1.msra.mxu0 0.0
        %2890 = vmatprep.subr.mxu0 0.0
        %2891 = vmatpush1.msra.mxu0 0.0
        %2892 = vmatprep.subr.mxu0 0.0
        %2893 = vmatpush1.msra.mxu0 0.0
        %2894 = vmatprep.subr.mxu0 0.0
        %2895 = vmatpush1.msra.mxu0 0.0
        %2896 = vmatprep.subr.mxu0 0.0
        %2897 = vmatpush1.msra.mxu0 0.0
        %2898 = vmatprep.subr.mxu0 0.0
        %2899 = vmatpush1.msra.mxu0 0.0
        %2900 = vmatprep.subr.mxu0 0.0
        %2901 = vmatpush1.msra.mxu0 0.0
        %2902 = vmatprep.subr.mxu0 0.0
        %2903 = vmatpush1.msra.mxu0 0.0
        %2904 = vmatprep.subr.mxu0 0.0
        %2905 = vmatpush1.msra.mxu0 0.0
        %2906 = vmatprep.mubr.f32.mxu0 0.0
        %2907 = vmatmul.mubr.f32.gmra.mrb[0].mxu0 %v2787
        %v2908 = vpop.f32.mrb[0].mxu0
        %v2909 = vadd.f32 %v2840, %v2908
        %v2910 = vpop.f32.mrb[0].mxu0
        %2911 = vmatprep.mubr.f32.mxu0 0.0
        %2912 = vmatmul.mubr.f32.gmra.mrb[0].mxu0 %v2788
        %v2913 = vpop.f32.mrb[0].mxu0
        %v2914 = vadd.f32 %v2840, %v2913
        %v2915 = vpop.f32.mrb[0].mxu0
        %2916 = vmatprep.mubr.f32.mxu0 0.0
        %2917 = vmatmul.mubr.f32.gmra.mrb[0].mxu0 %v2789
        %v2918 = vpop.f32.mrb[0].mxu0
        %v2919 = vadd.f32 %v2840, %v2918
        %v2920 = vpop.f32.mrb[0].mxu0
        %2921 = vmatprep.mubr.f32.mxu0 0.0
        %2922 = vmatmul.mubr.f32.gmra.mrb[0].mxu0 %v2790
        %v2923 = vpop.f32.mrb[0].mxu0
        %v2924 = vadd.f32 %v2840, %v2923
        %v2925 = vpop.f32.mrb[0].mxu0
        %2926 = vmatprep.mubr.f32.mxu0 0.0
        %2927 = vmatmul.mubr.f32.gmra.mrb[0].mxu0 %v2791
        %v2928 = vpop.f32.mrb[0].mxu0
        %v2929 = vadd.f32 %v2840, %v2928
        %v2930 = vpop.f32.mrb[0].mxu0
        %2931 = vmatprep.mubr.f32.mxu0 0.0
        %2932 = vmatmul.mubr.f32.gmra.mrb[0].mxu0 %v2792
        %v2933 = vpop.f32.mrb[0].mxu0
        %v2934 = vadd.f32 %v2840, %v2933
        %v2935 = vpop.f32.mrb[0].mxu0
        %2936 = vmatprep.mubr.f32.mxu0 0.0
        %2937 = vmatmul.mubr.f32.gmra.mrb[0].mxu0 %v2793
        %v2938 = vpop.f32.mrb[0].mxu0
        %v2939 = vadd.f32 %v2840, %v2938
        %v2940 = vpop.f32.mrb[0].mxu0
        %2941 = vmatprep.mubr.f32.mxu0 0.0
        %2942 = vmatmul.mubr.f32.gmra.mrb[0].mxu0 %v2794
        %v2943 = vpop.f32.mrb[0].mxu0
        %v2944 = vadd.f32 %v2840, %v2943
        %v2945 = vpop.f32.mrb[0].mxu0
        %2946 = vmatprep.mubr.f32.mxu0 0.0
        %2947 = vmatmul.mubr.f32.gmra.mrb[0].mxu0 %v2795
        %v2948 = vpop.f32.mrb[0].mxu0
        %v2949 = vadd.f32 %v2840, %v2948
        %v2950 = vpop.f32.mrb[0].mxu0
        %2951 = vmatprep.mubr.f32.mxu0 0.0
        %2952 = vmatmul.mubr.f32.gmra.mrb[0].mxu0 %v2796
        %v2953 = vpop.f32.mrb[0].mxu0
        %v2954 = vadd.f32 %v2840, %v2953
        %v2955 = vpop.f32.mrb[0].mxu0
        %2956 = vmatprep.mubr.f32.mxu0 0.0
        %2957 = vmatmul.mubr.f32.gmra.mrb[0].mxu0 %v2797
        %v2958 = vpop.f32.mrb[0].mxu0
        %v2959 = vadd.f32 %v2840, %v2958
        %v2960 = vpop.f32.mrb[0].mxu0
        %2961 = vmatprep.mubr.f32.mxu0 0.0
        %2962 = vmatmul.mubr.f32.gmra.mrb[0].mxu0 %v2798
        %v2963 = vpop.f32.mrb[0].mxu0
        %v2964 = vadd.f32 %v2840, %v2963
        %v2965 = vpop.f32.mrb[0].mxu0
        %2966 = vmatprep.mubr.f32.mxu0 0.0
        %2967 = vmatmul.mubr.f32.gmra.mrb[0].mxu0 %v2799
        %v2968 = vpop.f32.mrb[0].mxu0
        %v2969 = vadd.f32 %v2840, %v2968
        %v2970 = vpop.f32.mrb[0].mxu0
        %2971 = vmatprep.mubr.f32.mxu0 0.0
        %2972 = vmatmul.mubr.f32.gmra.mrb[0].mxu0 %v2800
        %v2973 = vpop.f32.mrb[0].mxu0
        %v2974 = vadd.f32 %v2840, %v2973
        %v2975 = vpop.f32.mrb[0].mxu0
        %2976 = vmatprep.mubr.f32.mxu0 0.0
        %2977 = vmatmul.mubr.f32.gmra.mrb[0].mxu0 %v2801
        %v2978 = vpop.f32.mrb[0].mxu0
        %v2979 = vadd.f32 %v2840, %v2978
        %v2980 = vpop.f32.mrb[0].mxu0
        %2981 = vmatprep.mubr.f32.mxu0 0.0
        %2982 = vmatmul.mubr.f32.gmra.mrb[0].mxu0 %v2802
        %v2983 = vpop.f32.mrb[0].mxu0
        %v2984 = vadd.f32 %v2840, %v2983
        %v2985 = vpop.f32.mrb[0].mxu0
        %2986 = vmatprep.mubr.f32.mxu0 0.0
        %2987 = vmatmul.mubr.f32.gmra.mrb[0].mxu0 %v2803
        %v2988 = vpop.f32.mrb[0].mxu0
        %v2989 = vadd.f32 %v2840, %v2988
        %v2990 = vpop.f32.mrb[0].mxu0
        %2991 = vmatprep.mubr.f32.mxu0 0.0
        %2992 = vmatmul.mubr.f32.gmra.mrb[0].mxu0 %v2804
        %v2993 = vpop.f32.mrb[0].mxu0
        %v2994 = vadd.f32 %v2840, %v2993
        %v2995 = vpop.f32.mrb[0].mxu0
        %2996 = vmatprep.mubr.f32.mxu0 0.0
        %2997 = vmatmul.mubr.f32.gmra.mrb[0].mxu0 %v2805
        %v2998 = vpop.f32.mrb[0].mxu0
        %v2999 = vadd.f32 %v2840, %v2998
        %v3000 = vpop.f32.mrb[0].mxu0
        %3001 = vmatprep.mubr.f32.mxu0 0.0
        %3002 = vmatmul.mubr.f32.gmra.mrb[0].mxu0 %v2806
        %v3003 = vpop.f32.mrb[0].mxu0
        %v3004 = vadd.f32 %v2840, %v3003
        %v3005 = vpop.f32.mrb[0].mxu0
        %3006 = vmatprep.mubr.f32.mxu0 0.0
        %3007 = vmatmul.mubr.f32.gmra.mrb[0].mxu0 %v2807
        %v3008 = vpop.f32.mrb[0].mxu0
        %v3009 = vadd.f32 %v2840, %v3008
        %v3010 = vpop.f32.mrb[0].mxu0
        %3011 = vmatprep.mubr.f32.mxu0 0.0
        %3012 = vmatmul.mubr.f32.gmra.mrb[0].mxu0 %v2808
        %v3013 = vpop.f32.mrb[0].mxu0
        %v3014 = vadd.f32 %v2840, %v3013
        %v3015 = vpop.f32.mrb[0].mxu0
        %3016 = vmatprep.mubr.f32.mxu0 0.0
        %3017 = vmatmul.mubr.f32.gmra.mrb[0].mxu0 %v2809
        %v3018 = vpop.f32.mrb[0].mxu0
        %v3019 = vadd.f32 %v2840, %v3018
        %v3020 = vpop.f32.mrb[0].mxu0
        %3021 = vmatprep.mubr.f32.mxu0 0.0
        %3022 = vmatmul.mubr.f32.gmra.mrb[0].mxu0 %v2810
        %v3023 = vpop.f32.mrb[0].mxu0
        %v3024 = vadd.f32 %v2840, %v3023
        %v3025 = vpop.f32.mrb[0].mxu0
        %3026 = vmatprep.mubr.f32.mxu0 0.0
        %3027 = vmatmul.mubr.f32.gmra.mrb[0].mxu0 %v2811
        %v3028 = vpop.f32.mrb[0].mxu0
        %v3029 = vadd.f32 %v2840, %v3028
        %v3030 = vpop.f32.mrb[0].mxu0
        %3031 = vmatprep.mubr.f32.mxu0 0.0
        %3032 = vmatmul.mubr.f32.gmra.mrb[0].mxu0 %v2812
        %v3033 = vpop.f32.mrb[0].mxu0
        %v3034 = vadd.f32 %v2840, %v3033
        %v3035 = vpop.f32.mrb[0].mxu0
        %3036 = vmatprep.mubr.f32.mxu0 0.0
        %3037 = vmatmul.mubr.f32.gmra.mrb[0].mxu0 %v2813
        %v3038 = vpop.f32.mrb[0].mxu0
        %v3039 = vadd.f32 %v2840, %v3038
        %v3040 = vpop.f32.mrb[0].mxu0
        %3041 = vmatprep.mubr.f32.mxu0 0.0
        %3042 = vmatmul.mubr.f32.gmra.mrb[0].mxu0 %v2814
        %v3043 = vpop.f32.mrb[0].mxu0
        %v3044 = vadd.f32 %v2840, %v3043
        %v3045 = vpop.f32.mrb[0].mxu0
        %3046 = vmatprep.mubr.f32.mxu0 0.0
        %3047 = vmatmul.mubr.f32.gmra.mrb[0].mxu0 %v2815
        %v3048 = vpop.f32.mrb[0].mxu0
        %v3049 = vadd.f32 %v2840, %v3048
        %v3050 = vpop.f32.mrb[0].mxu0
        %3051 = vmatprep.mubr.f32.mxu0 0.0
        %3052 = vmatmul.mubr.f32.gmra.mrb[0].mxu0 %v2816
        %v3053 = vpop.f32.mrb[0].mxu0
        %v3054 = vadd.f32 %v2840, %v3053
        %v3055 = vpop.f32.mrb[0].mxu0
        %3056 = vmatprep.mubr.f32.mxu0 0.0
        %3057 = vmatmul.mubr.f32.gmra.mrb[0].mxu0 %v2817
        %v3058 = vpop.f32.mrb[0].mxu0
        %v3059 = vadd.f32 %v2840, %v3058
        %v3060 = vpop.f32.mrb[0].mxu0
        %3061 = vmatprep.mubr.f32.mxu0 0.0
        %3062 = vmatmul.mubr.f32.gmra.mrb[0].mxu0 %v2818
        %v3063 = vpop.f32.mrb[0].mxu0
        %v3064 = vadd.f32 %v2840, %v3063
        %v3065 = vpop.f32.mrb[0].mxu0
        %3066 = vdwg.mxu0
        %3067 = vst [vmem:[%s258] sm:$0xff] %v2909
        %3068 = vst [vmem:[%s258 + $0x8] sm:$0xff] %v2914
        %3069 = vst [vmem:[%s258 + $0x10] sm:$0xff] %v2919
        %3070 = vst [vmem:[%s258 + $0x18] sm:$0xff] %v2924
        %3071 = vst [vmem:[%s258 + $0x20] sm:$0xff] %v2929
        %3072 = vst [vmem:[%s258 + $0x28] sm:$0xff] %v2934
        %3073 = vst [vmem:[%s258 + $0x30] sm:$0xff] %v2939
        %3074 = vst [vmem:[%s258 + $0x38] sm:$0xff] %v2944
        %3075 = vst [vmem:[%s258 + $0x40] sm:$0xff] %v2949
        %3076 = vst [vmem:[%s258 + $0x48] sm:$0xff] %v2954
        %3077 = vst [vmem:[%s258 + $0x50] sm:$0xff] %v2959
        %3078 = vst [vmem:[%s258 + $0x58] sm:$0xff] %v2964
        %3079 = vst [vmem:[%s258 + $0x60] sm:$0xff] %v2969
        %3080 = vst [vmem:[%s258 + $0x68] sm:$0xff] %v2974
        %3081 = vst [vmem:[%s258 + $0x70] sm:$0xff] %v2979
        %3082 = vst [vmem:[%s258 + $0x78] sm:$0xff] %v2984
        %3083 = vst [vmem:[%s258 + $0x80] sm:$0xff] %v2989
        %3084 = vst [vmem:[%s258 + $0x88] sm:$0xff] %v2994
        %3085 = vst [vmem:[%s258 + $0x90] sm:$0xff] %v2999
        %3086 = vst [vmem:[%s258 + $0x98] sm:$0xff] %v3004
        %3087 = vst [vmem:[%s258 + $0xa0] sm:$0xff] %v3009
        %3088 = vst [vmem:[%s258 + $0xa8] sm:$0xff] %v3014
        %3089 = vst [vmem:[%s258 + $0xb0] sm:$0xff] %v3019
        %3090 = vst [vmem:[%s258 + $0xb8] sm:$0xff] %v3024
        %3091 = vst [vmem:[%s258 + $0xc0] sm:$0xff] %v3029
        %3092 = vst [vmem:[%s258 + $0xc8] sm:$0xff] %v3034
        %3093 = vst [vmem:[%s258 + $0xd0] sm:$0xff] %v3039
        %3094 = vst [vmem:[%s258 + $0xd8] sm:$0xff] %v3044
        %3095 = vst [vmem:[%s258 + $0xe0] sm:$0xff] %v3049
        %3096 = vst [vmem:[%s258 + $0xe8] sm:$0xff] %v3054
        %3097 = vst [vmem:[%s258 + $0xf0] sm:$0xff] %v3059
        %3098 = vst [vmem:[%s258 + $0xf8] sm:$0xff] %v3064
        %s3099 = sadd.s32 %s264, 19
        %s3100 = scalar_lea.vmem %s263, %s3099
        %v3101 = vld [vmem:[%s3100] sm:$0xff]
        %v3102 = vld [vmem:[%s3100 + $0x8] sm:$0xff]
        %v3103 = vld [vmem:[%s258] sm:$0xff]
        %v3104 = vld [vmem:[%s258 + $0x8] sm:$0xff]
        %v3105 = vadd.f32 %v3103, %v3101
        %v3106 = vadd.f32 %v3104, %v3102
        %vm3107 = vcmask 31744
        %3108 = vst.msk [vmem:[%s258] sm:$0xff] %vm3107, %v3105
        %3109 = vst.msk [vmem:[%s258 + $0x8] sm:$0xff] %vm3107, %v3106
        %s3110 = sadd.s32 %s264, 37
        %s3111 = scalar_lea.vmem %s263, %s3110
        %v3112 = vld [vmem:[%s3111] sm:$0xff]
        %v3113 = vld [vmem:[%s3111 + $0x8] sm:$0xff]
        %v3114 = vld [vmem:[%s258 + $0x10] sm:$0xff]
        %v3115 = vld [vmem:[%s258 + $0x18] sm:$0xff]
        %v3116 = vadd.f32 %v3114, %v3112
        %v3117 = vadd.f32 %v3115, %v3113
        %3118 = vst.msk [vmem:[%s258 + $0x10] sm:$0xff] %vm3107, %v3116
        %3119 = vst.msk [vmem:[%s258 + $0x18] sm:$0xff] %vm3107, %v3117
        %s3120 = sadd.s32 %s264, 55
        %s3121 = scalar_lea.vmem %s263, %s3120
        %v3122 = vld [vmem:[%s3121] sm:$0xff]
        %v3123 = vld [vmem:[%s3121 + $0x8] sm:$0xff]
        %v3124 = vld [vmem:[%s258 + $0x20] sm:$0xff]
        %v3125 = vld [vmem:[%s258 + $0x28] sm:$0xff]
        %v3126 = vadd.f32 %v3124, %v3122
        %v3127 = vadd.f32 %v3125, %v3123
        %3128 = vst.msk [vmem:[%s258 + $0x20] sm:$0xff] %vm3107, %v3126
        %3129 = vst.msk [vmem:[%s258 + $0x28] sm:$0xff] %vm3107, %v3127
        %s3130 = sadd.s32 %s264, 73
        %s3131 = scalar_lea.vmem %s263, %s3130
        %v3132 = vld [vmem:[%s3131] sm:$0xff]
        %v3133 = vld [vmem:[%s3131 + $0x8] sm:$0xff]
        %v3134 = vld [vmem:[%s258 + $0x30] sm:$0xff]
        %v3135 = vld [vmem:[%s258 + $0x38] sm:$0xff]
        %v3136 = vadd.f32 %v3134, %v3132
        %v3137 = vadd.f32 %v3135, %v3133
        %3138 = vst.msk [vmem:[%s258 + $0x30] sm:$0xff] %vm3107, %v3136
        %3139 = vst.msk [vmem:[%s258 + $0x38] sm:$0xff] %vm3107, %v3137
        %s3140 = sadd.s32 %s264, 91
        %s3141 = scalar_lea.vmem %s263, %s3140
        %v3142 = vld [vmem:[%s3141] sm:$0xff]
        %v3143 = vld [vmem:[%s3141 + $0x8] sm:$0xff]
        %v3144 = vld [vmem:[%s258 + $0x40] sm:$0xff]
        %v3145 = vld [vmem:[%s258 + $0x48] sm:$0xff]
        %v3146 = vadd.f32 %v3144, %v3142
        %v3147 = vadd.f32 %v3145, %v3143
        %3148 = vst.msk [vmem:[%s258 + $0x40] sm:$0xff] %vm3107, %v3146
        %3149 = vst.msk [vmem:[%s258 + $0x48] sm:$0xff] %vm3107, %v3147
        %s3150 = sadd.s32 %s264, 109
        %s3151 = scalar_lea.vmem %s263, %s3150
        %v3152 = vld [vmem:[%s3151] sm:$0xff]
        %v3153 = vld [vmem:[%s3151 + $0x8] sm:$0xff]
        %v3154 = vld [vmem:[%s258 + $0x50] sm:$0xff]
        %v3155 = vld [vmem:[%s258 + $0x58] sm:$0xff]
        %v3156 = vadd.f32 %v3154, %v3152
        %v3157 = vadd.f32 %v3155, %v3153
        %3158 = vst.msk [vmem:[%s258 + $0x50] sm:$0xff] %vm3107, %v3156
        %3159 = vst.msk [vmem:[%s258 + $0x58] sm:$0xff] %vm3107, %v3157
        %s3160 = sadd.s32 %s264, 127
        %s3161 = scalar_lea.vmem %s263, %s3160
        %v3162 = vld [vmem:[%s3161] sm:$0xff]
        %v3163 = vld [vmem:[%s3161 + $0x8] sm:$0xff]
        %v3164 = vld [vmem:[%s258 + $0x60] sm:$0xff]
        %v3165 = vld [vmem:[%s258 + $0x68] sm:$0xff]
        %v3166 = vadd.f32 %v3164, %v3162
        %v3167 = vadd.f32 %v3165, %v3163
        %3168 = vst.msk [vmem:[%s258 + $0x60] sm:$0xff] %vm3107, %v3166
        %3169 = vst.msk [vmem:[%s258 + $0x68] sm:$0xff] %vm3107, %v3167
        %s3170 = sadd.s32 %s264, 145
        %s3171 = scalar_lea.vmem %s263, %s3170
        %v3172 = vld [vmem:[%s3171] sm:$0xff]
        %v3173 = vld [vmem:[%s3171 + $0x8] sm:$0xff]
        %v3174 = vld [vmem:[%s258 + $0x70] sm:$0xff]
        %v3175 = vld [vmem:[%s258 + $0x78] sm:$0xff]
        %v3176 = vadd.f32 %v3174, %v3172
        %v3177 = vadd.f32 %v3175, %v3173
        %3178 = vst.msk [vmem:[%s258 + $0x70] sm:$0xff] %vm3107, %v3176
        %3179 = vst.msk [vmem:[%s258 + $0x78] sm:$0xff] %vm3107, %v3177
        %s3180 = sadd.s32 %s264, 163
        %s3181 = scalar_lea.vmem %s263, %s3180
        %v3182 = vld [vmem:[%s3181] sm:$0xff]
        %v3183 = vld [vmem:[%s3181 + $0x8] sm:$0xff]
        %v3184 = vld [vmem:[%s258 + $0x80] sm:$0xff]
        %v3185 = vld [vmem:[%s258 + $0x88] sm:$0xff]
        %v3186 = vadd.f32 %v3184, %v3182
        %v3187 = vadd.f32 %v3185, %v3183
        %3188 = vst.msk [vmem:[%s258 + $0x80] sm:$0xff] %vm3107, %v3186
        %3189 = vst.msk [vmem:[%s258 + $0x88] sm:$0xff] %vm3107, %v3187
        %s3190 = sadd.s32 %s264, 181
        %s3191 = scalar_lea.vmem %s263, %s3190
        %v3192 = vld [vmem:[%s3191] sm:$0xff]
        %v3193 = vld [vmem:[%s3191 + $0x8] sm:$0xff]
        %v3194 = vld [vmem:[%s258 + $0x90] sm:$0xff]
        %v3195 = vld [vmem:[%s258 + $0x98] sm:$0xff]
        %v3196 = vadd.f32 %v3194, %v3192
        %v3197 = vadd.f32 %v3195, %v3193
        %3198 = vst.msk [vmem:[%s258 + $0x90] sm:$0xff] %vm3107, %v3196
        %3199 = vst.msk [vmem:[%s258 + $0x98] sm:$0xff] %vm3107, %v3197
        %s3200 = sadd.s32 %s264, 199
        %s3201 = scalar_lea.vmem %s263, %s3200
        %v3202 = vld [vmem:[%s3201] sm:$0xff]
        %v3203 = vld [vmem:[%s3201 + $0x8] sm:$0xff]
        %v3204 = vld [vmem:[%s258 + $0xa0] sm:$0xff]
        %v3205 = vld [vmem:[%s258 + $0xa8] sm:$0xff]
        %v3206 = vadd.f32 %v3204, %v3202
        %v3207 = vadd.f32 %v3205, %v3203
        %3208 = vst.msk [vmem:[%s258 + $0xa0] sm:$0xff] %vm3107, %v3206
        %3209 = vst.msk [vmem:[%s258 + $0xa8] sm:$0xff] %vm3107, %v3207
        %s3210 = sadd.s32 %s264, 217
        %s3211 = scalar_lea.vmem %s263, %s3210
        %v3212 = vld [vmem:[%s3211] sm:$0xff]
        %v3213 = vld [vmem:[%s3211 + $0x8] sm:$0xff]
        %v3214 = vld [vmem:[%s258 + $0xb0] sm:$0xff]
        %v3215 = vld [vmem:[%s258 + $0xb8] sm:$0xff]
        %v3216 = vadd.f32 %v3214, %v3212
        %v3217 = vadd.f32 %v3215, %v3213
        %3218 = vst.msk [vmem:[%s258 + $0xb0] sm:$0xff] %vm3107, %v3216
        %3219 = vst.msk [vmem:[%s258 + $0xb8] sm:$0xff] %vm3107, %v3217
        %s3220 = sadd.s32 %s264, 235
        %s3221 = scalar_lea.vmem %s263, %s3220
        %v3222 = vld [vmem:[%s3221] sm:$0xff]
        %v3223 = vld [vmem:[%s3221 + $0x8] sm:$0xff]
        %v3224 = vld [vmem:[%s258 + $0xc0] sm:$0xff]
        %v3225 = vld [vmem:[%s258 + $0xc8] sm:$0xff]
        %v3226 = vadd.f32 %v3224, %v3222
        %v3227 = vadd.f32 %v3225, %v3223
        %3228 = vst.msk [vmem:[%s258 + $0xc0] sm:$0xff] %vm3107, %v3226
        %3229 = vst.msk [vmem:[%s258 + $0xc8] sm:$0xff] %vm3107, %v3227
        %s3230 = sadd.s32 %s264, 253
        %s3231 = scalar_lea.vmem %s263, %s3230
        %v3232 = vld [vmem:[%s3231] sm:$0xff]
        %v3233 = vld [vmem:[%s3231 + $0x8] sm:$0xff]
        %v3234 = vld [vmem:[%s258 + $0xd0] sm:$0xff]
        %v3235 = vld [vmem:[%s258 + $0xd8] sm:$0xff]
        %v3236 = vadd.f32 %v3234, %v3232
        %v3237 = vadd.f32 %v3235, %v3233
        %3238 = vst.msk [vmem:[%s258 + $0xd0] sm:$0xff] %vm3107, %v3236
        %3239 = vst.msk [vmem:[%s258 + $0xd8] sm:$0xff] %vm3107, %v3237
        %s3240 = sadd.s32 %s264, 271
        %s3241 = scalar_lea.vmem %s263, %s3240
        %v3242 = vld [vmem:[%s3241] sm:$0xff]
        %v3243 = vld [vmem:[%s3241 + $0x8] sm:$0xff]
        %v3244 = vld [vmem:[%s258 + $0xe0] sm:$0xff]
        %v3245 = vld [vmem:[%s258 + $0xe8] sm:$0xff]
        %v3246 = vadd.f32 %v3244, %v3242
        %v3247 = vadd.f32 %v3245, %v3243
        %3248 = vst.msk [vmem:[%s258 + $0xe0] sm:$0xff] %vm3107, %v3246
        %3249 = vst.msk [vmem:[%s258 + $0xe8] sm:$0xff] %vm3107, %v3247
        %s3250 = sadd.s32 %s264, 289
        %s3251 = scalar_lea.vmem %s263, %s3250
        %v3252 = vld [vmem:[%s3251] sm:$0xff]
        %v3253 = vld [vmem:[%s3251 + $0x8] sm:$0xff]
        %v3254 = vld [vmem:[%s258 + $0xf0] sm:$0xff]
        %v3255 = vld [vmem:[%s258 + $0xf8] sm:$0xff]
        %v3256 = vadd.f32 %v3254, %v3252
        %v3257 = vadd.f32 %v3255, %v3253
        %3258 = vst.msk [vmem:[%s258 + $0xf0] sm:$0xff] %vm3107, %v3256
        %3259 = vst.msk [vmem:[%s258 + $0xf8] sm:$0xff] %vm3107, %v3257
        %s3260 = sand.u32 %s173, 1
        %s3261 = scalar_lea.sflag [#allocation5], %s3260
        %s3262 = sand.u32 %s173, 1
        %s3263 = smul.addr %s3262, 256
        %s3264 = scalar_lea.vmem [#allocation4], %s3263
        // Predicated region
        $region45: #{tpu_custom_call.1} parent=43 // pred_check
          %p3265 = pneg %p183
        $region46: #{tpu_custom_call.1} parent=43 // pred_check_branch
          %3267 = sbr.rel (%p3265) target = $region48
        $region47: #{tpu_custom_call.1} parent=43 // pred_region
          %s3269 = ssub.s32 4096, 4096
          %3270 = vsyncadd %s3261, %s3269
          %s3271 = smul.addr %s25, 32
          %s3272 = smul.addr %s24, 32
          %s3273 = sadd.s32 %s3271, %s3272
          %s3274 = smul.addr %s3273, 128
          %s3275 = scalar_lea.hbm %s6, %s3274
          %s3276 = sshll.u32 %s3264, 4
          %s3277 = int_to_ptr.vmem [resolvable:$true] %s3276
          %3282 = dma.vmem_to_hbm [thread:$0]  %s3277, 4096, %s3275, %s3261, 128, 128, 8
        $region48: #{tpu_custom_call.1} parent=43 // pred_fallthru
          _
      $region44: #{tpu_custom_call.1} parent=5 // pred_fallthru
        _
      %p3283 = scmp.le.s32.totalorder 2, %s15
      // Predicated region
      $region49: #{tpu_custom_call.1} parent=5 // pred_check
        %p3284 = pneg %p3283
      $region50: #{tpu_custom_call.1} parent=5 // pred_check_branch
        %3286 = sbr.rel (%p3284) target = $region52
      $region51: #{tpu_custom_call.1} parent=5 // pred_region
        %s3287 = ssub.s32 %s15, 2
        // Predicated region
        $region53: #{tpu_custom_call.1} parent=51 // pred_check
          %p3288 = pneg %p189
        $region54: #{tpu_custom_call.1} parent=51 // pred_check_branch
          %3290 = sbr.rel (%p3288) target = $region56
        $region55: #{tpu_custom_call.1} parent=51 // pred_region
          %s3291 = sand.u32 %s174, 1
          %s3292 = scalar_lea.sflag [#allocation5], %s3291
          %s3293 = sand.u32 %s174, 1
          %s3294 = smul.addr %s3293, 256
          %s3295 = scalar_lea.vmem [#allocation4], %s3294
          %3296 = dma.done %s3292, 4096
        $region56: #{tpu_custom_call.1} parent=51 // pred_fallthru
          _
      $region52: #{tpu_custom_call.1} parent=5 // pred_fallthru
        _
    $region6: #{tpu_custom_call.1} parent=1 // loop_footer
      %s19 = sadd.s32 1, %s15
    $region7: #{tpu_custom_call.1} parent=1 // loop_footer_branch
      %14 = sbr.rel target = $region3
    $region8: #{tpu_custom_call.1} parent=1 // loop_exit
      _
    %3297 = vsyncpa [#allocation5], 1
    %s3298 = scalar_lea.sflag [#allocation5], 1
    %3299 = vsyncpa %s3298, 1

</llo_original>
